<compile_context>
chip_gen: v6e
topology: v6e:2x2x1
jax: 0.10.0
libtpu: 0.0.40
codegen_flags: <defaults>
</compile_context>

<pallas_src>
import functools

import jax
import jax.numpy as jnp
from jax import lax
from jax.experimental import pallas as pl
from jax.experimental.pallas import tpu as pltpu

EPS = 1e-5


def _vmem_capacity_bytes():
    try:
        return int(pltpu.get_tpu_info().vmem_capacity_bytes)
    except Exception:
        return 64 * 1024 * 1024            # conservative (v7x-sized) fallback


_VMEM_BYTES = _vmem_capacity_bytes()
# Explicit scoped-VMEM budget (v7x ~50 MiB of 64; v5e/v6e ~100 MiB of 128).
_VMEM_LIMIT = max(32 << 20, int(_VMEM_BYTES * 0.78))
# Per-grid-step working-set target used when picking tile sizes.
_VMEM_BUDGET = int(_VMEM_BYTES * 0.45)


# --------------------------------------------------------------------------
# Pass 1 / pass 2 kernel: 3x3 conv over one (image, row-band), channel-major.
# --------------------------------------------------------------------------
def _conv3x3_band_kernel(x_ref, halo_ref, w_ref, scale_ref, shift_ref,
                         y_ref, stats_ref, *, apply_prologue, use_bf16):
    """One grid step = one (image n, row-band t).

    x_ref     : (1, C, TH*W)     band rows, channel-major, row-major lanes
    halo_ref  : (1, 1, C, 2*W)   rows just above / below the band (clipped)
    w_ref     : (9, Cout, C)     tap-major transposed conv weights
    scale_ref : (C, 1)           folded BN scale for the *input* (pass 2 only)
    shift_ref : (C, 1)           folded BN shift for the *input* (pass 2 only)
    y_ref     : (1, Cout, TH*W)  raw (pre-BN) conv output, lane-dense
    stats_ref : (1, 1, Cout, 2)  per-band [sum, sum-of-squares] of y
    """
    C = x_ref.shape[1]
    THW = x_ref.shape[2]
    Cout = w_ref.shape[1]
    W = halo_ref.shape[3] // 2

    band = x_ref[0]                                   # (C, TH*W)
    halo = halo_ref[0, 0]                             # (C, 2*W)
    top, bot = halo[:, :W], halo[:, W:]               # (C, W) each

    if apply_prologue:                                # BN1 affine + ReLU
        scale = scale_ref[...]                        # (C, 1), broadcasts
        shift = shift_ref[...]
        band = jnp.maximum(band * scale + shift, 0.0)
        top = jnp.maximum(top * scale + shift, 0.0)
        bot = jnp.maximum(bot * scale + shift, 0.0)

    # Halo rows outside the image must be zero *after* the prologue.
    t = pl.program_id(1)
    tv = (t > 0).astype(jnp.float32)
    bv = (t < pl.num_programs(1) - 1).astype(jnp.float32)

    # [guard | top row | band rows | bottom row | guard], row-major lanes.
    zlane = jnp.zeros((C, 1), jnp.float32)
    rows = jnp.concatenate([zlane, top * tv, band, bot * bv, zlane], axis=1)

    # Column masks that re-impose the left/right zero padding for the
    # column-shifted taps (shift-and-mask conv: no im2col, no reshapes).
    col = lax.broadcasted_iota(jnp.int32, (1, THW), 1) % W
    mask_l = (col != 0).astype(jnp.float32)           # kills col==-1 wraparound
    mask_r = (col != W - 1).astype(jnp.float32)       # kills col==W  wraparound

    mxu = jnp.bfloat16 if use_bf16 else jnp.float32
    acc = jnp.zeros((Cout, THW), jnp.float32)
    for k in range(9):                                # 9 accumulated K=C matmuls
        dy, dx = divmod(k, 3)
        start = dy * W + dx                           # guard lanes absorb +-1
        patch = rows[:, start:start + THW]            # (C, TH*W) lane slice
        if dx == 0:
            patch = patch * mask_l
        elif dx == 2:
            patch = patch * mask_r
        acc = acc + jnp.dot(w_ref[k].astype(mxu), patch.astype(mxu),
                            preferred_element_type=jnp.float32)

    y_ref[0] = acc                                    # lane width TH*W (>=128)

    # BN statistics fused into the conv epilogue (single pass over acc).
    s1 = jnp.sum(acc, axis=1, keepdims=True)          # (Cout, 1)
    s2 = jnp.sum(acc * acc, axis=1, keepdims=True)
    stats_ref[0, 0] = jnp.concatenate([s1, s2], axis=1)   # (Cout, 2)


def _conv3x3_pass(x, halo, w9, scale, shift, *, th, apply_prologue, use_bf16):
    """x: (N, C, H*W) channel-major activation.  Returns (y, stats)."""
    N, C, HW = x.shape
    W = halo.shape[-1] // 2
    H = HW // W
    nb = H // th
    Cout = w9.shape[1]

    kernel = functools.partial(_conv3x3_band_kernel,
                               apply_prologue=apply_prologue,
                               use_bf16=use_bf16)
    return pl.pallas_call(
        kernel,
        out_shape=(
            jax.ShapeDtypeStruct((N, Cout, HW), jnp.float32),
            jax.ShapeDtypeStruct((N, nb, Cout, 2), jnp.float32),
        ),
        grid_spec=pltpu.PrefetchScalarGridSpec(
            num_scalar_prefetch=0,
            grid=(N, nb),
            in_specs=[
                pl.BlockSpec((1, C, th * W), lambda n, t: (n, 0, t)),
                pl.BlockSpec((1, 1, C, 2 * W), lambda n, t: (n, t, 0, 0)),
                pl.BlockSpec((9, Cout, C), lambda n, t: (0, 0, 0)),
                pl.BlockSpec((C, 1), lambda n, t: (0, 0)),
                pl.BlockSpec((C, 1), lambda n, t: (0, 0)),
            ],
            out_specs=[
                pl.BlockSpec((1, Cout, th * W), lambda n, t: (n, 0, t)),
                pl.BlockSpec((1, 1, Cout, 2), lambda n, t: (n, t, 0, 0)),
            ],
        ),
        compiler_params=pltpu.CompilerParams(
            dimension_semantics=("parallel", "parallel"),
            vmem_limit_bytes=_VMEM_LIMIT,
        ),
    )(x, halo, w9, scale, shift)


# --------------------------------------------------------------------------
# Pass 3 kernel: BN2 affine + ReLU, channel-major lane-dense blocks.
# --------------------------------------------------------------------------
def _bn_relu_kernel(y_ref, scale_ref, shift_ref, o_ref):
    # y_ref/o_ref: (1, Cout, TL); scale/shift: (Cout, 1) broadcast over lanes.
    o_ref[0] = jnp.maximum(y_ref[0] * scale_ref[...] + shift_ref[...], 0.0)


def _bn_relu_pass(y, scale, shift, *, tl):
    N, Cout, HW = y.shape
    return pl.pallas_call(
        _bn_relu_kernel,
        out_shape=jax.ShapeDtypeStruct((N, Cout, HW), jnp.float32),
        grid=(N, HW // tl),
        in_specs=[
            pl.BlockSpec((1, Cout, tl), lambda n, j: (n, 0, j)),
            pl.BlockSpec((Cout, 1), lambda n, j: (0, 0)),
            pl.BlockSpec((Cout, 1), lambda n, j: (0, 0)),
        ],
        out_specs=pl.BlockSpec((1, Cout, tl), lambda n, j: (n, 0, j)),
        compiler_params=pltpu.CompilerParams(
            dimension_semantics=("parallel", "parallel"),
            vmem_limit_bytes=_VMEM_LIMIT,
        ),
    )(y, scale, shift)


# --------------------------------------------------------------------------
# Wrapper-side helpers.
# --------------------------------------------------------------------------
def _gather_halo_rows(x4, th):
    """x4: (N, C, H, W) -> (N, nb, C, 2*W): the row above / below each band.

    Out-of-image rows are gathered clipped; the kernel zero-masks them (they
    must be zero *after* the pass-2 prologue, so the mask lives in-kernel).
    Only 2 rows per band are touched -> negligible extra HBM traffic.
    """
    N, C, H, W = x4.shape
    nb = H // th
    t = jnp.arange(nb)
    top = x4[:, :, jnp.clip(t * th - 1, 0, H - 1), :]     # (N, C, nb, W)
    bot = x4[:, :, jnp.clip(t * th + th, 0, H - 1), :]    # (N, C, nb, W)
    halo = jnp.concatenate([top, bot], axis=3)            # (N, C, nb, 2W)
    return jnp.transpose(halo, (0, 2, 1, 3))              # (N, nb, C, 2W)


def _fold_bn(stats, gamma, beta, count):
    """Combine per-band [sum, sumsq] partials into folded (scale, shift)."""
    total = jnp.sum(stats, axis=(0, 1))                    # (Cout, 2)
    mean = total[:, 0] / count
    # TODO(synk): switch to a shifted/Welford sumsq if E[x^2]-mean^2
    #             cancellation ever exceeds the tolerance.
    var = jnp.maximum(total[:, 1] / count - mean * mean, 0.0)
    scale = gamma * lax.rsqrt(var + EPS)
    shift = beta - mean * scale
    return scale.reshape(-1, 1), shift.reshape(-1, 1)


def _valid_band_rows(h, w):
    """Row-band heights that satisfy the (8,128) BlockSpec constraints."""
    ths = []
    for th in range(h, 0, -1):
        if h % th:
            continue
        if th == h or (th % 8 == 0 and (th * w) % 128 == 0):
            ths.append(th)
    return ths                                             # descending


def _pick_band_rows(h, w, cin, cout, max_band_rows=None):
    """Largest valid band height whose working set fits the per-chip budget."""
    cands = _valid_band_rows(h, w)
    if max_band_rows is not None:
        capped = [th for th in cands if th <= max_band_rows]
        cands = capped or cands[-1:]
    for th in cands:
        per_step = 4 * (
            2 * cin * th * w               # input band blocks (double-buffered)
            + 2 * cin * 2 * w              # halo blocks
            + 2 * cout * th * w            # output band blocks (double-buffered)
            + (2 * cin + cout) * th * w    # rows / patch / acc temporaries
            + 9 * cout * cin)              # weights
        if per_step <= _VMEM_BUDGET:
            return th
    return cands[-1]


def _pick_lane_tile(hw, cout):
    """Lane-tile for the pass-3 epilogue (multiple of 128, VMEM-sized)."""
    for tl in range(hw, 0, -1):
        if hw % tl:
            continue
        if tl != hw and tl % 128 != 0:
            continue
        if 16 * cout * tl <= _VMEM_BUDGET:   # in + out, double-buffered, f32
            return tl
    return hw


# --------------------------------------------------------------------------
# DoubleConv forward.
# --------------------------------------------------------------------------
@functools.partial(jax.jit, static_argnames=("th1", "th2", "tl", "use_bf16"))
def _double_conv_impl(x, w1_hwio, w2_hwio, g1, b1, g2, b2, *,
                      th1, th2, tl, use_bf16):
    N, Cin, H, W = x.shape
    Cout = w1_hwio.shape[-1]
    count = N * H * W

    x = x.astype(jnp.float32)
    # HWIO -> tap-major transposed (9, Cout, Cin): w9[dy*3+dx, co, ci].
    w1 = jnp.transpose(w1_hwio.astype(jnp.float32), (0, 1, 3, 2)
                       ).reshape(9, Cout, Cin)
    w2 = jnp.transpose(w2_hwio.astype(jnp.float32), (0, 1, 3, 2)
                       ).reshape(9, Cout, Cout)

    ones_c = jnp.ones((Cin, 1), jnp.float32)
    zeros_c = jnp.zeros((Cin, 1), jnp.float32)

    # ---- pass 1: conv1 (NCHW in), fused partial BN1 statistics ----
    halo1 = _gather_halo_rows(x, th1)
    y1, stats1 = _conv3x3_pass(x.reshape(N, Cin, H * W), halo1, w1,
                               ones_c, zeros_c,
                               th=th1, apply_prologue=False, use_bf16=use_bf16)
    scale1, shift1 = _fold_bn(stats1, g1.astype(jnp.float32),
                              b1.astype(jnp.float32), count)

    # ---- pass 2: BN1+ReLU folded into the prologue, conv2, BN2 stats ----
    halo2 = _gather_halo_rows(y1.reshape(N, Cout, H, W), th2)
    y2, stats2 = _conv3x3_pass(y1, halo2, w2, scale1, shift1,
                               th=th2, apply_prologue=True, use_bf16=use_bf16)
    scale2, shift2 = _fold_bn(stats2, g2.astype(jnp.float32),
                              b2.astype(jnp.float32), count)

    # ---- pass 3: BN2 affine + ReLU (lane-dense channel-major blocks) ----
    out = _bn_relu_pass(y2, scale2, shift2, tl=tl)
    return out.reshape(N, Cout, H, W)      # free: already NCHW element order


def double_conv(x_nchw, w1_hwio, w2_hwio, g1, b1, g2, b2, *,
                max_band_rows=None, use_bf16=False):
    """PyTorch-facing wrapper: NCHW in, NCHW out (train-mode BN forward).

    use_bf16=True casts the MXU operands to bf16 (f32 accumulation) for ~3x
    MXU throughput on v6e/v7x; off by default so the f32 reference tolerance
    (2e-3) is guaranteed.
    """
    N, Cin, H, W = x_nchw.shape
    Cout = w1_hwio.shape[-1]
    th1 = _pick_band_rows(H, W, Cin, Cout, max_band_rows)
    th2 = _pick_band_rows(H, W, Cout, Cout, max_band_rows)
    tl = _pick_lane_tile(H * W, Cout)
    return _double_conv_impl(x_nchw, w1_hwio, w2_hwio, g1, b1, g2, b2,
                             th1=th1, th2=th2, tl=tl, use_bf16=use_bf16)


# --------------------------------------------------------------------------
# Pure-JAX (XLA) reference mirroring the PyTorch module (train-mode BN).
# --------------------------------------------------------------------------
def _reference_double_conv(x_nchw, w1_hwio, w2_hwio, g1, b1, g2, b2):
    x = jnp.transpose(x_nchw, (0, 2, 3, 1)).astype(jnp.float32)

    def conv(x, w):
        return lax.conv_general_dilated(
            x, w.astype(jnp.float32), window_strides=(1, 1), padding="SAME",
            dimension_numbers=("NHWC", "HWIO", "NHWC"),
            precision=lax.Precision.HIGHEST)

    def bn_relu(y, g, b):
        m = jnp.mean(y, axis=(0, 1, 2), keepdims=True)
        v = jnp.mean((y - m) ** 2, axis=(0, 1, 2), keepdims=True)
        y = (y - m) * lax.rsqrt(v + EPS) * g.reshape(1, 1, 1, -1) \
            + b.reshape(1, 1, 1, -1)
        return jnp.maximum(y, 0.0)

    y = bn_relu(conv(x, w1_hwio), g1, b1)
    y = bn_relu(conv(y, w2_hwio), g2, b2)
    return jnp.transpose(y, (0, 3, 1, 2))


if __name__ == "__main__":
    # Small shapes consistent with DoubleConv(in_channels=4, out_channels=8).
    N, Cin, Cout, H, W = 2, 4, 8, 16, 16

    key = jax.random.PRNGKey(0)
    kx, kw1, kw2, kg1, kb1, kg2, kb2 = jax.random.split(key, 7)

    x = jax.random.normal(kx, (N, Cin, H, W), dtype=jnp.float32)
    # Conv2d weights (no bias), stored directly in HWIO layout.
    w1 = jax.random.normal(kw1, (3, 3, Cin, Cout), dtype=jnp.float32) * 0.1
    w2 = jax.random.normal(kw2, (3, 3, Cout, Cout), dtype=jnp.float32) * 0.1
    # BatchNorm affine params (gamma, beta), deterministic non-trivial init.
    g1 = 1.0 + 0.1 * jax.random.normal(kg1, (Cout,), dtype=jnp.float32)
    b1 = 0.1 * jax.random.normal(kb1, (Cout,), dtype=jnp.float32)
    g2 = 1.0 + 0.1 * jax.random.normal(kg2, (Cout,), dtype=jnp.float32)
    b2 = 0.1 * jax.random.normal(kb2, (Cout,), dtype=jnp.float32)

    ref = _reference_double_conv(x, w1, w2, g1, b1, g2, b2)

    # Multi-band run: H=16 split into two 8-row bands, exercising the halo path.
    out_banded = jax.block_until_ready(
        double_conv(x, w1, w2, g1, b1, g2, b2, max_band_rows=8))
    assert out_banded.shape == (N, Cout, H, W)
    assert jnp.allclose(out_banded, ref, rtol=2e-3, atol=2e-3), \
        "banded kernel mismatch vs reference"

    # Default run: band height chosen from the chip's VMEM capacity.
    out = jax.block_until_ready(double_conv(x, w1, w2, g1, b1, g2, b2))
    assert out.shape == (N, Cout, H, W)
    assert jnp.allclose(out, ref, rtol=2e-3, atol=2e-3), \
        "kernel mismatch vs reference"

    print("KERNEL_OK")
</pallas_src>

<mosaic_0001>
module attributes {stable_mosaic.version = 11 : i64} {
  func.func @_conv3x3_band_kernel(%arg0: i32, %arg1: i32, %arg2: memref<1x4x128xf32, #tpu.memory_space<vmem>>, %arg3: memref<1x1x4x32xf32, #tpu.memory_space<vmem>>, %arg4: memref<9x8x4xf32, #tpu.memory_space<vmem>>, %arg5: memref<4x1xf32, #tpu.memory_space<vmem>>, %arg6: memref<4x1xf32, #tpu.memory_space<vmem>>, %arg7: memref<1x8x128xf32, #tpu.memory_space<vmem>>, %arg8: memref<1x1x8x2xf32, #tpu.memory_space<vmem>>) attributes {dimension_semantics = [#tpu.dimension_semantics<parallel>, #tpu.dimension_semantics<parallel>], iteration_bounds = array<i64: 2, 2>, scalar_prefetch = 0 : i64, scratch_operands = 0 : i64, tpu.core_type = #tpu.core_type<tc>, window_params = [{transform_indices = @transform_0, window_bounds = array<i64: 1, 4, 128>}, {transform_indices = @transform_1, window_bounds = array<i64: 1, 1, 4, 32>}, {pipeline_mode = #tpu.pipeline_mode<synchronous>, transform_indices = @transform_2, window_bounds = array<i64: 9, 8, 4>}, {pipeline_mode = #tpu.pipeline_mode<synchronous>, transform_indices = @transform_3, window_bounds = array<i64: 4, 1>}, {pipeline_mode = #tpu.pipeline_mode<synchronous>, transform_indices = @transform_4, window_bounds = array<i64: 4, 1>}, {transform_indices = @transform_5, window_bounds = array<i64: 1, 8, 128>}, {transform_indices = @transform_6, window_bounds = array<i64: 1, 1, 8, 2>}]} {
    %c0 = arith.constant 0 : index
    %c0_0 = arith.constant 0 : index
    %c0_1 = arith.constant 0 : index
    %0 = vector.load %arg2[%c0, %c0_0, %c0_1] : memref<1x4x128xf32, #tpu.memory_space<vmem>>, vector<1x4x128xf32>
    %1 = vector.shape_cast %0 : vector<1x4x128xf32> to vector<4x128xf32>
    %c0_2 = arith.constant 0 : index
    %c0_3 = arith.constant 0 : index
    %c0_4 = arith.constant 0 : index
    %c0_5 = arith.constant 0 : index
    %2 = vector.load %arg3[%c0_2, %c0_3, %c0_4, %c0_5] : memref<1x1x4x32xf32, #tpu.memory_space<vmem>>, vector<1x1x4x32xf32>
    %3 = vector.shape_cast %2 : vector<1x1x4x32xf32> to vector<4x32xf32>
    %4 = vector.extract_strided_slice %3 {offsets = [0, 0], sizes = [4, 16], strides = [1, 1]} : vector<4x32xf32> to vector<4x16xf32>
    %5 = vector.extract_strided_slice %3 {offsets = [0, 16], sizes = [4, 16], strides = [1, 1]} : vector<4x32xf32> to vector<4x16xf32>
    %c0_i32 = arith.constant 0 : i32
    %6 = arith.cmpi sgt, %arg1, %c0_i32 : i32
    %7 = arith.extui %6 : i1 to i32
    %8 = arith.sitofp %7 : i32 to f32
    %c1_i32 = arith.constant 1 : i32
    %9 = arith.cmpi slt, %arg1, %c1_i32 : i32
    %10 = arith.extui %9 : i1 to i32
    %11 = arith.sitofp %10 : i32 to f32
    %cst = arith.constant 0.000000e+00 : f32
    %12 = vector.broadcast %cst : f32 to vector<4x1xf32>
    %13 = vector.broadcast %8 : f32 to vector<4x16xf32>
    %14 = arith.mulf %4, %13 : vector<4x16xf32>
    %15 = vector.broadcast %11 : f32 to vector<4x16xf32>
    %16 = arith.mulf %5, %15 : vector<4x16xf32>
    %17 = tpu.concatenate %12, %14, %1, %16, %12 in 1 : vector<4x1xf32>, vector<4x16xf32>, vector<4x128xf32>, vector<4x16xf32>, vector<4x1xf32> -> vector<4x162xf32>
    %18 = tpu.iota {dimensions = array<i32: 1>} : vector<1x128xi32>
    %c16_i32 = arith.constant 16 : i32
    %c0_i32_6 = arith.constant 0 : i32
    %19 = arith.cmpi eq, %c16_i32, %c0_i32_6 : i32
    %c1_i32_7 = arith.constant 1 : i32
    %20 = arith.select %19, %c1_i32_7, %c16_i32 : i32
    %21 = vector.broadcast %20 : i32 to vector<1x128xi32>
    %22 = arith.remsi %18, %21 : vector<1x128xi32>
    %c0_i32_8 = arith.constant 0 : i32
    %23 = vector.broadcast %c0_i32_8 : i32 to vector<1x128xi32>
    %24 = arith.cmpi ne, %22, %23 : vector<1x128xi32>
    %c0_i32_9 = arith.constant 0 : i32
    %25 = vector.broadcast %c0_i32_9 : i32 to vector<1x128xi32>
    %26 = arith.cmpi slt, %22, %25 : vector<1x128xi32>
    %c0_i32_10 = arith.constant 0 : i32
    %27 = arith.cmpi slt, %20, %c0_i32_10 : i32
    %28 = vector.broadcast %27 : i1 to vector<1x128xi1>
    %29 = vector.broadcast %28 : vector<1x128xi1> to vector<1x128xi1>
    %30 = arith.xori %26, %29 : vector<1x128xi1>
    %31 = arith.andi %30, %24 : vector<1x128xi1>
    %32 = vector.broadcast %20 : i32 to vector<1x128xi32>
    %33 = arith.addi %22, %32 : vector<1x128xi32>
    %34 = arith.select %31, %33, %22 : vector<1x128xi1>, vector<1x128xi32>
    %c0_i32_11 = arith.constant 0 : i32
    %35 = vector.broadcast %c0_i32_11 : i32 to vector<1x128xi32>
    %36 = arith.cmpi ne, %34, %35 : vector<1x128xi32>
    %37 = arith.extui %36 : vector<1x128xi1> to vector<1x128xi32>
    %38 = arith.sitofp %37 : vector<1x128xi32> to vector<1x128xf32>
    %c15_i32 = arith.constant 15 : i32
    %39 = vector.broadcast %c15_i32 : i32 to vector<1x128xi32>
    %40 = arith.cmpi ne, %34, %39 : vector<1x128xi32>
    %41 = arith.extui %40 : vector<1x128xi1> to vector<1x128xi32>
    %42 = arith.sitofp %41 : vector<1x128xi32> to vector<1x128xf32>
    %cst_12 = arith.constant 0.000000e+00 : f32
    %43 = vector.broadcast %cst_12 : f32 to vector<8x128xf32>
    %44 = vector.extract_strided_slice %17 {offsets = [0, 0], sizes = [4, 128], strides = [1, 1]} : vector<4x162xf32> to vector<4x128xf32>
    %45 = vector.broadcast %38 : vector<1x128xf32> to vector<4x128xf32>
    %46 = arith.mulf %44, %45 : vector<4x128xf32>
    %c0_13 = arith.constant 0 : index
    %c0_14 = arith.constant 0 : index
    %c0_15 = arith.constant 0 : index
    %47 = vector.load %arg4[%c0_13, %c0_14, %c0_15] : memref<9x8x4xf32, #tpu.memory_space<vmem>>, vector<1x8x4xf32>
    %48 = vector.shape_cast %47 : vector<1x8x4xf32> to vector<8x4xf32>
    %cst_16 = arith.constant dense<0.000000e+00> : vector<8x128xf32>
    %49 = tpu.matmul %48, %46, %cst_16 {dimension_numbers = #tpu.dot_dimension_numbers<[1], [0], [0], [1], [0, 0, 1, 1], [], []>} : vector<8x4xf32>, vector<4x128xf32>, vector<8x128xf32> -> vector<8x128xf32>
    %50 = arith.addf %43, %49 : vector<8x128xf32>
    %51 = vector.extract_strided_slice %17 {offsets = [0, 1], sizes = [4, 128], strides = [1, 1]} : vector<4x162xf32> to vector<4x128xf32>
    %c1 = arith.constant 1 : index
    %c0_17 = arith.constant 0 : index
    %c0_18 = arith.constant 0 : index
    %52 = vector.load %arg4[%c1, %c0_17, %c0_18] : memref<9x8x4xf32, #tpu.memory_space<vmem>>, vector<1x8x4xf32>
    %53 = vector.shape_cast %52 : vector<1x8x4xf32> to vector<8x4xf32>
    %cst_19 = arith.constant dense<0.000000e+00> : vector<8x128xf32>
    %54 = tpu.matmul %53, %51, %cst_19 {dimension_numbers = #tpu.dot_dimension_numbers<[1], [0], [0], [1], [0, 0, 1, 1], [], []>} : vector<8x4xf32>, vector<4x128xf32>, vector<8x128xf32> -> vector<8x128xf32>
    %55 = arith.addf %50, %54 : vector<8x128xf32>
    %56 = vector.extract_strided_slice %17 {offsets = [0, 2], sizes = [4, 128], strides = [1, 1]} : vector<4x162xf32> to vector<4x128xf32>
    %57 = vector.broadcast %42 : vector<1x128xf32> to vector<4x128xf32>
    %58 = arith.mulf %56, %57 : vector<4x128xf32>
    %c2 = arith.constant 2 : index
    %c0_20 = arith.constant 0 : index
    %c0_21 = arith.constant 0 : index
    %59 = vector.load %arg4[%c2, %c0_20, %c0_21] : memref<9x8x4xf32, #tpu.memory_space<vmem>>, vector<1x8x4xf32>
    %60 = vector.shape_cast %59 : vector<1x8x4xf32> to vector<8x4xf32>
    %cst_22 = arith.constant dense<0.000000e+00> : vector<8x128xf32>
    %61 = tpu.matmul %60, %58, %cst_22 {dimension_numbers = #tpu.dot_dimension_numbers<[1], [0], [0], [1], [0, 0, 1, 1], [], []>} : vector<8x4xf32>, vector<4x128xf32>, vector<8x128xf32> -> vector<8x128xf32>
    %62 = arith.addf %55, %61 : vector<8x128xf32>
    %63 = vector.extract_strided_slice %17 {offsets = [0, 16], sizes = [4, 128], strides = [1, 1]} : vector<4x162xf32> to vector<4x128xf32>
    %64 = vector.broadcast %38 : vector<1x128xf32> to vector<4x128xf32>
    %65 = arith.mulf %63, %64 : vector<4x128xf32>
    %c3 = arith.constant 3 : index
    %c0_23 = arith.constant 0 : index
    %c0_24 = arith.constant 0 : index
    %66 = vector.load %arg4[%c3, %c0_23, %c0_24] : memref<9x8x4xf32, #tpu.memory_space<vmem>>, vector<1x8x4xf32>
    %67 = vector.shape_cast %66 : vector<1x8x4xf32> to vector<8x4xf32>
    %cst_25 = arith.constant dense<0.000000e+00> : vector<8x128xf32>
    %68 = tpu.matmul %67, %65, %cst_25 {dimension_numbers = #tpu.dot_dimension_numbers<[1], [0], [0], [1], [0, 0, 1, 1], [], []>} : vector<8x4xf32>, vector<4x128xf32>, vector<8x128xf32> -> vector<8x128xf32>
    %69 = arith.addf %62, %68 : vector<8x128xf32>
    %70 = vector.extract_strided_slice %17 {offsets = [0, 17], sizes = [4, 128], strides = [1, 1]} : vector<4x162xf32> to vector<4x128xf32>
    %c4 = arith.constant 4 : index
    %c0_26 = arith.constant 0 : index
    %c0_27 = arith.constant 0 : index
    %71 = vector.load %arg4[%c4, %c0_26, %c0_27] : memref<9x8x4xf32, #tpu.memory_space<vmem>>, vector<1x8x4xf32>
    %72 = vector.shape_cast %71 : vector<1x8x4xf32> to vector<8x4xf32>
    %cst_28 = arith.constant dense<0.000000e+00> : vector<8x128xf32>
    %73 = tpu.matmul %72, %70, %cst_28 {dimension_numbers = #tpu.dot_dimension_numbers<[1], [0], [0], [1], [0, 0, 1, 1], [], []>} : vector<8x4xf32>, vector<4x128xf32>, vector<8x128xf32> -> vector<8x128xf32>
    %74 = arith.addf %69, %73 : vector<8x128xf32>
    %75 = vector.extract_strided_slice %17 {offsets = [0, 18], sizes = [4, 128], strides = [1, 1]} : vector<4x162xf32> to vector<4x128xf32>
    %76 = vector.broadcast %42 : vector<1x128xf32> to vector<4x128xf32>
    %77 = arith.mulf %75, %76 : vector<4x128xf32>
    %c5 = arith.constant 5 : index
    %c0_29 = arith.constant 0 : index
    %c0_30 = arith.constant 0 : index
    %78 = vector.load %arg4[%c5, %c0_29, %c0_30] : memref<9x8x4xf32, #tpu.memory_space<vmem>>, vector<1x8x4xf32>
    %79 = vector.shape_cast %78 : vector<1x8x4xf32> to vector<8x4xf32>
    %cst_31 = arith.constant dense<0.000000e+00> : vector<8x128xf32>
    %80 = tpu.matmul %79, %77, %cst_31 {dimension_numbers = #tpu.dot_dimension_numbers<[1], [0], [0], [1], [0, 0, 1, 1], [], []>} : vector<8x4xf32>, vector<4x128xf32>, vector<8x128xf32> -> vector<8x128xf32>
    %81 = arith.addf %74, %80 : vector<8x128xf32>
    %82 = vector.extract_strided_slice %17 {offsets = [0, 32], sizes = [4, 128], strides = [1, 1]} : vector<4x162xf32> to vector<4x128xf32>
    %83 = vector.broadcast %38 : vector<1x128xf32> to vector<4x128xf32>
    %84 = arith.mulf %82, %83 : vector<4x128xf32>
    %c6 = arith.constant 6 : index
    %c0_32 = arith.constant 0 : index
    %c0_33 = arith.constant 0 : index
    %85 = vector.load %arg4[%c6, %c0_32, %c0_33] : memref<9x8x4xf32, #tpu.memory_space<vmem>>, vector<1x8x4xf32>
    %86 = vector.shape_cast %85 : vector<1x8x4xf32> to vector<8x4xf32>
    %cst_34 = arith.constant dense<0.000000e+00> : vector<8x128xf32>
    %87 = tpu.matmul %86, %84, %cst_34 {dimension_numbers = #tpu.dot_dimension_numbers<[1], [0], [0], [1], [0, 0, 1, 1], [], []>} : vector<8x4xf32>, vector<4x128xf32>, vector<8x128xf32> -> vector<8x128xf32>
    %88 = arith.addf %81, %87 : vector<8x128xf32>
    %89 = vector.extract_strided_slice %17 {offsets = [0, 33], sizes = [4, 128], strides = [1, 1]} : vector<4x162xf32> to vector<4x128xf32>
    %c7 = arith.constant 7 : index
    %c0_35 = arith.constant 0 : index
    %c0_36 = arith.constant 0 : index
    %90 = vector.load %arg4[%c7, %c0_35, %c0_36] : memref<9x8x4xf32, #tpu.memory_space<vmem>>, vector<1x8x4xf32>
    %91 = vector.shape_cast %90 : vector<1x8x4xf32> to vector<8x4xf32>
    %cst_37 = arith.constant dense<0.000000e+00> : vector<8x128xf32>
    %92 = tpu.matmul %91, %89, %cst_37 {dimension_numbers = #tpu.dot_dimension_numbers<[1], [0], [0], [1], [0, 0, 1, 1], [], []>} : vector<8x4xf32>, vector<4x128xf32>, vector<8x128xf32> -> vector<8x128xf32>
    %93 = arith.addf %88, %92 : vector<8x128xf32>
    %94 = vector.extract_strided_slice %17 {offsets = [0, 34], sizes = [4, 128], strides = [1, 1]} : vector<4x162xf32> to vector<4x128xf32>
    %95 = vector.broadcast %42 : vector<1x128xf32> to vector<4x128xf32>
    %96 = arith.mulf %94, %95 : vector<4x128xf32>
    %c8 = arith.constant 8 : index
    %c0_38 = arith.constant 0 : index
    %c0_39 = arith.constant 0 : index
    %97 = vector.load %arg4[%c8, %c0_38, %c0_39] : memref<9x8x4xf32, #tpu.memory_space<vmem>>, vector<1x8x4xf32>
    %98 = vector.shape_cast %97 : vector<1x8x4xf32> to vector<8x4xf32>
    %cst_40 = arith.constant dense<0.000000e+00> : vector<8x128xf32>
    %99 = tpu.matmul %98, %96, %cst_40 {dimension_numbers = #tpu.dot_dimension_numbers<[1], [0], [0], [1], [0, 0, 1, 1], [], []>} : vector<8x4xf32>, vector<4x128xf32>, vector<8x128xf32> -> vector<8x128xf32>
    %100 = arith.addf %93, %99 : vector<8x128xf32>
    %c0_41 = arith.constant 0 : index
    %c0_42 = arith.constant 0 : index
    %c0_43 = arith.constant 0 : index
    %101 = vector.load %arg7[%c0_41, %c0_42, %c0_43] : memref<1x8x128xf32, #tpu.memory_space<vmem>>, vector<1x8x128xf32>
    %102 = vector.shape_cast %101 : vector<1x8x128xf32> to vector<8x128xf32>
    %103 = vector.shape_cast %100 : vector<8x128xf32> to vector<1x8x128xf32>
    tpu.vector_store %arg7[%c0_41, %c0_42, %c0_43], %103 {strides = array<i32>} : memref<1x8x128xf32, #tpu.memory_space<vmem>>, vector<1x8x128xf32>,
    %cst_44 = arith.constant dense<0.000000e+00> : vector<8xf32>
    %104 = vector.multi_reduction <add>, %100, %cst_44 [1] : vector<8x128xf32> to vector<8xf32>
    %105 = vector.shape_cast %104 : vector<8xf32> to vector<8x1xf32>
    %106 = arith.mulf %100, %100 : vector<8x128xf32>
    %cst_45 = arith.constant dense<0.000000e+00> : vector<8xf32>
    %107 = vector.multi_reduction <add>, %106, %cst_45 [1] : vector<8x128xf32> to vector<8xf32>
    %108 = vector.shape_cast %107 : vector<8xf32> to vector<8x1xf32>
    %109 = tpu.concatenate %105, %108 in 1 : vector<8x1xf32>, vector<8x1xf32> -> vector<8x2xf32>
    %c0_46 = arith.constant 0 : index
    %c0_47 = arith.constant 0 : index
    %c0_48 = arith.constant 0 : index
    %c0_49 = arith.constant 0 : index
    %110 = vector.load %arg8[%c0_46, %c0_47, %c0_48, %c0_49] : memref<1x1x8x2xf32, #tpu.memory_space<vmem>>, vector<1x1x8x2xf32>
    %111 = vector.shape_cast %110 : vector<1x1x8x2xf32> to vector<8x2xf32>
    %112 = vector.shape_cast %109 : vector<8x2xf32> to vector<1x1x8x2xf32>
    tpu.vector_store %arg8[%c0_46, %c0_47, %c0_48, %c0_49], %112 {strides = array<i32>} : memref<1x1x8x2xf32, #tpu.memory_space<vmem>>, vector<1x1x8x2xf32>,
    return
  }
  func.func @transform_0(%arg0: i32, %arg1: i32) -> (i32, i32, i32) {
    %c0_i32 = arith.constant 0 : i32
    %c0_i32_0 = arith.constant 0 : i32
    return %arg0, %c0_i32, %arg1 : i32, i32, i32
  }
  func.func @transform_1(%arg0: i32, %arg1: i32) -> (i32, i32, i32, i32) {
    %c0_i32 = arith.constant 0 : i32
    %c0_i32_0 = arith.constant 0 : i32
    %c0_i32_1 = arith.constant 0 : i32
    return %arg0, %arg1, %c0_i32, %c0_i32_0 : i32, i32, i32, i32
  }
  func.func @transform_2(%arg0: i32, %arg1: i32) -> (i32, i32, i32) {
    %c0_i32 = arith.constant 0 : i32
    %c0_i32_0 = arith.constant 0 : i32
    %c0_i32_1 = arith.constant 0 : i32
    %c0_i32_2 = arith.constant 0 : i32
    return %c0_i32, %c0_i32_0, %c0_i32_1 : i32, i32, i32
  }
  func.func @transform_3(%arg0: i32, %arg1: i32) -> (i32, i32) {
    %c0_i32 = arith.constant 0 : i32
    %c0_i32_0 = arith.constant 0 : i32
    %c0_i32_1 = arith.constant 0 : i32
    return %c0_i32, %c0_i32_0 : i32, i32
  }
  func.func @transform_4(%arg0: i32, %arg1: i32) -> (i32, i32) {
    %c0_i32 = arith.constant 0 : i32
    %c0_i32_0 = arith.constant 0 : i32
    %c0_i32_1 = arith.constant 0 : i32
    return %c0_i32, %c0_i32_0 : i32, i32
  }
  func.func @transform_5(%arg0: i32, %arg1: i32) -> (i32, i32, i32) {
    %c0_i32 = arith.constant 0 : i32
    %c0_i32_0 = arith.constant 0 : i32
    return %arg0, %c0_i32, %arg1 : i32, i32, i32
  }
  func.func @transform_6(%arg0: i32, %arg1: i32) -> (i32, i32, i32, i32) {
    %c0_i32 = arith.constant 0 : i32
    %c0_i32_0 = arith.constant 0 : i32
    %c0_i32_1 = arith.constant 0 : i32
    return %arg0, %arg1, %c0_i32, %c0_i32_0 : i32, i32, i32, i32
  }
}

module attributes {stable_mosaic.version = 11 : i64} {
  func.func @_bn_relu_kernel(%arg0: i32, %arg1: i32, %arg2: memref<1x8x256xf32, #tpu.memory_space<vmem>>, %arg3: memref<8x1xf32, #tpu.memory_space<vmem>>, %arg4: memref<8x1xf32, #tpu.memory_space<vmem>>, %arg5: memref<1x8x256xf32, #tpu.memory_space<vmem>>) attributes {dimension_semantics = [#tpu.dimension_semantics<parallel>, #tpu.dimension_semantics<parallel>], iteration_bounds = array<i64: 2, 1>, scalar_prefetch = 0 : i64, scratch_operands = 0 : i64, tpu.core_type = #tpu.core_type<tc>, window_params = [{transform_indices = @transform_0, window_bounds = array<i64: 1, 8, 256>}, {pipeline_mode = #tpu.pipeline_mode<synchronous>, transform_indices = @transform_1, window_bounds = array<i64: 8, 1>}, {pipeline_mode = #tpu.pipeline_mode<synchronous>, transform_indices = @transform_2, window_bounds = array<i64: 8, 1>}, {transform_indices = @transform_3, window_bounds = array<i64: 1, 8, 256>}]} {
    %c0 = arith.constant 0 : index
    %c0_0 = arith.constant 0 : index
    %c0_1 = arith.constant 0 : index
    %0 = vector.load %arg2[%c0, %c0_0, %c0_1] : memref<1x8x256xf32, #tpu.memory_space<vmem>>, vector<1x8x256xf32>
    %1 = vector.shape_cast %0 : vector<1x8x256xf32> to vector<8x256xf32>
    %c0_2 = arith.constant 0 : index
    %c0_3 = arith.constant 0 : index
    %2 = vector.load %arg3[%c0_2, %c0_3] : memref<8x1xf32, #tpu.memory_space<vmem>>, vector<8x1xf32>
    %3 = vector.broadcast %2 : vector<8x1xf32> to vector<8x256xf32>
    %4 = arith.mulf %1, %3 : vector<8x256xf32>
    %c0_4 = arith.constant 0 : index
    %c0_5 = arith.constant 0 : index
    %5 = vector.load %arg4[%c0_4, %c0_5] : memref<8x1xf32, #tpu.memory_space<vmem>>, vector<8x1xf32>
    %6 = vector.broadcast %5 : vector<8x1xf32> to vector<8x256xf32>
    %7 = arith.addf %4, %6 : vector<8x256xf32>
    %cst = arith.constant 0.000000e+00 : f32
    %8 = vector.broadcast %cst : f32 to vector<8x256xf32>
    %9 = arith.maximumf %7, %8 : vector<8x256xf32>
    %c0_6 = arith.constant 0 : index
    %c0_7 = arith.constant 0 : index
    %c0_8 = arith.constant 0 : index
    %10 = vector.load %arg5[%c0_6, %c0_7, %c0_8] : memref<1x8x256xf32, #tpu.memory_space<vmem>>, vector<1x8x256xf32>
    %11 = vector.shape_cast %10 : vector<1x8x256xf32> to vector<8x256xf32>
    %12 = vector.shape_cast %9 : vector<8x256xf32> to vector<1x8x256xf32>
    tpu.vector_store %arg5[%c0_6, %c0_7, %c0_8], %12 {strides = array<i32>} : memref<1x8x256xf32, #tpu.memory_space<vmem>>, vector<1x8x256xf32>,
    return
  }
  func.func @transform_0(%arg0: i32, %arg1: i32) -> (i32, i32, i32) {
    %c0_i32 = arith.constant 0 : i32
    %c0_i32_0 = arith.constant 0 : i32
    return %arg0, %c0_i32, %arg1 : i32, i32, i32
  }
  func.func @transform_1(%arg0: i32, %arg1: i32) -> (i32, i32) {
    %c0_i32 = arith.constant 0 : i32
    %c0_i32_0 = arith.constant 0 : i32
    %c0_i32_1 = arith.constant 0 : i32
    return %c0_i32, %c0_i32_0 : i32, i32
  }
  func.func @transform_2(%arg0: i32, %arg1: i32) -> (i32, i32) {
    %c0_i32 = arith.constant 0 : i32
    %c0_i32_0 = arith.constant 0 : i32
    %c0_i32_1 = arith.constant 0 : i32
    return %c0_i32, %c0_i32_0 : i32, i32
  }
  func.func @transform_3(%arg0: i32, %arg1: i32) -> (i32, i32, i32) {
    %c0_i32 = arith.constant 0 : i32
    %c0_i32_0 = arith.constant 0 : i32
    return %arg0, %c0_i32, %arg1 : i32, i32, i32
  }
}

module attributes {stable_mosaic.version = 11 : i64} {
  func.func @_conv3x3_band_kernel(%arg0: i32, %arg1: i32, %arg2: memref<1x8x128xf32, #tpu.memory_space<vmem>>, %arg3: memref<1x1x8x32xf32, #tpu.memory_space<vmem>>, %arg4: memref<9x8x8xf32, #tpu.memory_space<vmem>>, %arg5: memref<8x1xf32, #tpu.memory_space<vmem>>, %arg6: memref<8x1xf32, #tpu.memory_space<vmem>>, %arg7: memref<1x8x128xf32, #tpu.memory_space<vmem>>, %arg8: memref<1x1x8x2xf32, #tpu.memory_space<vmem>>) attributes {dimension_semantics = [#tpu.dimension_semantics<parallel>, #tpu.dimension_semantics<parallel>], iteration_bounds = array<i64: 2, 2>, scalar_prefetch = 0 : i64, scratch_operands = 0 : i64, tpu.core_type = #tpu.core_type<tc>, window_params = [{transform_indices = @transform_0, window_bounds = array<i64: 1, 8, 128>}, {transform_indices = @transform_1, window_bounds = array<i64: 1, 1, 8, 32>}, {pipeline_mode = #tpu.pipeline_mode<synchronous>, transform_indices = @transform_2, window_bounds = array<i64: 9, 8, 8>}, {pipeline_mode = #tpu.pipeline_mode<synchronous>, transform_indices = @transform_3, window_bounds = array<i64: 8, 1>}, {pipeline_mode = #tpu.pipeline_mode<synchronous>, transform_indices = @transform_4, window_bounds = array<i64: 8, 1>}, {transform_indices = @transform_5, window_bounds = array<i64: 1, 8, 128>}, {transform_indices = @transform_6, window_bounds = array<i64: 1, 1, 8, 2>}]} {
    %c0 = arith.constant 0 : index
    %c0_0 = arith.constant 0 : index
    %c0_1 = arith.constant 0 : index
    %0 = vector.load %arg2[%c0, %c0_0, %c0_1] : memref<1x8x128xf32, #tpu.memory_space<vmem>>, vector<1x8x128xf32>
    %1 = vector.shape_cast %0 : vector<1x8x128xf32> to vector<8x128xf32>
    %c0_2 = arith.constant 0 : index
    %c0_3 = arith.constant 0 : index
    %c0_4 = arith.constant 0 : index
    %c0_5 = arith.constant 0 : index
    %2 = vector.load %arg3[%c0_2, %c0_3, %c0_4, %c0_5] : memref<1x1x8x32xf32, #tpu.memory_space<vmem>>, vector<1x1x8x32xf32>
    %3 = vector.shape_cast %2 : vector<1x1x8x32xf32> to vector<8x32xf32>
    %4 = vector.extract_strided_slice %3 {offsets = [0, 0], sizes = [8, 16], strides = [1, 1]} : vector<8x32xf32> to vector<8x16xf32>
    %5 = vector.extract_strided_slice %3 {offsets = [0, 16], sizes = [8, 16], strides = [1, 1]} : vector<8x32xf32> to vector<8x16xf32>
    %c0_6 = arith.constant 0 : index
    %c0_7 = arith.constant 0 : index
    %6 = vector.load %arg5[%c0_6, %c0_7] : memref<8x1xf32, #tpu.memory_space<vmem>>, vector<8x1xf32>
    %c0_8 = arith.constant 0 : index
    %c0_9 = arith.constant 0 : index
    %7 = vector.load %arg6[%c0_8, %c0_9] : memref<8x1xf32, #tpu.memory_space<vmem>>, vector<8x1xf32>
    %8 = vector.broadcast %6 : vector<8x1xf32> to vector<8x128xf32>
    %9 = arith.mulf %1, %8 : vector<8x128xf32>
    %10 = vector.broadcast %7 : vector<8x1xf32> to vector<8x128xf32>
    %11 = arith.addf %9, %10 : vector<8x128xf32>
    %cst = arith.constant 0.000000e+00 : f32
    %12 = vector.broadcast %cst : f32 to vector<8x128xf32>
    %13 = arith.maximumf %11, %12 : vector<8x128xf32>
    %14 = vector.broadcast %6 : vector<8x1xf32> to vector<8x16xf32>
    %15 = arith.mulf %4, %14 : vector<8x16xf32>
    %16 = vector.broadcast %7 : vector<8x1xf32> to vector<8x16xf32>
    %17 = arith.addf %15, %16 : vector<8x16xf32>
    %cst_10 = arith.constant 0.000000e+00 : f32
    %18 = vector.broadcast %cst_10 : f32 to vector<8x16xf32>
    %19 = arith.maximumf %17, %18 : vector<8x16xf32>
    %20 = vector.broadcast %6 : vector<8x1xf32> to vector<8x16xf32>
    %21 = arith.mulf %5, %20 : vector<8x16xf32>
    %22 = vector.broadcast %7 : vector<8x1xf32> to vector<8x16xf32>
    %23 = arith.addf %21, %22 : vector<8x16xf32>
    %cst_11 = arith.constant 0.000000e+00 : f32
    %24 = vector.broadcast %cst_11 : f32 to vector<8x16xf32>
    %25 = arith.maximumf %23, %24 : vector<8x16xf32>
    %c0_i32 = arith.constant 0 : i32
    %26 = arith.cmpi sgt, %arg1, %c0_i32 : i32
    %27 = arith.extui %26 : i1 to i32
    %28 = arith.sitofp %27 : i32 to f32
    %c1_i32 = arith.constant 1 : i32
    %29 = arith.cmpi slt, %arg1, %c1_i32 : i32
    %30 = arith.extui %29 : i1 to i32
    %31 = arith.sitofp %30 : i32 to f32
    %cst_12 = arith.constant 0.000000e+00 : f32
    %32 = vector.broadcast %cst_12 : f32 to vector<8x1xf32>
    %33 = vector.broadcast %28 : f32 to vector<8x16xf32>
    %34 = arith.mulf %19, %33 : vector<8x16xf32>
    %35 = vector.broadcast %31 : f32 to vector<8x16xf32>
    %36 = arith.mulf %25, %35 : vector<8x16xf32>
    %37 = tpu.concatenate %32, %34, %13, %36, %32 in 1 : vector<8x1xf32>, vector<8x16xf32>, vector<8x128xf32>, vector<8x16xf32>, vector<8x1xf32> -> vector<8x162xf32>
    %38 = tpu.iota {dimensions = array<i32: 1>} : vector<1x128xi32>
    %c16_i32 = arith.constant 16 : i32
    %c0_i32_13 = arith.constant 0 : i32
    %39 = arith.cmpi eq, %c16_i32, %c0_i32_13 : i32
    %c1_i32_14 = arith.constant 1 : i32
    %40 = arith.select %39, %c1_i32_14, %c16_i32 : i32
    %41 = vector.broadcast %40 : i32 to vector<1x128xi32>
    %42 = arith.remsi %38, %41 : vector<1x128xi32>
    %c0_i32_15 = arith.constant 0 : i32
    %43 = vector.broadcast %c0_i32_15 : i32 to vector<1x128xi32>
    %44 = arith.cmpi ne, %42, %43 : vector<1x128xi32>
    %c0_i32_16 = arith.constant 0 : i32
    %45 = vector.broadcast %c0_i32_16 : i32 to vector<1x128xi32>
    %46 = arith.cmpi slt, %42, %45 : vector<1x128xi32>
    %c0_i32_17 = arith.constant 0 : i32
    %47 = arith.cmpi slt, %40, %c0_i32_17 : i32
    %48 = vector.broadcast %47 : i1 to vector<1x128xi1>
    %49 = vector.broadcast %48 : vector<1x128xi1> to vector<1x128xi1>
    %50 = arith.xori %46, %49 : vector<1x128xi1>
    %51 = arith.andi %50, %44 : vector<1x128xi1>
    %52 = vector.broadcast %40 : i32 to vector<1x128xi32>
    %53 = arith.addi %42, %52 : vector<1x128xi32>
    %54 = arith.select %51, %53, %42 : vector<1x128xi1>, vector<1x128xi32>
    %c0_i32_18 = arith.constant 0 : i32
    %55 = vector.broadcast %c0_i32_18 : i32 to vector<1x128xi32>
    %56 = arith.cmpi ne, %54, %55 : vector<1x128xi32>
    %57 = arith.extui %56 : vector<1x128xi1> to vector<1x128xi32>
    %58 = arith.sitofp %57 : vector<1x128xi32> to vector<1x128xf32>
    %c15_i32 = arith.constant 15 : i32
    %59 = vector.broadcast %c15_i32 : i32 to vector<1x128xi32>
    %60 = arith.cmpi ne, %54, %59 : vector<1x128xi32>
    %61 = arith.extui %60 : vector<1x128xi1> to vector<1x128xi32>
    %62 = arith.sitofp %61 : vector<1x128xi32> to vector<1x128xf32>
    %cst_19 = arith.constant 0.000000e+00 : f32
    %63 = vector.broadcast %cst_19 : f32 to vector<8x128xf32>
    %64 = vector.extract_strided_slice %37 {offsets = [0, 0], sizes = [8, 128], strides = [1, 1]} : vector<8x162xf32> to vector<8x128xf32>
    %65 = vector.broadcast %58 : vector<1x128xf32> to vector<8x128xf32>
    %66 = arith.mulf %64, %65 : vector<8x128xf32>
    %c0_20 = arith.constant 0 : index
    %c0_21 = arith.constant 0 : index
    %c0_22 = arith.constant 0 : index
    %67 = vector.load %arg4[%c0_20, %c0_21, %c0_22] : memref<9x8x8xf32, #tpu.memory_space<vmem>>, vector<1x8x8xf32>
    %68 = vector.shape_cast %67 : vector<1x8x8xf32> to vector<8x8xf32>
    %cst_23 = arith.constant dense<0.000000e+00> : vector<8x128xf32>
    %69 = tpu.matmul %68, %66, %cst_23 {dimension_numbers = #tpu.dot_dimension_numbers<[1], [0], [0], [1], [0, 0, 1, 1], [], []>} : vector<8x8xf32>, vector<8x128xf32>, vector<8x128xf32> -> vector<8x128xf32>
    %70 = arith.addf %63, %69 : vector<8x128xf32>
    %71 = vector.extract_strided_slice %37 {offsets = [0, 1], sizes = [8, 128], strides = [1, 1]} : vector<8x162xf32> to vector<8x128xf32>
    %c1 = arith.constant 1 : index
    %c0_24 = arith.constant 0 : index
    %c0_25 = arith.constant 0 : index
    %72 = vector.load %arg4[%c1, %c0_24, %c0_25] : memref<9x8x8xf32, #tpu.memory_space<vmem>>, vector<1x8x8xf32>
    %73 = vector.shape_cast %72 : vector<1x8x8xf32> to vector<8x8xf32>
    %cst_26 = arith.constant dense<0.000000e+00> : vector<8x128xf32>
    %74 = tpu.matmul %73, %71, %cst_26 {dimension_numbers = #tpu.dot_dimension_numbers<[1], [0], [0], [1], [0, 0, 1, 1], [], []>} : vector<8x8xf32>, vector<8x128xf32>, vector<8x128xf32> -> vector<8x128xf32>
    %75 = arith.addf %70, %74 : vector<8x128xf32>
    %76 = vector.extract_strided_slice %37 {offsets = [0, 2], sizes = [8, 128], strides = [1, 1]} : vector<8x162xf32> to vector<8x128xf32>
    %77 = vector.broadcast %62 : vector<1x128xf32> to vector<8x128xf32>
    %78 = arith.mulf %76, %77 : vector<8x128xf32>
    %c2 = arith.constant 2 : index
    %c0_27 = arith.constant 0 : index
    %c0_28 = arith.constant 0 : index
    %79 = vector.load %arg4[%c2, %c0_27, %c0_28] : memref<9x8x8xf32, #tpu.memory_space<vmem>>, vector<1x8x8xf32>
    %80 = vector.shape_cast %79 : vector<1x8x8xf32> to vector<8x8xf32>
    %cst_29 = arith.constant dense<0.000000e+00> : vector<8x128xf32>
    %81 = tpu.matmul %80, %78, %cst_29 {dimension_numbers = #tpu.dot_dimension_numbers<[1], [0], [0], [1], [0, 0, 1, 1], [], []>} : vector<8x8xf32>, vector<8x128xf32>, vector<8x128xf32> -> vector<8x128xf32>
    %82 = arith.addf %75, %81 : vector<8x128xf32>
    %83 = vector.extract_strided_slice %37 {offsets = [0, 16], sizes = [8, 128], strides = [1, 1]} : vector<8x162xf32> to vector<8x128xf32>
    %84 = vector.broadcast %58 : vector<1x128xf32> to vector<8x128xf32>
    %85 = arith.mulf %83, %84 : vector<8x128xf32>
    %c3 = arith.constant 3 : index
    %c0_30 = arith.constant 0 : index
    %c0_31 = arith.constant 0 : index
    %86 = vector.load %arg4[%c3, %c0_30, %c0_31] : memref<9x8x8xf32, #tpu.memory_space<vmem>>, vector<1x8x8xf32>
    %87 = vector.shape_cast %86 : vector<1x8x8xf32> to vector<8x8xf32>
    %cst_32 = arith.constant dense<0.000000e+00> : vector<8x128xf32>
    %88 = tpu.matmul %87, %85, %cst_32 {dimension_numbers = #tpu.dot_dimension_numbers<[1], [0], [0], [1], [0, 0, 1, 1], [], []>} : vector<8x8xf32>, vector<8x128xf32>, vector<8x128xf32> -> vector<8x128xf32>
    %89 = arith.addf %82, %88 : vector<8x128xf32>
    %90 = vector.extract_strided_slice %37 {offsets = [0, 17], sizes = [8, 128], strides = [1, 1]} : vector<8x162xf32> to vector<8x128xf32>
    %c4 = arith.constant 4 : index
    %c0_33 = arith.constant 0 : index
    %c0_34 = arith.constant 0 : index
    %91 = vector.load %arg4[%c4, %c0_33, %c0_34] : memref<9x8x8xf32, #tpu.memory_space<vmem>>, vector<1x8x8xf32>
    %92 = vector.shape_cast %91 : vector<1x8x8xf32> to vector<8x8xf32>
    %cst_35 = arith.constant dense<0.000000e+00> : vector<8x128xf32>
    %93 = tpu.matmul %92, %90, %cst_35 {dimension_numbers = #tpu.dot_dimension_numbers<[1], [0], [0], [1], [0, 0, 1, 1], [], []>} : vector<8x8xf32>, vector<8x128xf32>, vector<8x128xf32> -> vector<8x128xf32>
    %94 = arith.addf %89, %93 : vector<8x128xf32>
    %95 = vector.extract_strided_slice %37 {offsets = [0, 18], sizes = [8, 128], strides = [1, 1]} : vector<8x162xf32> to vector<8x128xf32>
    %96 = vector.broadcast %62 : vector<1x128xf32> to vector<8x128xf32>
    %97 = arith.mulf %95, %96 : vector<8x128xf32>
    %c5 = arith.constant 5 : index
    %c0_36 = arith.constant 0 : index
    %c0_37 = arith.constant 0 : index
    %98 = vector.load %arg4[%c5, %c0_36, %c0_37] : memref<9x8x8xf32, #tpu.memory_space<vmem>>, vector<1x8x8xf32>
    %99 = vector.shape_cast %98 : vector<1x8x8xf32> to vector<8x8xf32>
    %cst_38 = arith.constant dense<0.000000e+00> : vector<8x128xf32>
    %100 = tpu.matmul %99, %97, %cst_38 {dimension_numbers = #tpu.dot_dimension_numbers<[1], [0], [0], [1], [0, 0, 1, 1], [], []>} : vector<8x8xf32>, vector<8x128xf32>, vector<8x128xf32> -> vector<8x128xf32>
    %101 = arith.addf %94, %100 : vector<8x128xf32>
    %102 = vector.extract_strided_slice %37 {offsets = [0, 32], sizes = [8, 128], strides = [1, 1]} : vector<8x162xf32> to vector<8x128xf32>
    %103 = vector.broadcast %58 : vector<1x128xf32> to vector<8x128xf32>
    %104 = arith.mulf %102, %103 : vector<8x128xf32>
    %c6 = arith.constant 6 : index
    %c0_39 = arith.constant 0 : index
    %c0_40 = arith.constant 0 : index
    %105 = vector.load %arg4[%c6, %c0_39, %c0_40] : memref<9x8x8xf32, #tpu.memory_space<vmem>>, vector<1x8x8xf32>
    %106 = vector.shape_cast %105 : vector<1x8x8xf32> to vector<8x8xf32>
    %cst_41 = arith.constant dense<0.000000e+00> : vector<8x128xf32>
    %107 = tpu.matmul %106, %104, %cst_41 {dimension_numbers = #tpu.dot_dimension_numbers<[1], [0], [0], [1], [0, 0, 1, 1], [], []>} : vector<8x8xf32>, vector<8x128xf32>, vector<8x128xf32> -> vector<8x128xf32>
    %108 = arith.addf %101, %107 : vector<8x128xf32>
    %109 = vector.extract_strided_slice %37 {offsets = [0, 33], sizes = [8, 128], strides = [1, 1]} : vector<8x162xf32> to vector<8x128xf32>
    %c7 = arith.constant 7 : index
    %c0_42 = arith.constant 0 : index
    %c0_43 = arith.constant 0 : index
    %110 = vector.load %arg4[%c7, %c0_42, %c0_43] : memref<9x8x8xf32, #tpu.memory_space<vmem>>, vector<1x8x8xf32>
    %111 = vector.shape_cast %110 : vector<1x8x8xf32> to vector<8x8xf32>
    %cst_44 = arith.constant dense<0.000000e+00> : vector<8x128xf32>
    %112 = tpu.matmul %111, %109, %cst_44 {dimension_numbers = #tpu.dot_dimension_numbers<[1], [0], [0], [1], [0, 0, 1, 1], [], []>} : vector<8x8xf32>, vector<8x128xf32>, vector<8x128xf32> -> vector<8x128xf32>
    %113 = arith.addf %108, %112 : vector<8x128xf32>
    %114 = vector.extract_strided_slice %37 {offsets = [0, 34], sizes = [8, 128], strides = [1, 1]} : vector<8x162xf32> to vector<8x128xf32>
    %115 = vector.broadcast %62 : vector<1x128xf32> to vector<8x128xf32>
    %116 = arith.mulf %114, %115 : vector<8x128xf32>
    %c8 = arith.constant 8 : index
    %c0_45 = arith.constant 0 : index
    %c0_46 = arith.constant 0 : index
    %117 = vector.load %arg4[%c8, %c0_45, %c0_46] : memref<9x8x8xf32, #tpu.memory_space<vmem>>, vector<1x8x8xf32>
    %118 = vector.shape_cast %117 : vector<1x8x8xf32> to vector<8x8xf32>
    %cst_47 = arith.constant dense<0.000000e+00> : vector<8x128xf32>
    %119 = tpu.matmul %118, %116, %cst_47 {dimension_numbers = #tpu.dot_dimension_numbers<[1], [0], [0], [1], [0, 0, 1, 1], [], []>} : vector<8x8xf32>, vector<8x128xf32>, vector<8x128xf32> -> vector<8x128xf32>
    %120 = arith.addf %113, %119 : vector<8x128xf32>
    %c0_48 = arith.constant 0 : index
    %c0_49 = arith.constant 0 : index
    %c0_50 = arith.constant 0 : index
    %121 = vector.load %arg7[%c0_48, %c0_49, %c0_50] : memref<1x8x128xf32, #tpu.memory_space<vmem>>, vector<1x8x128xf32>
    %122 = vector.shape_cast %121 : vector<1x8x128xf32> to vector<8x128xf32>
    %123 = vector.shape_cast %120 : vector<8x128xf32> to vector<1x8x128xf32>
    tpu.vector_store %arg7[%c0_48, %c0_49, %c0_50], %123 {strides = array<i32>} : memref<1x8x128xf32, #tpu.memory_space<vmem>>, vector<1x8x128xf32>,
    %cst_51 = arith.constant dense<0.000000e+00> : vector<8xf32>
    %124 = vector.multi_reduction <add>, %120, %cst_51 [1] : vector<8x128xf32> to vector<8xf32>
    %125 = vector.shape_cast %124 : vector<8xf32> to vector<8x1xf32>
    %126 = arith.mulf %120, %120 : vector<8x128xf32>
    %cst_52 = arith.constant dense<0.000000e+00> : vector<8xf32>
    %127 = vector.multi_reduction <add>, %126, %cst_52 [1] : vector<8x128xf32> to vector<8xf32>
    %128 = vector.shape_cast %127 : vector<8xf32> to vector<8x1xf32>
    %129 = tpu.concatenate %125, %128 in 1 : vector<8x1xf32>, vector<8x1xf32> -> vector<8x2xf32>
    %c0_53 = arith.constant 0 : index
    %c0_54 = arith.constant 0 : index
    %c0_55 = arith.constant 0 : index
    %c0_56 = arith.constant 0 : index
    %130 = vector.load %arg8[%c0_53, %c0_54, %c0_55, %c0_56] : memref<1x1x8x2xf32, #tpu.memory_space<vmem>>, vector<1x1x8x2xf32>
    %131 = vector.shape_cast %130 : vector<1x1x8x2xf32> to vector<8x2xf32>
    %132 = vector.shape_cast %129 : vector<8x2xf32> to vector<1x1x8x2xf32>
    tpu.vector_store %arg8[%c0_53, %c0_54, %c0_55, %c0_56], %132 {strides = array<i32>} : memref<1x1x8x2xf32, #tpu.memory_space<vmem>>, vector<1x1x8x2xf32>,
    return
  }
  func.func @transform_0(%arg0: i32, %arg1: i32) -> (i32, i32, i32) {
    %c0_i32 = arith.constant 0 : i32
    %c0_i32_0 = arith.constant 0 : i32
    return %arg0, %c0_i32, %arg1 : i32, i32, i32
  }
  func.func @transform_1(%arg0: i32, %arg1: i32) -> (i32, i32, i32, i32) {
    %c0_i32 = arith.constant 0 : i32
    %c0_i32_0 = arith.constant 0 : i32
    %c0_i32_1 = arith.constant 0 : i32
    return %arg0, %arg1, %c0_i32, %c0_i32_0 : i32, i32, i32, i32
  }
  func.func @transform_2(%arg0: i32, %arg1: i32) -> (i32, i32, i32) {
    %c0_i32 = arith.constant 0 : i32
    %c0_i32_0 = arith.constant 0 : i32
    %c0_i32_1 = arith.constant 0 : i32
    %c0_i32_2 = arith.constant 0 : i32
    return %c0_i32, %c0_i32_0, %c0_i32_1 : i32, i32, i32
  }
  func.func @transform_3(%arg0: i32, %arg1: i32) -> (i32, i32) {
    %c0_i32 = arith.constant 0 : i32
    %c0_i32_0 = arith.constant 0 : i32
    %c0_i32_1 = arith.constant 0 : i32
    return %c0_i32, %c0_i32_0 : i32, i32
  }
  func.func @transform_4(%arg0: i32, %arg1: i32) -> (i32, i32) {
    %c0_i32 = arith.constant 0 : i32
    %c0_i32_0 = arith.constant 0 : i32
    %c0_i32_1 = arith.constant 0 : i32
    return %c0_i32, %c0_i32_0 : i32, i32
  }
  func.func @transform_5(%arg0: i32, %arg1: i32) -> (i32, i32, i32) {
    %c0_i32 = arith.constant 0 : i32
    %c0_i32_0 = arith.constant 0 : i32
    return %arg0, %c0_i32, %arg1 : i32, i32, i32
  }
  func.func @transform_6(%arg0: i32, %arg1: i32) -> (i32, i32, i32, i32) {
    %c0_i32 = arith.constant 0 : i32
    %c0_i32_0 = arith.constant 0 : i32
    %c0_i32_1 = arith.constant 0 : i32
    return %arg0, %arg1, %c0_i32, %c0_i32_0 : i32, i32, i32, i32
  }
}

</mosaic_0001>

<llo_original>
// kernel: _double_conv_impl.5
$region0: #{_double_conv_impl.5}
  #allocation0 [shape = 'u32[]', space=smem, size = 0x4, offset = 0x4, fixed_abs, tag = 'smem constant byte address 0x4 - core index']
  #allocation1 [shape = 'u32[144,128]{1,0:T(1,128)}', space=vmem, size = 0x12000, scoped, tag = 'internal scratch']
  %s0 = inlined_call_operand.vmem [shape: f32[2,8,256], index: 0, kind: input, shape index: {}]
  %s1 = inlined_call_operand.vmem [shape: f32[8,1], index: 1, kind: input, shape index: {}]
  %s2 = inlined_call_operand.vmem [shape: f32[8,1], index: 2, kind: input, shape index: {}]
  %s3 = inlined_call_operand.vmem [shape: f32[2,8,256], index: 3, kind: output, shape index: {}]
  %s4 = sld [smem:[#allocation0]]
  $region45: #{_double_conv_impl.5} parent=0
    _
  %s6 = ssub.s32 1, %s4
  %s7 = scalar_select 0, %s6, %s4
  loop: start=0, step=1, limit=4
  $region2: #{_double_conv_impl.5} parent=0 // loop_pre_header
    _
  $region3: #{_double_conv_impl.5} parent=0 // loop_header
    %s9 = sphi 0, %s13
    %p10 = scmp.ge.s32.totalorder %s9, 4
    %s16 = sphi 0, %s28
    %s17 = sphi 0, %s24
    %s18 = sphi 0, %s16
    %s19 = sphi 0, %s17
    %s20 = sphi 0, %s18
    %s21 = sphi 0, %s19
    %s33 = sphi 0, %s35
    %s36 = sphi 0, %s33
    %s37 = sphi 0, %s36
    %s53 = sphi 0, %s37
    %s57 = sphi 0, %s57
    %s59 = sphi 0, %s57
    %s60 = sphi 0, %s59
    %s74 = sphi 0, %s60
    %s78 = sphi 0, %s78
    %s80 = sphi 0, %s78
    %s81 = sphi 0, %s80
    %s95 = sphi 0, %s81
    %s103 = sphi 0, %s105
    %s106 = sphi 0, %s103
    %s107 = sphi 0, %s106
    %s123 = sphi 0, %s107
  $region4: #{_double_conv_impl.5} parent=0 // loop_header_branch
    %12 = sbr.rel (%p10) target = $region8
  $region5: #{_double_conv_impl.5} parent=0 // loop_body
    %s14 = ssub.s32 %s9, 1
    %s15 = ssub.s32 %s9, 2
    %s22 = sadd.s32 1, %s17
    %p23 = scmp.ge.s32.totalorder %s22, 1
    %s24 = scalar_select %p23, 0, %s22
    %s25 = sadd.s32 1, %s16
    %s26 = scalar_select %p23, %s25, %s16
    %p27 = scmp.ge.s32.totalorder %s26, 2
    %s28 = scalar_select %p27, 0, %s26
    %s29 = ssub.s32 %s16, %s28
    %s30 = ssub.s32 %s17, %s24
    %s31 = sor.u32 %s29, %s30
    %p32 = scmp.eq.s32.totalorder %s31, 0
    %s34 = sadd.s32 %s33, 1
    %s35 = scalar_select %p32, %s33, %s34
    %p38 = pneg %p32
    %p39 = scmp.eq.s32.totalorder %s9, 1
    %p40 = por %p38, %p39
    %p41 = scmp.ne.s32.totalorder %s33, %s36
    %p42 = scmp.eq.s32.totalorder %s9, 0
    %p43 = por %p41, %p42
    %p44 = scmp.ne.s32.totalorder %s33, %s36
    %p45 = scmp.eq.s32.totalorder %s14, 1
    %p46 = por %p44, %p45
    %p47 = scmp.ne.s32.totalorder %s36, %s37
    %p48 = scmp.eq.s32.totalorder %s14, 0
    %p49 = por %p47, %p48
    %p50 = scmp.ne.s32.totalorder %s36, %s37
    %p51 = scmp.eq.s32.totalorder %s15, 1
    %p52 = por %p50, %p51
    %p54 = scmp.ne.s32.totalorder %s37, %s53
    %p55 = scmp.eq.s32.totalorder %s15, 0
    %p56 = por %p54, %p55
    %s58 = sadd.s32 %s57, 1
    %p61 = scmp.eq.s32.totalorder %s9, 1
    %p62 = scmp.ne.s32.totalorder %s57, %s59
    %p63 = scmp.eq.s32.totalorder %s9, 0
    %p64 = por %p62, %p63
    %p65 = scmp.ne.s32.totalorder %s57, %s59
    %p66 = scmp.eq.s32.totalorder %s14, 1
    %p67 = por %p65, %p66
    %p68 = scmp.ne.s32.totalorder %s59, %s60
    %p69 = scmp.eq.s32.totalorder %s14, 0
    %p70 = por %p68, %p69
    %p71 = scmp.ne.s32.totalorder %s59, %s60
    %p72 = scmp.eq.s32.totalorder %s15, 1
    %p73 = por %p71, %p72
    %p75 = scmp.ne.s32.totalorder %s60, %s74
    %p76 = scmp.eq.s32.totalorder %s15, 0
    %p77 = por %p75, %p76
    %s79 = sadd.s32 %s78, 1
    %p82 = scmp.eq.s32.totalorder %s9, 1
    %p83 = scmp.ne.s32.totalorder %s78, %s80
    %p84 = scmp.eq.s32.totalorder %s9, 0
    %p85 = por %p83, %p84
    %p86 = scmp.ne.s32.totalorder %s78, %s80
    %p87 = scmp.eq.s32.totalorder %s14, 1
    %p88 = por %p86, %p87
    %p89 = scmp.ne.s32.totalorder %s80, %s81
    %p90 = scmp.eq.s32.totalorder %s14, 0
    %p91 = por %p89, %p90
    %p92 = scmp.ne.s32.totalorder %s80, %s81
    %p93 = scmp.eq.s32.totalorder %s15, 1
    %p94 = por %p92, %p93
    %p96 = scmp.ne.s32.totalorder %s81, %s95
    %p97 = scmp.eq.s32.totalorder %s15, 0
    %p98 = por %p96, %p97
    %s99 = ssub.s32 %s16, %s28
    %s100 = ssub.s32 %s17, %s24
    %s101 = sor.u32 %s99, %s100
    %p102 = scmp.eq.s32.totalorder %s101, 0
    %s104 = sadd.s32 %s103, 1
    %s105 = scalar_select %p102, %s103, %s104
    %p108 = pneg %p102
    %p109 = scmp.eq.s32.totalorder %s9, 1
    %p110 = por %p108, %p109
    %p111 = scmp.ne.s32.totalorder %s103, %s106
    %p112 = scmp.eq.s32.totalorder %s9, 0
    %p113 = por %p111, %p112
    %p114 = scmp.ne.s32.totalorder %s103, %s106
    %p115 = scmp.eq.s32.totalorder %s14, 1
    %p116 = por %p114, %p115
    %p117 = scmp.ne.s32.totalorder %s106, %s107
    %p118 = scmp.eq.s32.totalorder %s14, 0
    %p119 = por %p117, %p118
    %p120 = scmp.ne.s32.totalorder %s106, %s107
    %p121 = scmp.eq.s32.totalorder %s15, 1
    %p122 = por %p120, %p121
    %p124 = scmp.ne.s32.totalorder %s107, %s123
    %p125 = scmp.eq.s32.totalorder %s15, 0
    %p126 = por %p124, %p125
    %p127 = scmp.le.s32.totalorder 1, %s9
    %p128 = scmp.lt.s32.totalorder %s9, 3
    %p129 = pnand %p127, %p128
    %p130 = pneg %p129
    // Predicated region
    $region9: #{_double_conv_impl.5} parent=5 // pred_check
      _
    $region10: #{_double_conv_impl.5} parent=5 // pred_check_branch
      %132 = sbr.rel (%p129) target = $region12
    $region11: #{_double_conv_impl.5} parent=5 // pred_region
      %s133 = ssub.s32 %s9, 1
      // Predicated region
      $region13: #{_double_conv_impl.5} parent=11 // pred_check
        %p134 = pneg %p70
      $region14: #{_double_conv_impl.5} parent=11 // pred_check_branch
        %136 = sbr.rel (%p134) target = $region16
      $region15: #{_double_conv_impl.5} parent=11 // pred_region
        _
      $region16: #{_double_conv_impl.5} parent=11 // pred_fallthru
        _
      // Predicated region
      $region17: #{_double_conv_impl.5} parent=11 // pred_check
        %p137 = pneg %p91
      $region18: #{_double_conv_impl.5} parent=11 // pred_check_branch
        %139 = sbr.rel (%p137) target = $region20
      $region19: #{_double_conv_impl.5} parent=11 // pred_region
        _
      $region20: #{_double_conv_impl.5} parent=11 // pred_fallthru
        _
    $region12: #{_double_conv_impl.5} parent=5 // pred_fallthru
      _
    %p140 = scmp.lt.s32.totalorder %s9, 2
    // Predicated region
    $region21: #{_double_conv_impl.5} parent=5 // pred_check
      %p141 = pneg %p140
    $region22: #{_double_conv_impl.5} parent=5 // pred_check_branch
      %143 = sbr.rel (%p141) target = $region24
    $region23: #{_double_conv_impl.5} parent=5 // pred_region
      // Predicated region
      $region25: #{_double_conv_impl.5} parent=23 // pred_check
        %p144 = pneg %p43
      $region26: #{_double_conv_impl.5} parent=23 // pred_check_branch
        %146 = sbr.rel (%p144) target = $region28
      $region27: #{_double_conv_impl.5} parent=23 // pred_region
        %s147 = smul.u32 2, %s17
        %p148 = scmp.lt.s32.totalorder %s16, 1
        %s149 = scalar_select %p148, %s16, 1
        %p150 = scmp.lt.s32.totalorder %s147, 1
        %s151 = scalar_select %p150, %s147, 1
        %s152 = smul.addr %s149, 2
        %s153 = sadd.s32 %s151, %s152
        %s154 = smul.addr %s153, 8
        %s155 = scalar_lea.vmem %s0, %s154
        %s156 = smul.u32 2, %s17
      $region28: #{_double_conv_impl.5} parent=23 // pred_fallthru
        _
    $region24: #{_double_conv_impl.5} parent=5 // pred_fallthru
      _
    %p157 = scmp.le.s32.totalorder 1, %s9
    %p158 = scmp.lt.s32.totalorder %s9, 3
    %p159 = pnand %p157, %p158
    %p160 = pneg %p159
    // Predicated region
    $region29: #{_double_conv_impl.5} parent=5 // pred_check
      _
    $region30: #{_double_conv_impl.5} parent=5 // pred_check_branch
      %162 = sbr.rel (%p159) target = $region32
    $region31: #{_double_conv_impl.5} parent=5 // pred_region
      %s163 = ssub.s32 %s9, 1
      %s164 = smul.u32 2, %s19
      %p165 = scmp.lt.s32.totalorder %s18, 1
      %s166 = scalar_select %p165, %s18, 1
      %p167 = scmp.lt.s32.totalorder %s164, 1
      %s168 = scalar_select %p167, %s164, 1
      %s169 = smul.addr %s166, 2
      %s170 = sadd.s32 %s168, %s169
      %s171 = smul.addr %s170, 8
      %s172 = scalar_lea.vmem %s0, %s171
      %p173 = pneg %p49
      %p174 = pneg %p46
      %p175 = pneg %p70
      %p176 = pneg %p67
      %p177 = pneg %p91
      %p178 = pneg %p88
      %p179 = pneg %p119
      %p180 = pneg %p116
      %s181 = smul.u32 2, %s19
      %p182 = scmp.lt.s32.totalorder %s18, 1
      %s183 = scalar_select %p182, %s18, 1
      %p184 = scmp.lt.s32.totalorder %s181, 1
      %s185 = scalar_select %p184, %s181, 1
      %s186 = smul.addr %s183, 2
      %s187 = sadd.s32 %s185, %s186
      %s188 = smul.addr %s187, 8
      %s189 = scalar_lea.vmem %s3, %s188
      %s190 = smul.u32 2, %s19
      %p191 = scmp.lt.s32.totalorder %s18, 1
      %s192 = scalar_select %p191, %s18, 1
      %p193 = scmp.lt.s32.totalorder %s190, 1
      %s194 = scalar_select %p193, %s190, 1
      %s195 = smul.addr %s192, 2
      %s196 = sadd.s32 %s194, %s195
      %s197 = smul.addr %s196, 8
      %s198 = scalar_lea.vmem %s0, %s197
      %s199 = smul.u32 2, %s19
      %s200 = smul.u32 2, %s19
      %p201 = scmp.lt.s32.totalorder %s18, 1
      %s202 = scalar_select %p201, %s18, 1
      %p203 = scmp.lt.s32.totalorder %s200, 1
      %s204 = scalar_select %p203, %s200, 1
      %s205 = smul.addr %s202, 2
      %s206 = sadd.s32 %s204, %s205
      %s207 = smul.addr %s206, 8
      %s208 = scalar_lea.vmem %s3, %s207
      %s209 = smul.u32 2, %s19
      %v210 = vld [vmem:[%s198] sm:$0xff]
      %v211 = vld [vmem:[%s198 + $0x8] sm:$0xff]
      %v212 = vld [vmem:[%s1] sm:$0xff]
      %214 = vset.pattern.permute.xlu0 0
      %215 = vperm.xlu0 %214, %v212
      %v216 = vpop.permute.xlu0 %215
      %v218 = vmul.f32 %v210, %v216
      %v219 = vmul.f32 %v211, %v216
      %v220 = vld [vmem:[%s2] sm:$0xff]
      %222 = vset.pattern.permute.xlu0 0
      %223 = vperm.xlu0 %222, %v220
      %v224 = vpop.permute.xlu0 %223
      %v226 = vadd.f32 %v218, %v224
      %v227 = vadd.f32 %v219, %v224
      %v228 = vmax.f32 %v226, 0.0
      %v229 = vmax.f32 %v227, 0.0
      %230 = vst [vmem:[%s208] sm:$0xff] %v228
      %231 = vst [vmem:[%s208 + $0x8] sm:$0xff] %v229
      %s232 = smul.u32 2, %s19
      %p233 = scmp.lt.s32.totalorder %s18, 1
      %s234 = scalar_select %p233, %s18, 1
      %p235 = scmp.lt.s32.totalorder %s232, 1
      %s236 = scalar_select %p235, %s232, 1
      %s237 = smul.addr %s234, 2
      %s238 = sadd.s32 %s236, %s237
      %s239 = smul.addr %s238, 8
      %s240 = scalar_lea.vmem %s3, %s239
      // Predicated region
      $region33: #{_double_conv_impl.5} parent=31 // pred_check
        %p241 = pneg %p116
      $region34: #{_double_conv_impl.5} parent=31 // pred_check_branch
        %243 = sbr.rel (%p241) target = $region36
      $region35: #{_double_conv_impl.5} parent=31 // pred_region
        %s244 = smul.u32 2, %s19
      $region36: #{_double_conv_impl.5} parent=31 // pred_fallthru
        _
    $region32: #{_double_conv_impl.5} parent=5 // pred_fallthru
      _
    %p245 = scmp.le.s32.totalorder 2, %s9
    // Predicated region
    $region37: #{_double_conv_impl.5} parent=5 // pred_check
      %p246 = pneg %p245
    $region38: #{_double_conv_impl.5} parent=5 // pred_check_branch
      %248 = sbr.rel (%p246) target = $region40
    $region39: #{_double_conv_impl.5} parent=5 // pred_region
      %s249 = ssub.s32 %s9, 2
      // Predicated region
      $region41: #{_double_conv_impl.5} parent=39 // pred_check
        %p250 = pneg %p122
      $region42: #{_double_conv_impl.5} parent=39 // pred_check_branch
        %252 = sbr.rel (%p250) target = $region44
      $region43: #{_double_conv_impl.5} parent=39 // pred_region
        %s253 = smul.u32 2, %s21
        %p254 = scmp.lt.s32.totalorder %s20, 1
        %s255 = scalar_select %p254, %s20, 1
        %p256 = scmp.lt.s32.totalorder %s253, 1
        %s257 = scalar_select %p256, %s253, 1
        %s258 = smul.addr %s255, 2
        %s259 = sadd.s32 %s257, %s258
        %s260 = smul.addr %s259, 8
        %s261 = scalar_lea.vmem %s3, %s260
      $region44: #{_double_conv_impl.5} parent=39 // pred_fallthru
        _
    $region40: #{_double_conv_impl.5} parent=5 // pred_fallthru
      _
  $region6: #{_double_conv_impl.5} parent=0 // loop_footer
    %s13 = sadd.s32 1, %s9
  $region7: #{_double_conv_impl.5} parent=0 // loop_footer_branch
    %8 = sbr.rel target = $region3
  $region8: #{_double_conv_impl.5} parent=0 // loop_exit
    _

// kernel: _double_conv_impl.3
$region0: #{_double_conv_impl.3}
  #allocation0 [shape = 'u32[]', space=smem, size = 0x4, offset = 0x4, fixed_abs, tag = 'smem constant byte address 0x4 - core index']
  #allocation1 [shape = 'u32[144,128]{1,0:T(1,128)}', space=vmem, size = 0x12000, scoped, tag = 'internal scratch']
  %s0 = inlined_call_operand.vmem [shape: f32[2,4,256], index: 0, kind: input, shape index: {}]
  %s1 = inlined_call_operand.vmem [shape: f32[2,2,4,32], index: 1, kind: input, shape index: {}]
  %s2 = inlined_call_operand.vmem [shape: f32[9,8,4], index: 2, kind: input, shape index: {}]
  %s3 = inlined_call_operand.vmem [shape: f32[4,1], index: 3, kind: input, shape index: {}]
  %s4 = inlined_call_operand.vmem [shape: f32[4,1], index: 4, kind: input, shape index: {}]
  %s5 = inlined_call_operand.vmem [shape: f32[2,8,256], index: 5, kind: output, shape index: {0}]
  %s6 = inlined_call_operand.vmem [shape: f32[2,2,8,2], index: 6, kind: output, shape index: {1}]
  %7 = xla_tuple %s5, %s6
  %s8 = sld [smem:[#allocation0]]
  $region61: #{_double_conv_impl.3} parent=0
    _
  %s10 = ssub.s32 1, %s8
  %s11 = scalar_select 0, %s10, %s8
  loop: start=0, step=1, limit=6
  $region2: #{_double_conv_impl.3} parent=0 // loop_pre_header
    _
  $region3: #{_double_conv_impl.3} parent=0 // loop_header
    %s13 = sphi 0, %s17
    %p14 = scmp.ge.s32.totalorder %s13, 6
    %s20 = sphi 0, %s32
    %s21 = sphi 0, %s28
    %s22 = sphi 0, %s20
    %s23 = sphi 0, %s21
    %s24 = sphi 0, %s22
    %s25 = sphi 0, %s23
    %s37 = sphi 0, %s39
    %s40 = sphi 0, %s37
    %s41 = sphi 0, %s40
    %s57 = sphi 0, %s41
    %s65 = sphi 0, %s67
    %s68 = sphi 0, %s65
    %s69 = sphi 0, %s68
    %s85 = sphi 0, %s69
    %s89 = sphi 0, %s89
    %s91 = sphi 0, %s89
    %s92 = sphi 0, %s91
    %s106 = sphi 0, %s92
    %s110 = sphi 0, %s110
    %s112 = sphi 0, %s110
    %s113 = sphi 0, %s112
    %s127 = sphi 0, %s113
    %s131 = sphi 0, %s131
    %s133 = sphi 0, %s131
    %s134 = sphi 0, %s133
    %s148 = sphi 0, %s134
    %s156 = sphi 0, %s158
    %s159 = sphi 0, %s156
    %s160 = sphi 0, %s159
    %s176 = sphi 0, %s160
    %s184 = sphi 0, %s186
    %s187 = sphi 0, %s184
    %s188 = sphi 0, %s187
    %s204 = sphi 0, %s188
  $region4: #{_double_conv_impl.3} parent=0 // loop_header_branch
    %16 = sbr.rel (%p14) target = $region8
  $region5: #{_double_conv_impl.3} parent=0 // loop_body
    %s18 = ssub.s32 %s13, 1
    %s19 = ssub.s32 %s13, 2
    %s26 = sadd.s32 1, %s21
    %p27 = scmp.ge.s32.totalorder %s26, 2
    %s28 = scalar_select %p27, 0, %s26
    %s29 = sadd.s32 1, %s20
    %s30 = scalar_select %p27, %s29, %s20
    %p31 = scmp.ge.s32.totalorder %s30, 2
    %s32 = scalar_select %p31, 0, %s30
    %s33 = ssub.s32 %s20, %s32
    %s34 = ssub.s32 %s21, %s28
    %s35 = sor.u32 %s33, %s34
    %p36 = scmp.eq.s32.totalorder %s35, 0
    %s38 = sadd.s32 %s37, 1
    %s39 = scalar_select %p36, %s37, %s38
    %p42 = pneg %p36
    %p43 = scmp.eq.s32.totalorder %s13, 3
    %p44 = por %p42, %p43
    %p45 = scmp.ne.s32.totalorder %s37, %s40
    %p46 = scmp.eq.s32.totalorder %s13, 0
    %p47 = por %p45, %p46
    %p48 = scmp.ne.s32.totalorder %s37, %s40
    %p49 = scmp.eq.s32.totalorder %s18, 3
    %p50 = por %p48, %p49
    %p51 = scmp.ne.s32.totalorder %s40, %s41
    %p52 = scmp.eq.s32.totalorder %s18, 0
    %p53 = por %p51, %p52
    %p54 = scmp.ne.s32.totalorder %s40, %s41
    %p55 = scmp.eq.s32.totalorder %s19, 3
    %p56 = por %p54, %p55
    %p58 = scmp.ne.s32.totalorder %s41, %s57
    %p59 = scmp.eq.s32.totalorder %s19, 0
    %p60 = por %p58, %p59
    %s61 = ssub.s32 %s20, %s32
    %s62 = ssub.s32 %s21, %s28
    %s63 = sor.u32 %s61, %s62
    %p64 = scmp.eq.s32.totalorder %s63, 0
    %s66 = sadd.s32 %s65, 1
    %s67 = scalar_select %p64, %s65, %s66
    %p70 = pneg %p64
    %p71 = scmp.eq.s32.totalorder %s13, 3
    %p72 = por %p70, %p71
    %p73 = scmp.ne.s32.totalorder %s65, %s68
    %p74 = scmp.eq.s32.totalorder %s13, 0
    %p75 = por %p73, %p74
    %p76 = scmp.ne.s32.totalorder %s65, %s68
    %p77 = scmp.eq.s32.totalorder %s18, 3
    %p78 = por %p76, %p77
    %p79 = scmp.ne.s32.totalorder %s68, %s69
    %p80 = scmp.eq.s32.totalorder %s18, 0
    %p81 = por %p79, %p80
    %p82 = scmp.ne.s32.totalorder %s68, %s69
    %p83 = scmp.eq.s32.totalorder %s19, 3
    %p84 = por %p82, %p83
    %p86 = scmp.ne.s32.totalorder %s69, %s85
    %p87 = scmp.eq.s32.totalorder %s19, 0
    %p88 = por %p86, %p87
    %s90 = sadd.s32 %s89, 1
    %p93 = scmp.eq.s32.totalorder %s13, 3
    %p94 = scmp.ne.s32.totalorder %s89, %s91
    %p95 = scmp.eq.s32.totalorder %s13, 0
    %p96 = por %p94, %p95
    %p97 = scmp.ne.s32.totalorder %s89, %s91
    %p98 = scmp.eq.s32.totalorder %s18, 3
    %p99 = por %p97, %p98
    %p100 = scmp.ne.s32.totalorder %s91, %s92
    %p101 = scmp.eq.s32.totalorder %s18, 0
    %p102 = por %p100, %p101
    %p103 = scmp.ne.s32.totalorder %s91, %s92
    %p104 = scmp.eq.s32.totalorder %s19, 3
    %p105 = por %p103, %p104
    %p107 = scmp.ne.s32.totalorder %s92, %s106
    %p108 = scmp.eq.s32.totalorder %s19, 0
    %p109 = por %p107, %p108
    %s111 = sadd.s32 %s110, 1
    %p114 = scmp.eq.s32.totalorder %s13, 3
    %p115 = scmp.ne.s32.totalorder %s110, %s112
    %p116 = scmp.eq.s32.totalorder %s13, 0
    %p117 = por %p115, %p116
    %p118 = scmp.ne.s32.totalorder %s110, %s112
    %p119 = scmp.eq.s32.totalorder %s18, 3
    %p120 = por %p118, %p119
    %p121 = scmp.ne.s32.totalorder %s112, %s113
    %p122 = scmp.eq.s32.totalorder %s18, 0
    %p123 = por %p121, %p122
    %p124 = scmp.ne.s32.totalorder %s112, %s113
    %p125 = scmp.eq.s32.totalorder %s19, 3
    %p126 = por %p124, %p125
    %p128 = scmp.ne.s32.totalorder %s113, %s127
    %p129 = scmp.eq.s32.totalorder %s19, 0
    %p130 = por %p128, %p129
    %s132 = sadd.s32 %s131, 1
    %p135 = scmp.eq.s32.totalorder %s13, 3
    %p136 = scmp.ne.s32.totalorder %s131, %s133
    %p137 = scmp.eq.s32.totalorder %s13, 0
    %p138 = por %p136, %p137
    %p139 = scmp.ne.s32.totalorder %s131, %s133
    %p140 = scmp.eq.s32.totalorder %s18, 3
    %p141 = por %p139, %p140
    %p142 = scmp.ne.s32.totalorder %s133, %s134
    %p143 = scmp.eq.s32.totalorder %s18, 0
    %p144 = por %p142, %p143
    %p145 = scmp.ne.s32.totalorder %s133, %s134
    %p146 = scmp.eq.s32.totalorder %s19, 3
    %p147 = por %p145, %p146
    %p149 = scmp.ne.s32.totalorder %s134, %s148
    %p150 = scmp.eq.s32.totalorder %s19, 0
    %p151 = por %p149, %p150
    %s152 = ssub.s32 %s20, %s32
    %s153 = ssub.s32 %s21, %s28
    %s154 = sor.u32 %s152, %s153
    %p155 = scmp.eq.s32.totalorder %s154, 0
    %s157 = sadd.s32 %s156, 1
    %s158 = scalar_select %p155, %s156, %s157
    %p161 = pneg %p155
    %p162 = scmp.eq.s32.totalorder %s13, 3
    %p163 = por %p161, %p162
    %p164 = scmp.ne.s32.totalorder %s156, %s159
    %p165 = scmp.eq.s32.totalorder %s13, 0
    %p166 = por %p164, %p165
    %p167 = scmp.ne.s32.totalorder %s156, %s159
    %p168 = scmp.eq.s32.totalorder %s18, 3
    %p169 = por %p167, %p168
    %p170 = scmp.ne.s32.totalorder %s159, %s160
    %p171 = scmp.eq.s32.totalorder %s18, 0
    %p172 = por %p170, %p171
    %p173 = scmp.ne.s32.totalorder %s159, %s160
    %p174 = scmp.eq.s32.totalorder %s19, 3
    %p175 = por %p173, %p174
    %p177 = scmp.ne.s32.totalorder %s160, %s176
    %p178 = scmp.eq.s32.totalorder %s19, 0
    %p179 = por %p177, %p178
    %s180 = ssub.s32 %s20, %s32
    %s181 = ssub.s32 %s21, %s28
    %s182 = sor.u32 %s180, %s181
    %p183 = scmp.eq.s32.totalorder %s182, 0
    %s185 = sadd.s32 %s184, 1
    %s186 = scalar_select %p183, %s184, %s185
    %p189 = pneg %p183
    %p190 = scmp.eq.s32.totalorder %s13, 3
    %p191 = por %p189, %p190
    %p192 = scmp.ne.s32.totalorder %s184, %s187
    %p193 = scmp.eq.s32.totalorder %s13, 0
    %p194 = por %p192, %p193
    %p195 = scmp.ne.s32.totalorder %s184, %s187
    %p196 = scmp.eq.s32.totalorder %s18, 3
    %p197 = por %p195, %p196
    %p198 = scmp.ne.s32.totalorder %s187, %s188
    %p199 = scmp.eq.s32.totalorder %s18, 0
    %p200 = por %p198, %p199
    %p201 = scmp.ne.s32.totalorder %s187, %s188
    %p202 = scmp.eq.s32.totalorder %s19, 3
    %p203 = por %p201, %p202
    %p205 = scmp.ne.s32.totalorder %s188, %s204
    %p206 = scmp.eq.s32.totalorder %s19, 0
    %p207 = por %p205, %p206
    %p208 = scmp.le.s32.totalorder 1, %s13
    %p209 = scmp.lt.s32.totalorder %s13, 5
    %p210 = pnand %p208, %p209
    %p211 = pneg %p210
    // Predicated region
    $region9: #{_double_conv_impl.3} parent=5 // pred_check
      _
    $region10: #{_double_conv_impl.3} parent=5 // pred_check_branch
      %213 = sbr.rel (%p210) target = $region12
    $region11: #{_double_conv_impl.3} parent=5 // pred_region
      %s214 = ssub.s32 %s13, 1
      // Predicated region
      $region13: #{_double_conv_impl.3} parent=11 // pred_check
        %p215 = pneg %p102
      $region14: #{_double_conv_impl.3} parent=11 // pred_check_branch
        %217 = sbr.rel (%p215) target = $region16
      $region15: #{_double_conv_impl.3} parent=11 // pred_region
        _
      $region16: #{_double_conv_impl.3} parent=11 // pred_fallthru
        _
      // Predicated region
      $region17: #{_double_conv_impl.3} parent=11 // pred_check
        %p218 = pneg %p123
      $region18: #{_double_conv_impl.3} parent=11 // pred_check_branch
        %220 = sbr.rel (%p218) target = $region20
      $region19: #{_double_conv_impl.3} parent=11 // pred_region
        _
      $region20: #{_double_conv_impl.3} parent=11 // pred_fallthru
        _
      // Predicated region
      $region21: #{_double_conv_impl.3} parent=11 // pred_check
        %p221 = pneg %p144
      $region22: #{_double_conv_impl.3} parent=11 // pred_check_branch
        %223 = sbr.rel (%p221) target = $region24
      $region23: #{_double_conv_impl.3} parent=11 // pred_region
        _
      $region24: #{_double_conv_impl.3} parent=11 // pred_fallthru
        _
    $region12: #{_double_conv_impl.3} parent=5 // pred_fallthru
      _
    %p224 = scmp.lt.s32.totalorder %s13, 4
    // Predicated region
    $region25: #{_double_conv_impl.3} parent=5 // pred_check
      %p225 = pneg %p224
    $region26: #{_double_conv_impl.3} parent=5 // pred_check_branch
      %227 = sbr.rel (%p225) target = $region28
    $region27: #{_double_conv_impl.3} parent=5 // pred_region
      // Predicated region
      $region29: #{_double_conv_impl.3} parent=27 // pred_check
        %p228 = pneg %p47
      $region30: #{_double_conv_impl.3} parent=27 // pred_check_branch
        %230 = sbr.rel (%p228) target = $region32
      $region31: #{_double_conv_impl.3} parent=27 // pred_region
        %p231 = scmp.lt.s32.totalorder %s20, 1
        %s232 = scalar_select %p231, %s20, 1
        %p233 = scmp.lt.s32.totalorder %s21, 1
        %s234 = scalar_select %p233, %s21, 1
        %s235 = smul.addr %s232, 2
        %s236 = sadd.s32 %s234, %s235
        %s237 = smul.addr %s236, 4
        %s238 = scalar_lea.vmem %s0, %s237
      $region32: #{_double_conv_impl.3} parent=27 // pred_fallthru
        _
      // Predicated region
      $region33: #{_double_conv_impl.3} parent=27 // pred_check
        %p239 = pneg %p75
      $region34: #{_double_conv_impl.3} parent=27 // pred_check_branch
        %241 = sbr.rel (%p239) target = $region36
      $region35: #{_double_conv_impl.3} parent=27 // pred_region
        %p242 = scmp.lt.s32.totalorder %s20, 1
        %s243 = scalar_select %p242, %s20, 1
        %p244 = scmp.lt.s32.totalorder %s21, 1
        %s245 = scalar_select %p244, %s21, 1
        %s246 = smul.addr %s243, 2
        %s247 = sadd.s32 %s245, %s246
        %s248 = smul.addr %s247, 4
        %s249 = scalar_lea.vmem %s1, %s248
      $region36: #{_double_conv_impl.3} parent=27 // pred_fallthru
        _
    $region28: #{_double_conv_impl.3} parent=5 // pred_fallthru
      _
    %p250 = scmp.le.s32.totalorder 1, %s13
    %p251 = scmp.lt.s32.totalorder %s13, 5
    %p252 = pnand %p250, %p251
    %p253 = pneg %p252
    // Predicated region
    $region37: #{_double_conv_impl.3} parent=5 // pred_check
      _
    $region38: #{_double_conv_impl.3} parent=5 // pred_check_branch
      %255 = sbr.rel (%p252) target = $region40
    $region39: #{_double_conv_impl.3} parent=5 // pred_region
      %s256 = ssub.s32 %s13, 1
      %p257 = scmp.lt.s32.totalorder %s22, 1
      %s258 = scalar_select %p257, %s22, 1
      %p259 = scmp.lt.s32.totalorder %s23, 1
      %s260 = scalar_select %p259, %s23, 1
      %s261 = smul.addr %s258, 2
      %s262 = sadd.s32 %s260, %s261
      %s263 = smul.addr %s262, 4
      %s264 = scalar_lea.vmem %s0, %s263
      %p265 = pneg %p53
      %p266 = pneg %p50
      %p267 = scmp.lt.s32.totalorder %s22, 1
      %s268 = scalar_select %p267, %s22, 1
      %p269 = scmp.lt.s32.totalorder %s23, 1
      %s270 = scalar_select %p269, %s23, 1
      %s271 = smul.addr %s268, 2
      %s272 = sadd.s32 %s270, %s271
      %s273 = smul.addr %s272, 4
      %s274 = scalar_lea.vmem %s1, %s273
      %p275 = pneg %p81
      %p276 = pneg %p78
      %p277 = pneg %p102
      %p278 = pneg %p99
      %p279 = pneg %p123
      %p280 = pneg %p120
      %p281 = pneg %p144
      %p282 = pneg %p141
      %p283 = pneg %p172
      %p284 = pneg %p169
      %p285 = scmp.lt.s32.totalorder %s22, 1
      %s286 = scalar_select %p285, %s22, 1
      %p287 = scmp.lt.s32.totalorder %s23, 1
      %s288 = scalar_select %p287, %s23, 1
      %s289 = smul.addr %s286, 2
      %s290 = sadd.s32 %s288, %s289
      %s291 = smul.addr %s290, 8
      %s292 = scalar_lea.vmem %s5, %s291
      %p293 = pneg %p200
      %p294 = pneg %p197
      %p295 = scmp.lt.s32.totalorder %s22, 1
      %s296 = scalar_select %p295, %s22, 1
      %p297 = scmp.lt.s32.totalorder %s23, 1
      %s298 = scalar_select %p297, %s23, 1
      %s299 = smul.addr %s296, 2
      %s300 = sadd.s32 %s298, %s299
      %s301 = smul.addr %s300, 8
      %s302 = scalar_lea.vmem %s6, %s301
      %p303 = scmp.lt.s32.totalorder %s22, 1
      %s304 = scalar_select %p303, %s22, 1
      %p305 = scmp.lt.s32.totalorder %s23, 1
      %s306 = scalar_select %p305, %s23, 1
      %s307 = smul.addr %s304, 2
      %s308 = sadd.s32 %s306, %s307
      %s309 = smul.addr %s308, 4
      %s310 = scalar_lea.vmem %s0, %s309
      %p311 = scmp.lt.s32.totalorder %s22, 1
      %s312 = scalar_select %p311, %s22, 1
      %p313 = scmp.lt.s32.totalorder %s23, 1
      %s314 = scalar_select %p313, %s23, 1
      %s315 = smul.addr %s312, 2
      %s316 = sadd.s32 %s314, %s315
      %s317 = smul.addr %s316, 4
      %s318 = scalar_lea.vmem %s1, %s317
      %p319 = scmp.lt.s32.totalorder %s22, 1
      %s320 = scalar_select %p319, %s22, 1
      %p321 = scmp.lt.s32.totalorder %s23, 1
      %s322 = scalar_select %p321, %s23, 1
      %s323 = smul.addr %s320, 2
      %s324 = sadd.s32 %s322, %s323
      %s325 = smul.addr %s324, 8
      %s326 = scalar_lea.vmem %s5, %s325
      %p327 = scmp.lt.s32.totalorder %s22, 1
      %s328 = scalar_select %p327, %s22, 1
      %p329 = scmp.lt.s32.totalorder %s23, 1
      %s330 = scalar_select %p329, %s23, 1
      %s331 = smul.addr %s328, 2
      %s332 = sadd.s32 %s330, %s331
      %s333 = smul.addr %s332, 8
      %s334 = scalar_lea.vmem %s6, %s333
      %v335 = vld [vmem:[%s310] sm:$0xf]
      %v336 = vld [vmem:[%s318] sm:$0xf]
      %p337 = scmp.gt.s32.totalorder %s23, 0
      %s338 = scalar_select %p337, 1, 0
      %s339 = scvt.s32.f32 %s338
      %p340 = scmp.lt.s32.totalorder %s23, 1
      %s341 = scalar_select %p340, 1, 0
      %s342 = scvt.s32.f32 %s341
      %v343 = vstv %s339
      %v344 = vmul.f32 %v336, %v343
      %v345 = vstv %s342
      %v346 = vmul.f32 %v336, %v345
      %348 = vrot.lane.b32.xlu0 %v344, 1
      %v349 = vpop.permute.xlu0 %348
      %352 = vrot.lane.b32.xlu0 %v335, 17
      %v353 = vpop.permute.xlu0 %352
      %356 = vrot.lane.b32.xlu0 %v346, 1
      %v357 = vpop.permute.xlu0 %356
      %vm359 = vcmask 7168
      %v360 = vsel %vm359, 0.0, %v349
      %vm361 = vcmask 138240
      %v362 = vsel %vm361, %v360, %v353
      %v363 = vsel %vm361, %v353, %v357
      %vm364 = vcmask 269312
      %v365 = vsel %vm364, %v363, 0.0
      %v366 = vlaneseq
      %v367 = vand.u32 %v366, 127
      %vm368 = vcmp.lt.s32.totalorder %v367, 0
      %v369 = vsub.s32 0, %v367
      %v370 = vsel %vm368, %v369, %v367
      %v371 = vshrl.u32 %v370, 4
      %v372 = vand.u32 %v370, 15
      %v373 = vsub.s32 0, %v372
      %v374 = vsel %vm368, %v373, %v372
      %vm375 = vcmp.ne.s32.totalorder %v374, 0
      %vm376 = vcmp.lt.s32.totalorder %v374, 0
      %vm377 = vmand %vm376, %vm375
      %v378 = vadd.s32 %v374, 16
      %v379 = vsel %vm377, %v378, %v374
      %vm380 = vcmp.ne.s32.totalorder %v379, 0
      %v381 = vsel %vm380, 1, 0
      %v382 = vcvt.s32.f32 %v381
      %vm383 = vcmp.ne.s32.totalorder %v379, 15
      %v384 = vsel %vm383, 1, 0
      %v385 = vcvt.s32.f32 %v384
      %v386 = vmul.f32 %v362, %v382
      %v387 = vld [vmem:[%s2] sm:$0xff]
      %s388 = scalar_lea.vmem %s2, 8
      %v389 = vld [vmem:[%s388] sm:$0xff]
      %392 = vrot.lane.b32.xlu0 %v362, 127
      %v393 = vpop.permute.xlu0 %392
      %394 = vrot.lane.b32.xlu0 %v365, 127
      %v395 = vpop.permute.xlu0 %394
      %vm396 = vcmask 1039360
      %v397 = vsel %vm396, %v393, %v395
      %vm398 = vcmask 31744
      %v400 = vsel %vm398, %v389, 0
      %vm402 = vcmask 1043456
      %v403 = vsel %vm402, %v397, 0
      %405 = vmatprep.subr.mxu0 0.0
      %406 = vmatpush1.msra.mxu0 0.0
      %407 = vmatprep.subr.mxu0 0.0
      %408 = vmatpush1.msra.mxu0 0.0
      %409 = vmatprep.subr.mxu0 0.0
      %410 = vmatpush1.msra.mxu0 0.0
      %411 = vmatprep.subr.mxu0 0.0
      %412 = vmatpush1.msra.mxu0 0.0
      %413 = vmatprep.subr.mxu0 0.0
      %414 = vmatpush1.msra.mxu0 0.0
      %415 = vmatprep.subr.mxu0 0.0
      %416 = vmatpush1.msra.mxu0 0.0
      %417 = vmatprep.subr.mxu0 0.0
      %418 = vmatpush1.msra.mxu0 0.0
      %419 = vmatprep.subr.mxu0 0.0
      %420 = vmatpush1.msra.mxu0 0.0
      %421 = vmatprep.subr.mxu0 0.0
      %422 = vmatpush1.msra.mxu0 0.0
      %423 = vmatprep.subr.mxu0 0.0
      %424 = vmatpush1.msra.mxu0 0.0
      %425 = vmatprep.subr.mxu0 0.0
      %426 = vmatpush1.msra.mxu0 0.0
      %427 = vmatprep.subr.mxu0 0.0
      %428 = vmatpush1.msra.mxu0 0.0
      %429 = vmatprep.subr.mxu0 0.0
      %430 = vmatpush1.msra.mxu0 0.0
      %431 = vmatprep.subr.mxu0 0.0
      %432 = vmatpush1.msra.mxu0 0.0
      %433 = vmatprep.subr.mxu0 0.0
      %434 = vmatpush1.msra.mxu0 0.0
      %435 = vmatprep.subr.mxu0 0.0
      %436 = vmatpush1.msra.mxu0 %v403
      %437 = vmatprep.subr.mxu0 0.0
      %438 = vmatpush2.msra.mxu0 0.0
      %439 = vmatprep.subr.mxu0 0.0
      %440 = vmatpush2.msra.mxu0 0.0
      %441 = vmatprep.subr.mxu0 0.0
      %442 = vmatpush2.msra.mxu0 0.0
      %443 = vmatprep.subr.mxu0 0.0
      %444 = vmatpush2.msra.mxu0 0.0
      %445 = vmatprep.subr.mxu0 0.0
      %446 = vmatpush2.msra.mxu0 0.0
      %447 = vmatprep.subr.mxu0 0.0
      %448 = vmatpush2.msra.mxu0 0.0
      %449 = vmatprep.subr.mxu0 0.0
      %450 = vmatpush2.msra.mxu0 0.0
      %451 = vmatprep.subr.mxu0 0.0
      %452 = vmatpush2.msra.mxu0 0.0
      %453 = vmatprep.subr.mxu0 0.0
      %454 = vmatpush2.msra.mxu0 0.0
      %455 = vmatprep.subr.mxu0 0.0
      %456 = vmatpush2.msra.mxu0 0.0
      %457 = vmatprep.subr.mxu0 0.0
      %458 = vmatpush2.msra.mxu0 0.0
      %459 = vmatprep.subr.mxu0 0.0
      %460 = vmatpush2.msra.mxu0 0.0
      %461 = vmatprep.subr.mxu0 0.0
      %462 = vmatpush2.msra.mxu0 0.0
      %463 = vmatprep.subr.mxu0 0.0
      %464 = vmatpush2.msra.mxu0 0.0
      %465 = vmatprep.subr.mxu0 0.0
      %466 = vmatpush2.msra.mxu0 0.0
      %467 = vmatprep.subr.mxu0 0.0
      %468 = vmatpush2.msra.mxu0 0.0
      %469 = vmatprep.mubr.f32.mxu0 0.0
      %470 = vmatmul.mubr.f32.gmra.mxu0 %v400
      %v471 = vpop.f32.mrf.mxu0
      %v472 = vadd.f32 0.0, %v471
      %v473 = vpop.f32.mrf.mxu0
      %474 = vdwg.mxu0
      %v476 = vsel %vm398, %v387, 0
      %v479 = vsel %vm402, %v386, 0
      %481 = vmatprep.subr.mxu0 0.0
      %482 = vmatpush1.msra.mxu0 0.0
      %483 = vmatprep.subr.mxu0 0.0
      %484 = vmatpush1.msra.mxu0 0.0
      %485 = vmatprep.subr.mxu0 0.0
      %486 = vmatpush1.msra.mxu0 0.0
      %487 = vmatprep.subr.mxu0 0.0
      %488 = vmatpush1.msra.mxu0 0.0
      %489 = vmatprep.subr.mxu0 0.0
      %490 = vmatpush1.msra.mxu0 0.0
      %491 = vmatprep.subr.mxu0 0.0
      %492 = vmatpush1.msra.mxu0 0.0
      %493 = vmatprep.subr.mxu0 0.0
      %494 = vmatpush1.msra.mxu0 0.0
      %495 = vmatprep.subr.mxu0 0.0
      %496 = vmatpush1.msra.mxu0 0.0
      %497 = vmatprep.subr.mxu0 0.0
      %498 = vmatpush1.msra.mxu0 0.0
      %499 = vmatprep.subr.mxu0 0.0
      %500 = vmatpush1.msra.mxu0 0.0
      %501 = vmatprep.subr.mxu0 0.0
      %502 = vmatpush1.msra.mxu0 0.0
      %503 = vmatprep.subr.mxu0 0.0
      %504 = vmatpush1.msra.mxu0 0.0
      %505 = vmatprep.subr.mxu0 0.0
      %506 = vmatpush1.msra.mxu0 0.0
      %507 = vmatprep.subr.mxu0 0.0
      %508 = vmatpush1.msra.mxu0 0.0
      %509 = vmatprep.subr.mxu0 0.0
      %510 = vmatpush1.msra.mxu0 0.0
      %511 = vmatprep.subr.mxu0 0.0
      %512 = vmatpush1.msra.mxu0 %v479
      %513 = vmatprep.subr.mxu0 0.0
      %514 = vmatpush2.msra.mxu0 0.0
      %515 = vmatprep.subr.mxu0 0.0
      %516 = vmatpush2.msra.mxu0 0.0
      %517 = vmatprep.subr.mxu0 0.0
      %518 = vmatpush2.msra.mxu0 0.0
      %519 = vmatprep.subr.mxu0 0.0
      %520 = vmatpush2.msra.mxu0 0.0
      %521 = vmatprep.subr.mxu0 0.0
      %522 = vmatpush2.msra.mxu0 0.0
      %523 = vmatprep.subr.mxu0 0.0
      %524 = vmatpush2.msra.mxu0 0.0
      %525 = vmatprep.subr.mxu0 0.0
      %526 = vmatpush2.msra.mxu0 0.0
      %527 = vmatprep.subr.mxu0 0.0
      %528 = vmatpush2.msra.mxu0 0.0
      %529 = vmatprep.subr.mxu0 0.0
      %530 = vmatpush2.msra.mxu0 0.0
      %531 = vmatprep.subr.mxu0 0.0
      %532 = vmatpush2.msra.mxu0 0.0
      %533 = vmatprep.subr.mxu0 0.0
      %534 = vmatpush2.msra.mxu0 0.0
      %535 = vmatprep.subr.mxu0 0.0
      %536 = vmatpush2.msra.mxu0 0.0
      %537 = vmatprep.subr.mxu0 0.0
      %538 = vmatpush2.msra.mxu0 0.0
      %539 = vmatprep.subr.mxu0 0.0
      %540 = vmatpush2.msra.mxu0 0.0
      %541 = vmatprep.subr.mxu0 0.0
      %542 = vmatpush2.msra.mxu0 0.0
      %543 = vmatprep.subr.mxu0 0.0
      %544 = vmatpush2.msra.mxu0 0.0
      %545 = vmatprep.mubr.f32.mxu0 0.0
      %546 = vmatmul.mubr.f32.gmra.mxu0 %v476
      %v547 = vpop.f32.mrf.mxu0
      %v548 = vadd.f32 %v472, %v547
      %v549 = vpop.f32.mrf.mxu0
      %550 = vdwg.mxu0
      %552 = vrot.lane.b32.xlu0 %v385, 2
      %v553 = vpop.permute.xlu0 %552
      %v555 = vmul.f32 %v362, %v553
      %v556 = vmul.f32 %v365, %v553
      %s557 = scalar_lea.vmem %s2, 16
      %v558 = vld [vmem:[%s557] sm:$0xff]
      %561 = vrot.lane.b32.xlu0 %v555, 126
      %v562 = vpop.permute.xlu0 %561
      %563 = vrot.lane.b32.xlu0 %v556, 126
      %v564 = vpop.permute.xlu0 %563
      %vm565 = vcmask 1031168
      %v566 = vsel %vm565, %v562, %v564
      %v568 = vsel %vm398, %v558, 0
      %v570 = vsel %vm402, %v566, 0
      %572 = vmatprep.subr.mxu0 0.0
      %573 = vmatpush1.msra.mxu0 0.0
      %574 = vmatprep.subr.mxu0 0.0
      %575 = vmatpush1.msra.mxu0 0.0
      %576 = vmatprep.subr.mxu0 0.0
      %577 = vmatpush1.msra.mxu0 0.0
      %578 = vmatprep.subr.mxu0 0.0
      %579 = vmatpush1.msra.mxu0 0.0
      %580 = vmatprep.subr.mxu0 0.0
      %581 = vmatpush1.msra.mxu0 0.0
      %582 = vmatprep.subr.mxu0 0.0
      %583 = vmatpush1.msra.mxu0 0.0
      %584 = vmatprep.subr.mxu0 0.0
      %585 = vmatpush1.msra.mxu0 0.0
      %586 = vmatprep.subr.mxu0 0.0
      %587 = vmatpush1.msra.mxu0 0.0
      %588 = vmatprep.subr.mxu0 0.0
      %589 = vmatpush1.msra.mxu0 0.0
      %590 = vmatprep.subr.mxu0 0.0
      %591 = vmatpush1.msra.mxu0 0.0
      %592 = vmatprep.subr.mxu0 0.0
      %593 = vmatpush1.msra.mxu0 0.0
      %594 = vmatprep.subr.mxu0 0.0
      %595 = vmatpush1.msra.mxu0 0.0
      %596 = vmatprep.subr.mxu0 0.0
      %597 = vmatpush1.msra.mxu0 0.0
      %598 = vmatprep.subr.mxu0 0.0
      %599 = vmatpush1.msra.mxu0 0.0
      %600 = vmatprep.subr.mxu0 0.0
      %601 = vmatpush1.msra.mxu0 0.0
      %602 = vmatprep.subr.mxu0 0.0
      %603 = vmatpush1.msra.mxu0 %v570
      %604 = vmatprep.subr.mxu0 0.0
      %605 = vmatpush2.msra.mxu0 0.0
      %606 = vmatprep.subr.mxu0 0.0
      %607 = vmatpush2.msra.mxu0 0.0
      %608 = vmatprep.subr.mxu0 0.0
      %609 = vmatpush2.msra.mxu0 0.0
      %610 = vmatprep.subr.mxu0 0.0
      %611 = vmatpush2.msra.mxu0 0.0
      %612 = vmatprep.subr.mxu0 0.0
      %613 = vmatpush2.msra.mxu0 0.0
      %614 = vmatprep.subr.mxu0 0.0
      %615 = vmatpush2.msra.mxu0 0.0
      %616 = vmatprep.subr.mxu0 0.0
      %617 = vmatpush2.msra.mxu0 0.0
      %618 = vmatprep.subr.mxu0 0.0
      %619 = vmatpush2.msra.mxu0 0.0
      %620 = vmatprep.subr.mxu0 0.0
      %621 = vmatpush2.msra.mxu0 0.0
      %622 = vmatprep.subr.mxu0 0.0
      %623 = vmatpush2.msra.mxu0 0.0
      %624 = vmatprep.subr.mxu0 0.0
      %625 = vmatpush2.msra.mxu0 0.0
      %626 = vmatprep.subr.mxu0 0.0
      %627 = vmatpush2.msra.mxu0 0.0
      %628 = vmatprep.subr.mxu0 0.0
      %629 = vmatpush2.msra.mxu0 0.0
      %630 = vmatprep.subr.mxu0 0.0
      %631 = vmatpush2.msra.mxu0 0.0
      %632 = vmatprep.subr.mxu0 0.0
      %633 = vmatpush2.msra.mxu0 0.0
      %634 = vmatprep.subr.mxu0 0.0
      %635 = vmatpush2.msra.mxu0 0.0
      %636 = vmatprep.mubr.f32.mxu0 0.0
      %637 = vmatmul.mubr.f32.gmra.mxu0 %v568
      %v638 = vpop.f32.mrf.mxu0
      %v639 = vadd.f32 0.0, %v638
      %v640 = vpop.f32.mrf.mxu0
      %641 = vdwg.mxu0
      %v642 = vadd.f32 %v548, %v639
      %644 = vrot.lane.b32.xlu0 %v382, 16
      %v645 = vpop.permute.xlu0 %644
      %v647 = vmul.f32 %v362, %v645
      %v648 = vmul.f32 %v365, %v645
      %s649 = scalar_lea.vmem %s2, 24
      %v650 = vld [vmem:[%s649] sm:$0xff]
      %653 = vrot.lane.b32.xlu0 %v647, 112
      %v654 = vpop.permute.xlu0 %653
      %655 = vrot.lane.b32.xlu0 %v648, 112
      %v656 = vpop.permute.xlu0 %655
      %vm657 = vcmask 916480
      %v658 = vsel %vm657, %v654, %v656
      %v660 = vsel %vm398, %v650, 0
      %v662 = vsel %vm402, %v658, 0
      %664 = vmatprep.subr.mxu0 0.0
      %665 = vmatpush1.msra.mxu0 0.0
      %666 = vmatprep.subr.mxu0 0.0
      %667 = vmatpush1.msra.mxu0 0.0
      %668 = vmatprep.subr.mxu0 0.0
      %669 = vmatpush1.msra.mxu0 0.0
      %670 = vmatprep.subr.mxu0 0.0
      %671 = vmatpush1.msra.mxu0 0.0
      %672 = vmatprep.subr.mxu0 0.0
      %673 = vmatpush1.msra.mxu0 0.0
      %674 = vmatprep.subr.mxu0 0.0
      %675 = vmatpush1.msra.mxu0 0.0
      %676 = vmatprep.subr.mxu0 0.0
      %677 = vmatpush1.msra.mxu0 0.0
      %678 = vmatprep.subr.mxu0 0.0
      %679 = vmatpush1.msra.mxu0 0.0
      %680 = vmatprep.subr.mxu0 0.0
      %681 = vmatpush1.msra.mxu0 0.0
      %682 = vmatprep.subr.mxu0 0.0
      %683 = vmatpush1.msra.mxu0 0.0
      %684 = vmatprep.subr.mxu0 0.0
      %685 = vmatpush1.msra.mxu0 0.0
      %686 = vmatprep.subr.mxu0 0.0
      %687 = vmatpush1.msra.mxu0 0.0
      %688 = vmatprep.subr.mxu0 0.0
      %689 = vmatpush1.msra.mxu0 0.0
      %690 = vmatprep.subr.mxu0 0.0
      %691 = vmatpush1.msra.mxu0 0.0
      %692 = vmatprep.subr.mxu0 0.0
      %693 = vmatpush1.msra.mxu0 0.0
      %694 = vmatprep.subr.mxu0 0.0
      %695 = vmatpush1.msra.mxu0 %v662
      %696 = vmatprep.subr.mxu0 0.0
      %697 = vmatpush2.msra.mxu0 0.0
      %698 = vmatprep.subr.mxu0 0.0
      %699 = vmatpush2.msra.mxu0 0.0
      %700 = vmatprep.subr.mxu0 0.0
      %701 = vmatpush2.msra.mxu0 0.0
      %702 = vmatprep.subr.mxu0 0.0
      %703 = vmatpush2.msra.mxu0 0.0
      %704 = vmatprep.subr.mxu0 0.0
      %705 = vmatpush2.msra.mxu0 0.0
      %706 = vmatprep.subr.mxu0 0.0
      %707 = vmatpush2.msra.mxu0 0.0
      %708 = vmatprep.subr.mxu0 0.0
      %709 = vmatpush2.msra.mxu0 0.0
      %710 = vmatprep.subr.mxu0 0.0
      %711 = vmatpush2.msra.mxu0 0.0
      %712 = vmatprep.subr.mxu0 0.0
      %713 = vmatpush2.msra.mxu0 0.0
      %714 = vmatprep.subr.mxu0 0.0
      %715 = vmatpush2.msra.mxu0 0.0
      %716 = vmatprep.subr.mxu0 0.0
      %717 = vmatpush2.msra.mxu0 0.0
      %718 = vmatprep.subr.mxu0 0.0
      %719 = vmatpush2.msra.mxu0 0.0
      %720 = vmatprep.subr.mxu0 0.0
      %721 = vmatpush2.msra.mxu0 0.0
      %722 = vmatprep.subr.mxu0 0.0
      %723 = vmatpush2.msra.mxu0 0.0
      %724 = vmatprep.subr.mxu0 0.0
      %725 = vmatpush2.msra.mxu0 0.0
      %726 = vmatprep.subr.mxu0 0.0
      %727 = vmatpush2.msra.mxu0 0.0
      %728 = vmatprep.mubr.f32.mxu0 0.0
      %729 = vmatmul.mubr.f32.gmra.mxu0 %v660
      %v730 = vpop.f32.mrf.mxu0
      %v731 = vadd.f32 0.0, %v730
      %v732 = vpop.f32.mrf.mxu0
      %733 = vdwg.mxu0
      %v734 = vadd.f32 %v642, %v731
      %s735 = scalar_lea.vmem %s2, 32
      %v736 = vld [vmem:[%s735] sm:$0xff]
      %737 = vrot.lane.b32.xlu0 %v362, 111
      %v738 = vpop.permute.xlu0 %737
      %739 = vrot.lane.b32.xlu0 %v365, 111
      %v740 = vpop.permute.xlu0 %739
      %vm741 = vcmask 908288
      %v742 = vsel %vm741, %v738, %v740
      %v744 = vsel %vm398, %v736, 0
      %v746 = vsel %vm402, %v742, 0
      %748 = vmatprep.subr.mxu0 0.0
      %749 = vmatpush1.msra.mxu0 0.0
      %750 = vmatprep.subr.mxu0 0.0
      %751 = vmatpush1.msra.mxu0 0.0
      %752 = vmatprep.subr.mxu0 0.0
      %753 = vmatpush1.msra.mxu0 0.0
      %754 = vmatprep.subr.mxu0 0.0
      %755 = vmatpush1.msra.mxu0 0.0
      %756 = vmatprep.subr.mxu0 0.0
      %757 = vmatpush1.msra.mxu0 0.0
      %758 = vmatprep.subr.mxu0 0.0
      %759 = vmatpush1.msra.mxu0 0.0
      %760 = vmatprep.subr.mxu0 0.0
      %761 = vmatpush1.msra.mxu0 0.0
      %762 = vmatprep.subr.mxu0 0.0
      %763 = vmatpush1.msra.mxu0 0.0
      %764 = vmatprep.subr.mxu0 0.0
      %765 = vmatpush1.msra.mxu0 0.0
      %766 = vmatprep.subr.mxu0 0.0
      %767 = vmatpush1.msra.mxu0 0.0
      %768 = vmatprep.subr.mxu0 0.0
      %769 = vmatpush1.msra.mxu0 0.0
      %770 = vmatprep.subr.mxu0 0.0
      %771 = vmatpush1.msra.mxu0 0.0
      %772 = vmatprep.subr.mxu0 0.0
      %773 = vmatpush1.msra.mxu0 0.0
      %774 = vmatprep.subr.mxu0 0.0
      %775 = vmatpush1.msra.mxu0 0.0
      %776 = vmatprep.subr.mxu0 0.0
      %777 = vmatpush1.msra.mxu0 0.0
      %778 = vmatprep.subr.mxu0 0.0
      %779 = vmatpush1.msra.mxu0 %v746
      %780 = vmatprep.subr.mxu0 0.0
      %781 = vmatpush2.msra.mxu0 0.0
      %782 = vmatprep.subr.mxu0 0.0
      %783 = vmatpush2.msra.mxu0 0.0
      %784 = vmatprep.subr.mxu0 0.0
      %785 = vmatpush2.msra.mxu0 0.0
      %786 = vmatprep.subr.mxu0 0.0
      %787 = vmatpush2.msra.mxu0 0.0
      %788 = vmatprep.subr.mxu0 0.0
      %789 = vmatpush2.msra.mxu0 0.0
      %790 = vmatprep.subr.mxu0 0.0
      %791 = vmatpush2.msra.mxu0 0.0
      %792 = vmatprep.subr.mxu0 0.0
      %793 = vmatpush2.msra.mxu0 0.0
      %794 = vmatprep.subr.mxu0 0.0
      %795 = vmatpush2.msra.mxu0 0.0
      %796 = vmatprep.subr.mxu0 0.0
      %797 = vmatpush2.msra.mxu0 0.0
      %798 = vmatprep.subr.mxu0 0.0
      %799 = vmatpush2.msra.mxu0 0.0
      %800 = vmatprep.subr.mxu0 0.0
      %801 = vmatpush2.msra.mxu0 0.0
      %802 = vmatprep.subr.mxu0 0.0
      %803 = vmatpush2.msra.mxu0 0.0
      %804 = vmatprep.subr.mxu0 0.0
      %805 = vmatpush2.msra.mxu0 0.0
      %806 = vmatprep.subr.mxu0 0.0
      %807 = vmatpush2.msra.mxu0 0.0
      %808 = vmatprep.subr.mxu0 0.0
      %809 = vmatpush2.msra.mxu0 0.0
      %810 = vmatprep.subr.mxu0 0.0
      %811 = vmatpush2.msra.mxu0 0.0
      %812 = vmatprep.mubr.f32.mxu0 0.0
      %813 = vmatmul.mubr.f32.gmra.mxu0 %v744
      %v814 = vpop.f32.mrf.mxu0
      %v815 = vadd.f32 0.0, %v814
      %v816 = vpop.f32.mrf.mxu0
      %817 = vdwg.mxu0
      %v818 = vadd.f32 %v734, %v815
      %819 = vrot.lane.b32.xlu0 %v385, 18
      %v820 = vpop.permute.xlu0 %819
      %v822 = vmul.f32 %v362, %v820
      %v823 = vmul.f32 %v365, %v820
      %s824 = scalar_lea.vmem %s2, 40
      %v825 = vld [vmem:[%s824] sm:$0xff]
      %828 = vrot.lane.b32.xlu0 %v822, 110
      %v829 = vpop.permute.xlu0 %828
      %830 = vrot.lane.b32.xlu0 %v823, 110
      %v831 = vpop.permute.xlu0 %830
      %vm832 = vcmask 900096
      %v833 = vsel %vm832, %v829, %v831
      %v835 = vsel %vm398, %v825, 0
      %v837 = vsel %vm402, %v833, 0
      %839 = vmatprep.subr.mxu0 0.0
      %840 = vmatpush1.msra.mxu0 0.0
      %841 = vmatprep.subr.mxu0 0.0
      %842 = vmatpush1.msra.mxu0 0.0
      %843 = vmatprep.subr.mxu0 0.0
      %844 = vmatpush1.msra.mxu0 0.0
      %845 = vmatprep.subr.mxu0 0.0
      %846 = vmatpush1.msra.mxu0 0.0
      %847 = vmatprep.subr.mxu0 0.0
      %848 = vmatpush1.msra.mxu0 0.0
      %849 = vmatprep.subr.mxu0 0.0
      %850 = vmatpush1.msra.mxu0 0.0
      %851 = vmatprep.subr.mxu0 0.0
      %852 = vmatpush1.msra.mxu0 0.0
      %853 = vmatprep.subr.mxu0 0.0
      %854 = vmatpush1.msra.mxu0 0.0
      %855 = vmatprep.subr.mxu0 0.0
      %856 = vmatpush1.msra.mxu0 0.0
      %857 = vmatprep.subr.mxu0 0.0
      %858 = vmatpush1.msra.mxu0 0.0
      %859 = vmatprep.subr.mxu0 0.0
      %860 = vmatpush1.msra.mxu0 0.0
      %861 = vmatprep.subr.mxu0 0.0
      %862 = vmatpush1.msra.mxu0 0.0
      %863 = vmatprep.subr.mxu0 0.0
      %864 = vmatpush1.msra.mxu0 0.0
      %865 = vmatprep.subr.mxu0 0.0
      %866 = vmatpush1.msra.mxu0 0.0
      %867 = vmatprep.subr.mxu0 0.0
      %868 = vmatpush1.msra.mxu0 0.0
      %869 = vmatprep.subr.mxu0 0.0
      %870 = vmatpush1.msra.mxu0 %v837
      %871 = vmatprep.subr.mxu0 0.0
      %872 = vmatpush2.msra.mxu0 0.0
      %873 = vmatprep.subr.mxu0 0.0
      %874 = vmatpush2.msra.mxu0 0.0
      %875 = vmatprep.subr.mxu0 0.0
      %876 = vmatpush2.msra.mxu0 0.0
      %877 = vmatprep.subr.mxu0 0.0
      %878 = vmatpush2.msra.mxu0 0.0
      %879 = vmatprep.subr.mxu0 0.0
      %880 = vmatpush2.msra.mxu0 0.0
      %881 = vmatprep.subr.mxu0 0.0
      %882 = vmatpush2.msra.mxu0 0.0
      %883 = vmatprep.subr.mxu0 0.0
      %884 = vmatpush2.msra.mxu0 0.0
      %885 = vmatprep.subr.mxu0 0.0
      %886 = vmatpush2.msra.mxu0 0.0
      %887 = vmatprep.subr.mxu0 0.0
      %888 = vmatpush2.msra.mxu0 0.0
      %889 = vmatprep.subr.mxu0 0.0
      %890 = vmatpush2.msra.mxu0 0.0
      %891 = vmatprep.subr.mxu0 0.0
      %892 = vmatpush2.msra.mxu0 0.0
      %893 = vmatprep.subr.mxu0 0.0
      %894 = vmatpush2.msra.mxu0 0.0
      %895 = vmatprep.subr.mxu0 0.0
      %896 = vmatpush2.msra.mxu0 0.0
      %897 = vmatprep.subr.mxu0 0.0
      %898 = vmatpush2.msra.mxu0 0.0
      %899 = vmatprep.subr.mxu0 0.0
      %900 = vmatpush2.msra.mxu0 0.0
      %901 = vmatprep.subr.mxu0 0.0
      %902 = vmatpush2.msra.mxu0 0.0
      %903 = vmatprep.mubr.f32.mxu0 0.0
      %904 = vmatmul.mubr.f32.gmra.mxu0 %v835
      %v905 = vpop.f32.mrf.mxu0
      %v906 = vadd.f32 0.0, %v905
      %v907 = vpop.f32.mrf.mxu0
      %908 = vdwg.mxu0
      %v909 = vadd.f32 %v818, %v906
      %910 = vrot.lane.b32.xlu0 %v382, 32
      %v911 = vpop.permute.xlu0 %910
      %v913 = vmul.f32 %v362, %v911
      %v914 = vmul.f32 %v365, %v911
      %s915 = scalar_lea.vmem %s2, 48
      %v916 = vld [vmem:[%s915] sm:$0xff]
      %919 = vrot.lane.b32.xlu0 %v913, 96
      %v920 = vpop.permute.xlu0 %919
      %921 = vrot.lane.b32.xlu0 %v914, 96
      %v922 = vpop.permute.xlu0 %921
      %vm923 = vcmask 785408
      %v924 = vsel %vm923, %v920, %v922
      %v926 = vsel %vm398, %v916, 0
      %v928 = vsel %vm402, %v924, 0
      %930 = vmatprep.subr.mxu0 0.0
      %931 = vmatpush1.msra.mxu0 0.0
      %932 = vmatprep.subr.mxu0 0.0
      %933 = vmatpush1.msra.mxu0 0.0
      %934 = vmatprep.subr.mxu0 0.0
      %935 = vmatpush1.msra.mxu0 0.0
      %936 = vmatprep.subr.mxu0 0.0
      %937 = vmatpush1.msra.mxu0 0.0
      %938 = vmatprep.subr.mxu0 0.0
      %939 = vmatpush1.msra.mxu0 0.0
      %940 = vmatprep.subr.mxu0 0.0
      %941 = vmatpush1.msra.mxu0 0.0
      %942 = vmatprep.subr.mxu0 0.0
      %943 = vmatpush1.msra.mxu0 0.0
      %944 = vmatprep.subr.mxu0 0.0
      %945 = vmatpush1.msra.mxu0 0.0
      %946 = vmatprep.subr.mxu0 0.0
      %947 = vmatpush1.msra.mxu0 0.0
      %948 = vmatprep.subr.mxu0 0.0
      %949 = vmatpush1.msra.mxu0 0.0
      %950 = vmatprep.subr.mxu0 0.0
      %951 = vmatpush1.msra.mxu0 0.0
      %952 = vmatprep.subr.mxu0 0.0
      %953 = vmatpush1.msra.mxu0 0.0
      %954 = vmatprep.subr.mxu0 0.0
      %955 = vmatpush1.msra.mxu0 0.0
      %956 = vmatprep.subr.mxu0 0.0
      %957 = vmatpush1.msra.mxu0 0.0
      %958 = vmatprep.subr.mxu0 0.0
      %959 = vmatpush1.msra.mxu0 0.0
      %960 = vmatprep.subr.mxu0 0.0
      %961 = vmatpush1.msra.mxu0 %v928
      %962 = vmatprep.subr.mxu0 0.0
      %963 = vmatpush2.msra.mxu0 0.0
      %964 = vmatprep.subr.mxu0 0.0
      %965 = vmatpush2.msra.mxu0 0.0
      %966 = vmatprep.subr.mxu0 0.0
      %967 = vmatpush2.msra.mxu0 0.0
      %968 = vmatprep.subr.mxu0 0.0
      %969 = vmatpush2.msra.mxu0 0.0
      %970 = vmatprep.subr.mxu0 0.0
      %971 = vmatpush2.msra.mxu0 0.0
      %972 = vmatprep.subr.mxu0 0.0
      %973 = vmatpush2.msra.mxu0 0.0
      %974 = vmatprep.subr.mxu0 0.0
      %975 = vmatpush2.msra.mxu0 0.0
      %976 = vmatprep.subr.mxu0 0.0
      %977 = vmatpush2.msra.mxu0 0.0
      %978 = vmatprep.subr.mxu0 0.0
      %979 = vmatpush2.msra.mxu0 0.0
      %980 = vmatprep.subr.mxu0 0.0
      %981 = vmatpush2.msra.mxu0 0.0
      %982 = vmatprep.subr.mxu0 0.0
      %983 = vmatpush2.msra.mxu0 0.0
      %984 = vmatprep.subr.mxu0 0.0
      %985 = vmatpush2.msra.mxu0 0.0
      %986 = vmatprep.subr.mxu0 0.0
      %987 = vmatpush2.msra.mxu0 0.0
      %988 = vmatprep.subr.mxu0 0.0
      %989 = vmatpush2.msra.mxu0 0.0
      %990 = vmatprep.subr.mxu0 0.0
      %991 = vmatpush2.msra.mxu0 0.0
      %992 = vmatprep.subr.mxu0 0.0
      %993 = vmatpush2.msra.mxu0 0.0
      %994 = vmatprep.mubr.f32.mxu0 0.0
      %995 = vmatmul.mubr.f32.gmra.mxu0 %v926
      %v996 = vpop.f32.mrf.mxu0
      %v997 = vadd.f32 0.0, %v996
      %v998 = vpop.f32.mrf.mxu0
      %999 = vdwg.mxu0
      %v1000 = vadd.f32 %v909, %v997
      %s1001 = scalar_lea.vmem %s2, 56
      %v1002 = vld [vmem:[%s1001] sm:$0xff]
      %1003 = vrot.lane.b32.xlu0 %v362, 95
      %v1004 = vpop.permute.xlu0 %1003
      %1005 = vrot.lane.b32.xlu0 %v365, 95
      %v1006 = vpop.permute.xlu0 %1005
      %vm1007 = vcmask 777216
      %v1008 = vsel %vm1007, %v1004, %v1006
      %v1010 = vsel %vm398, %v1002, 0
      %v1012 = vsel %vm402, %v1008, 0
      %1014 = vmatprep.subr.mxu0 0.0
      %1015 = vmatpush1.msra.mxu0 0.0
      %1016 = vmatprep.subr.mxu0 0.0
      %1017 = vmatpush1.msra.mxu0 0.0
      %1018 = vmatprep.subr.mxu0 0.0
      %1019 = vmatpush1.msra.mxu0 0.0
      %1020 = vmatprep.subr.mxu0 0.0
      %1021 = vmatpush1.msra.mxu0 0.0
      %1022 = vmatprep.subr.mxu0 0.0
      %1023 = vmatpush1.msra.mxu0 0.0
      %1024 = vmatprep.subr.mxu0 0.0
      %1025 = vmatpush1.msra.mxu0 0.0
      %1026 = vmatprep.subr.mxu0 0.0
      %1027 = vmatpush1.msra.mxu0 0.0
      %1028 = vmatprep.subr.mxu0 0.0
      %1029 = vmatpush1.msra.mxu0 0.0
      %1030 = vmatprep.subr.mxu0 0.0
      %1031 = vmatpush1.msra.mxu0 0.0
      %1032 = vmatprep.subr.mxu0 0.0
      %1033 = vmatpush1.msra.mxu0 0.0
      %1034 = vmatprep.subr.mxu0 0.0
      %1035 = vmatpush1.msra.mxu0 0.0
      %1036 = vmatprep.subr.mxu0 0.0
      %1037 = vmatpush1.msra.mxu0 0.0
      %1038 = vmatprep.subr.mxu0 0.0
      %1039 = vmatpush1.msra.mxu0 0.0
      %1040 = vmatprep.subr.mxu0 0.0
      %1041 = vmatpush1.msra.mxu0 0.0
      %1042 = vmatprep.subr.mxu0 0.0
      %1043 = vmatpush1.msra.mxu0 0.0
      %1044 = vmatprep.subr.mxu0 0.0
      %1045 = vmatpush1.msra.mxu0 %v1012
      %1046 = vmatprep.subr.mxu0 0.0
      %1047 = vmatpush2.msra.mxu0 0.0
      %1048 = vmatprep.subr.mxu0 0.0
      %1049 = vmatpush2.msra.mxu0 0.0
      %1050 = vmatprep.subr.mxu0 0.0
      %1051 = vmatpush2.msra.mxu0 0.0
      %1052 = vmatprep.subr.mxu0 0.0
      %1053 = vmatpush2.msra.mxu0 0.0
      %1054 = vmatprep.subr.mxu0 0.0
      %1055 = vmatpush2.msra.mxu0 0.0
      %1056 = vmatprep.subr.mxu0 0.0
      %1057 = vmatpush2.msra.mxu0 0.0
      %1058 = vmatprep.subr.mxu0 0.0
      %1059 = vmatpush2.msra.mxu0 0.0
      %1060 = vmatprep.subr.mxu0 0.0
      %1061 = vmatpush2.msra.mxu0 0.0
      %1062 = vmatprep.subr.mxu0 0.0
      %1063 = vmatpush2.msra.mxu0 0.0
      %1064 = vmatprep.subr.mxu0 0.0
      %1065 = vmatpush2.msra.mxu0 0.0
      %1066 = vmatprep.subr.mxu0 0.0
      %1067 = vmatpush2.msra.mxu0 0.0
      %1068 = vmatprep.subr.mxu0 0.0
      %1069 = vmatpush2.msra.mxu0 0.0
      %1070 = vmatprep.subr.mxu0 0.0
      %1071 = vmatpush2.msra.mxu0 0.0
      %1072 = vmatprep.subr.mxu0 0.0
      %1073 = vmatpush2.msra.mxu0 0.0
      %1074 = vmatprep.subr.mxu0 0.0
      %1075 = vmatpush2.msra.mxu0 0.0
      %1076 = vmatprep.subr.mxu0 0.0
      %1077 = vmatpush2.msra.mxu0 0.0
      %1078 = vmatprep.mubr.f32.mxu0 0.0
      %1079 = vmatmul.mubr.f32.gmra.mxu0 %v1010
      %v1080 = vpop.f32.mrf.mxu0
      %v1081 = vadd.f32 0.0, %v1080
      %v1082 = vpop.f32.mrf.mxu0
      %1083 = vdwg.mxu0
      %v1084 = vadd.f32 %v1000, %v1081
      %1085 = vrot.lane.b32.xlu0 %v385, 34
      %v1086 = vpop.permute.xlu0 %1085
      %v1088 = vmul.f32 %v362, %v1086
      %v1089 = vmul.f32 %v365, %v1086
      %s1090 = scalar_lea.vmem %s2, 64
      %v1091 = vld [vmem:[%s1090] sm:$0xff]
      %1094 = vrot.lane.b32.xlu0 %v1088, 94
      %v1095 = vpop.permute.xlu0 %1094
      %1096 = vrot.lane.b32.xlu0 %v1089, 94
      %v1097 = vpop.permute.xlu0 %1096
      %vm1098 = vcmask 769024
      %v1099 = vsel %vm1098, %v1095, %v1097
      %v1101 = vsel %vm398, %v1091, 0
      %v1103 = vsel %vm402, %v1099, 0
      %1105 = vmatprep.subr.mxu0 0.0
      %1106 = vmatpush1.msra.mxu0 0.0
      %1107 = vmatprep.subr.mxu0 0.0
      %1108 = vmatpush1.msra.mxu0 0.0
      %1109 = vmatprep.subr.mxu0 0.0
      %1110 = vmatpush1.msra.mxu0 0.0
      %1111 = vmatprep.subr.mxu0 0.0
      %1112 = vmatpush1.msra.mxu0 0.0
      %1113 = vmatprep.subr.mxu0 0.0
      %1114 = vmatpush1.msra.mxu0 0.0
      %1115 = vmatprep.subr.mxu0 0.0
      %1116 = vmatpush1.msra.mxu0 0.0
      %1117 = vmatprep.subr.mxu0 0.0
      %1118 = vmatpush1.msra.mxu0 0.0
      %1119 = vmatprep.subr.mxu0 0.0
      %1120 = vmatpush1.msra.mxu0 0.0
      %1121 = vmatprep.subr.mxu0 0.0
      %1122 = vmatpush1.msra.mxu0 0.0
      %1123 = vmatprep.subr.mxu0 0.0
      %1124 = vmatpush1.msra.mxu0 0.0
      %1125 = vmatprep.subr.mxu0 0.0
      %1126 = vmatpush1.msra.mxu0 0.0
      %1127 = vmatprep.subr.mxu0 0.0
      %1128 = vmatpush1.msra.mxu0 0.0
      %1129 = vmatprep.subr.mxu0 0.0
      %1130 = vmatpush1.msra.mxu0 0.0
      %1131 = vmatprep.subr.mxu0 0.0
      %1132 = vmatpush1.msra.mxu0 0.0
      %1133 = vmatprep.subr.mxu0 0.0
      %1134 = vmatpush1.msra.mxu0 0.0
      %1135 = vmatprep.subr.mxu0 0.0
      %1136 = vmatpush1.msra.mxu0 %v1103
      %1137 = vmatprep.subr.mxu0 0.0
      %1138 = vmatpush2.msra.mxu0 0.0
      %1139 = vmatprep.subr.mxu0 0.0
      %1140 = vmatpush2.msra.mxu0 0.0
      %1141 = vmatprep.subr.mxu0 0.0
      %1142 = vmatpush2.msra.mxu0 0.0
      %1143 = vmatprep.subr.mxu0 0.0
      %1144 = vmatpush2.msra.mxu0 0.0
      %1145 = vmatprep.subr.mxu0 0.0
      %1146 = vmatpush2.msra.mxu0 0.0
      %1147 = vmatprep.subr.mxu0 0.0
      %1148 = vmatpush2.msra.mxu0 0.0
      %1149 = vmatprep.subr.mxu0 0.0
      %1150 = vmatpush2.msra.mxu0 0.0
      %1151 = vmatprep.subr.mxu0 0.0
      %1152 = vmatpush2.msra.mxu0 0.0
      %1153 = vmatprep.subr.mxu0 0.0
      %1154 = vmatpush2.msra.mxu0 0.0
      %1155 = vmatprep.subr.mxu0 0.0
      %1156 = vmatpush2.msra.mxu0 0.0
      %1157 = vmatprep.subr.mxu0 0.0
      %1158 = vmatpush2.msra.mxu0 0.0
      %1159 = vmatprep.subr.mxu0 0.0
      %1160 = vmatpush2.msra.mxu0 0.0
      %1161 = vmatprep.subr.mxu0 0.0
      %1162 = vmatpush2.msra.mxu0 0.0
      %1163 = vmatprep.subr.mxu0 0.0
      %1164 = vmatpush2.msra.mxu0 0.0
      %1165 = vmatprep.subr.mxu0 0.0
      %1166 = vmatpush2.msra.mxu0 0.0
      %1167 = vmatprep.subr.mxu0 0.0
      %1168 = vmatpush2.msra.mxu0 0.0
      %1169 = vmatprep.mubr.f32.mxu0 0.0
      %1170 = vmatmul.mubr.f32.gmra.mxu0 %v1101
      %v1171 = vpop.f32.mrf.mxu0
      %v1172 = vadd.f32 0.0, %v1171
      %v1173 = vpop.f32.mrf.mxu0
      %1174 = vdwg.mxu0
      %v1175 = vadd.f32 %v1084, %v1172
      %1176 = vst [vmem:[%s326] sm:$0xff] %v1175
      %1177 = vadd.xlane.f32.xlu0 %v1175
      %v1178 = vpop.xlane.xlu0 %1177
      %v1179 = vmul.f32 %v1175, %v1175
      %1180 = vadd.xlane.f32.xlu0 %v1179
      %v1181 = vpop.xlane.xlu0 %1180
      %v1182 = vsel %vm359, %v1178, %v1181
      %vm1183 = vcmask 15360
      %1184 = vst.msk [vmem:[%s334] sm:$0xff] %vm1183, %v1182
      %p1185 = scmp.lt.s32.totalorder %s22, 1
      %s1186 = scalar_select %p1185, %s22, 1
      %p1187 = scmp.lt.s32.totalorder %s23, 1
      %s1188 = scalar_select %p1187, %s23, 1
      %s1189 = smul.addr %s1186, 2
      %s1190 = sadd.s32 %s1188, %s1189
      %s1191 = smul.addr %s1190, 8
      %s1192 = scalar_lea.vmem %s5, %s1191
      %p1193 = scmp.lt.s32.totalorder %s22, 1
      %s1194 = scalar_select %p1193, %s22, 1
      %p1195 = scmp.lt.s32.totalorder %s23, 1
      %s1196 = scalar_select %p1195, %s23, 1
      %s1197 = smul.addr %s1194, 2
      %s1198 = sadd.s32 %s1196, %s1197
      %s1199 = smul.addr %s1198, 8
      %s1200 = scalar_lea.vmem %s6, %s1199
      // Predicated region
      $region41: #{_double_conv_impl.3} parent=39 // pred_check
        %p1201 = pneg %p169
      $region42: #{_double_conv_impl.3} parent=39 // pred_check_branch
        %1203 = sbr.rel (%p1201) target = $region44
      $region43: #{_double_conv_impl.3} parent=39 // pred_region
        _
      $region44: #{_double_conv_impl.3} parent=39 // pred_fallthru
        _
      // Predicated region
      $region45: #{_double_conv_impl.3} parent=39 // pred_check
        %p1204 = pneg %p197
      $region46: #{_double_conv_impl.3} parent=39 // pred_check_branch
        %1206 = sbr.rel (%p1204) target = $region48
      $region47: #{_double_conv_impl.3} parent=39 // pred_region
        _
      $region48: #{_double_conv_impl.3} parent=39 // pred_fallthru
        _
    $region40: #{_double_conv_impl.3} parent=5 // pred_fallthru
      _
    %p1207 = scmp.le.s32.totalorder 2, %s13
    // Predicated region
    $region49: #{_double_conv_impl.3} parent=5 // pred_check
      %p1208 = pneg %p1207
    $region50: #{_double_conv_impl.3} parent=5 // pred_check_branch
      %1210 = sbr.rel (%p1208) target = $region52
    $region51: #{_double_conv_impl.3} parent=5 // pred_region
      %s1211 = ssub.s32 %s13, 2
      // Predicated region
      $region53: #{_double_conv_impl.3} parent=51 // pred_check
        %p1212 = pneg %p175
      $region54: #{_double_conv_impl.3} parent=51 // pred_check_branch
        %1214 = sbr.rel (%p1212) target = $region56
      $region55: #{_double_conv_impl.3} parent=51 // pred_region
        %p1215 = scmp.lt.s32.totalorder %s24, 1
        %s1216 = scalar_select %p1215, %s24, 1
        %p1217 = scmp.lt.s32.totalorder %s25, 1
        %s1218 = scalar_select %p1217, %s25, 1
        %s1219 = smul.addr %s1216, 2
        %s1220 = sadd.s32 %s1218, %s1219
        %s1221 = smul.addr %s1220, 8
        %s1222 = scalar_lea.vmem %s5, %s1221
      $region56: #{_double_conv_impl.3} parent=51 // pred_fallthru
        _
      // Predicated region
      $region57: #{_double_conv_impl.3} parent=51 // pred_check
        %p1223 = pneg %p203
      $region58: #{_double_conv_impl.3} parent=51 // pred_check_branch
        %1225 = sbr.rel (%p1223) target = $region60
      $region59: #{_double_conv_impl.3} parent=51 // pred_region
        %p1226 = scmp.lt.s32.totalorder %s24, 1
        %s1227 = scalar_select %p1226, %s24, 1
        %p1228 = scmp.lt.s32.totalorder %s25, 1
        %s1229 = scalar_select %p1228, %s25, 1
        %s1230 = smul.addr %s1227, 2
        %s1231 = sadd.s32 %s1229, %s1230
        %s1232 = smul.addr %s1231, 8
        %s1233 = scalar_lea.vmem %s6, %s1232
      $region60: #{_double_conv_impl.3} parent=51 // pred_fallthru
        _
    $region52: #{_double_conv_impl.3} parent=5 // pred_fallthru
      _
  $region6: #{_double_conv_impl.3} parent=0 // loop_footer
    %s17 = sadd.s32 1, %s13
  $region7: #{_double_conv_impl.3} parent=0 // loop_footer_branch
    %12 = sbr.rel target = $region3
  $region8: #{_double_conv_impl.3} parent=0 // loop_exit
    _

// kernel: _double_conv_impl.4
$region0: #{_double_conv_impl.4}
  #allocation0 [shape = 'u32[]', space=smem, size = 0x4, offset = 0x4, fixed_abs, tag = 'smem constant byte address 0x4 - core index']
  #allocation1 [shape = 'u32[144,128]{1,0:T(1,128)}', space=vmem, size = 0x12000, scoped, tag = 'internal scratch']
  %s0 = inlined_call_operand.vmem [shape: f32[2,8,256], index: 0, kind: input, shape index: {}]
  %s1 = inlined_call_operand.vmem [shape: f32[2,2,8,32], index: 1, kind: input, shape index: {}]
  %s2 = inlined_call_operand.vmem [shape: f32[9,8,8], index: 2, kind: input, shape index: {}]
  %s3 = inlined_call_operand.vmem [shape: f32[8,1], index: 3, kind: input, shape index: {}]
  %s4 = inlined_call_operand.vmem [shape: f32[8,1], index: 4, kind: input, shape index: {}]
  %s5 = inlined_call_operand.vmem [shape: f32[2,8,256], index: 5, kind: output, shape index: {0}]
  %s6 = inlined_call_operand.vmem [shape: f32[2,2,8,2], index: 6, kind: output, shape index: {1}]
  %7 = xla_tuple %s5, %s6
  %s8 = sld [smem:[#allocation0]]
  $region61: #{_double_conv_impl.4} parent=0
    _
  %s10 = ssub.s32 1, %s8
  %s11 = scalar_select 0, %s10, %s8
  loop: start=0, step=1, limit=6
  $region2: #{_double_conv_impl.4} parent=0 // loop_pre_header
    _
  $region3: #{_double_conv_impl.4} parent=0 // loop_header
    %s13 = sphi 0, %s17
    %p14 = scmp.ge.s32.totalorder %s13, 6
    %s20 = sphi 0, %s32
    %s21 = sphi 0, %s28
    %s22 = sphi 0, %s20
    %s23 = sphi 0, %s21
    %s24 = sphi 0, %s22
    %s25 = sphi 0, %s23
    %s37 = sphi 0, %s39
    %s40 = sphi 0, %s37
    %s41 = sphi 0, %s40
    %s57 = sphi 0, %s41
    %s65 = sphi 0, %s67
    %s68 = sphi 0, %s65
    %s69 = sphi 0, %s68
    %s85 = sphi 0, %s69
    %s89 = sphi 0, %s89
    %s91 = sphi 0, %s89
    %s92 = sphi 0, %s91
    %s106 = sphi 0, %s92
    %s110 = sphi 0, %s110
    %s112 = sphi 0, %s110
    %s113 = sphi 0, %s112
    %s127 = sphi 0, %s113
    %s131 = sphi 0, %s131
    %s133 = sphi 0, %s131
    %s134 = sphi 0, %s133
    %s148 = sphi 0, %s134
    %s156 = sphi 0, %s158
    %s159 = sphi 0, %s156
    %s160 = sphi 0, %s159
    %s176 = sphi 0, %s160
    %s184 = sphi 0, %s186
    %s187 = sphi 0, %s184
    %s188 = sphi 0, %s187
    %s204 = sphi 0, %s188
  $region4: #{_double_conv_impl.4} parent=0 // loop_header_branch
    %16 = sbr.rel (%p14) target = $region8
  $region5: #{_double_conv_impl.4} parent=0 // loop_body
    %s18 = ssub.s32 %s13, 1
    %s19 = ssub.s32 %s13, 2
    %s26 = sadd.s32 1, %s21
    %p27 = scmp.ge.s32.totalorder %s26, 2
    %s28 = scalar_select %p27, 0, %s26
    %s29 = sadd.s32 1, %s20
    %s30 = scalar_select %p27, %s29, %s20
    %p31 = scmp.ge.s32.totalorder %s30, 2
    %s32 = scalar_select %p31, 0, %s30
    %s33 = ssub.s32 %s20, %s32
    %s34 = ssub.s32 %s21, %s28
    %s35 = sor.u32 %s33, %s34
    %p36 = scmp.eq.s32.totalorder %s35, 0
    %s38 = sadd.s32 %s37, 1
    %s39 = scalar_select %p36, %s37, %s38
    %p42 = pneg %p36
    %p43 = scmp.eq.s32.totalorder %s13, 3
    %p44 = por %p42, %p43
    %p45 = scmp.ne.s32.totalorder %s37, %s40
    %p46 = scmp.eq.s32.totalorder %s13, 0
    %p47 = por %p45, %p46
    %p48 = scmp.ne.s32.totalorder %s37, %s40
    %p49 = scmp.eq.s32.totalorder %s18, 3
    %p50 = por %p48, %p49
    %p51 = scmp.ne.s32.totalorder %s40, %s41
    %p52 = scmp.eq.s32.totalorder %s18, 0
    %p53 = por %p51, %p52
    %p54 = scmp.ne.s32.totalorder %s40, %s41
    %p55 = scmp.eq.s32.totalorder %s19, 3
    %p56 = por %p54, %p55
    %p58 = scmp.ne.s32.totalorder %s41, %s57
    %p59 = scmp.eq.s32.totalorder %s19, 0
    %p60 = por %p58, %p59
    %s61 = ssub.s32 %s20, %s32
    %s62 = ssub.s32 %s21, %s28
    %s63 = sor.u32 %s61, %s62
    %p64 = scmp.eq.s32.totalorder %s63, 0
    %s66 = sadd.s32 %s65, 1
    %s67 = scalar_select %p64, %s65, %s66
    %p70 = pneg %p64
    %p71 = scmp.eq.s32.totalorder %s13, 3
    %p72 = por %p70, %p71
    %p73 = scmp.ne.s32.totalorder %s65, %s68
    %p74 = scmp.eq.s32.totalorder %s13, 0
    %p75 = por %p73, %p74
    %p76 = scmp.ne.s32.totalorder %s65, %s68
    %p77 = scmp.eq.s32.totalorder %s18, 3
    %p78 = por %p76, %p77
    %p79 = scmp.ne.s32.totalorder %s68, %s69
    %p80 = scmp.eq.s32.totalorder %s18, 0
    %p81 = por %p79, %p80
    %p82 = scmp.ne.s32.totalorder %s68, %s69
    %p83 = scmp.eq.s32.totalorder %s19, 3
    %p84 = por %p82, %p83
    %p86 = scmp.ne.s32.totalorder %s69, %s85
    %p87 = scmp.eq.s32.totalorder %s19, 0
    %p88 = por %p86, %p87
    %s90 = sadd.s32 %s89, 1
    %p93 = scmp.eq.s32.totalorder %s13, 3
    %p94 = scmp.ne.s32.totalorder %s89, %s91
    %p95 = scmp.eq.s32.totalorder %s13, 0
    %p96 = por %p94, %p95
    %p97 = scmp.ne.s32.totalorder %s89, %s91
    %p98 = scmp.eq.s32.totalorder %s18, 3
    %p99 = por %p97, %p98
    %p100 = scmp.ne.s32.totalorder %s91, %s92
    %p101 = scmp.eq.s32.totalorder %s18, 0
    %p102 = por %p100, %p101
    %p103 = scmp.ne.s32.totalorder %s91, %s92
    %p104 = scmp.eq.s32.totalorder %s19, 3
    %p105 = por %p103, %p104
    %p107 = scmp.ne.s32.totalorder %s92, %s106
    %p108 = scmp.eq.s32.totalorder %s19, 0
    %p109 = por %p107, %p108
    %s111 = sadd.s32 %s110, 1
    %p114 = scmp.eq.s32.totalorder %s13, 3
    %p115 = scmp.ne.s32.totalorder %s110, %s112
    %p116 = scmp.eq.s32.totalorder %s13, 0
    %p117 = por %p115, %p116
    %p118 = scmp.ne.s32.totalorder %s110, %s112
    %p119 = scmp.eq.s32.totalorder %s18, 3
    %p120 = por %p118, %p119
    %p121 = scmp.ne.s32.totalorder %s112, %s113
    %p122 = scmp.eq.s32.totalorder %s18, 0
    %p123 = por %p121, %p122
    %p124 = scmp.ne.s32.totalorder %s112, %s113
    %p125 = scmp.eq.s32.totalorder %s19, 3
    %p126 = por %p124, %p125
    %p128 = scmp.ne.s32.totalorder %s113, %s127
    %p129 = scmp.eq.s32.totalorder %s19, 0
    %p130 = por %p128, %p129
    %s132 = sadd.s32 %s131, 1
    %p135 = scmp.eq.s32.totalorder %s13, 3
    %p136 = scmp.ne.s32.totalorder %s131, %s133
    %p137 = scmp.eq.s32.totalorder %s13, 0
    %p138 = por %p136, %p137
    %p139 = scmp.ne.s32.totalorder %s131, %s133
    %p140 = scmp.eq.s32.totalorder %s18, 3
    %p141 = por %p139, %p140
    %p142 = scmp.ne.s32.totalorder %s133, %s134
    %p143 = scmp.eq.s32.totalorder %s18, 0
    %p144 = por %p142, %p143
    %p145 = scmp.ne.s32.totalorder %s133, %s134
    %p146 = scmp.eq.s32.totalorder %s19, 3
    %p147 = por %p145, %p146
    %p149 = scmp.ne.s32.totalorder %s134, %s148
    %p150 = scmp.eq.s32.totalorder %s19, 0
    %p151 = por %p149, %p150
    %s152 = ssub.s32 %s20, %s32
    %s153 = ssub.s32 %s21, %s28
    %s154 = sor.u32 %s152, %s153
    %p155 = scmp.eq.s32.totalorder %s154, 0
    %s157 = sadd.s32 %s156, 1
    %s158 = scalar_select %p155, %s156, %s157
    %p161 = pneg %p155
    %p162 = scmp.eq.s32.totalorder %s13, 3
    %p163 = por %p161, %p162
    %p164 = scmp.ne.s32.totalorder %s156, %s159
    %p165 = scmp.eq.s32.totalorder %s13, 0
    %p166 = por %p164, %p165
    %p167 = scmp.ne.s32.totalorder %s156, %s159
    %p168 = scmp.eq.s32.totalorder %s18, 3
    %p169 = por %p167, %p168
    %p170 = scmp.ne.s32.totalorder %s159, %s160
    %p171 = scmp.eq.s32.totalorder %s18, 0
    %p172 = por %p170, %p171
    %p173 = scmp.ne.s32.totalorder %s159, %s160
    %p174 = scmp.eq.s32.totalorder %s19, 3
    %p175 = por %p173, %p174
    %p177 = scmp.ne.s32.totalorder %s160, %s176
    %p178 = scmp.eq.s32.totalorder %s19, 0
    %p179 = por %p177, %p178
    %s180 = ssub.s32 %s20, %s32
    %s181 = ssub.s32 %s21, %s28
    %s182 = sor.u32 %s180, %s181
    %p183 = scmp.eq.s32.totalorder %s182, 0
    %s185 = sadd.s32 %s184, 1
    %s186 = scalar_select %p183, %s184, %s185
    %p189 = pneg %p183
    %p190 = scmp.eq.s32.totalorder %s13, 3
    %p191 = por %p189, %p190
    %p192 = scmp.ne.s32.totalorder %s184, %s187
    %p193 = scmp.eq.s32.totalorder %s13, 0
    %p194 = por %p192, %p193
    %p195 = scmp.ne.s32.totalorder %s184, %s187
    %p196 = scmp.eq.s32.totalorder %s18, 3
    %p197 = por %p195, %p196
    %p198 = scmp.ne.s32.totalorder %s187, %s188
    %p199 = scmp.eq.s32.totalorder %s18, 0
    %p200 = por %p198, %p199
    %p201 = scmp.ne.s32.totalorder %s187, %s188
    %p202 = scmp.eq.s32.totalorder %s19, 3
    %p203 = por %p201, %p202
    %p205 = scmp.ne.s32.totalorder %s188, %s204
    %p206 = scmp.eq.s32.totalorder %s19, 0
    %p207 = por %p205, %p206
    %p208 = scmp.le.s32.totalorder 1, %s13
    %p209 = scmp.lt.s32.totalorder %s13, 5
    %p210 = pnand %p208, %p209
    %p211 = pneg %p210
    // Predicated region
    $region9: #{_double_conv_impl.4} parent=5 // pred_check
      _
    $region10: #{_double_conv_impl.4} parent=5 // pred_check_branch
      %213 = sbr.rel (%p210) target = $region12
    $region11: #{_double_conv_impl.4} parent=5 // pred_region
      %s214 = ssub.s32 %s13, 1
      // Predicated region
      $region13: #{_double_conv_impl.4} parent=11 // pred_check
        %p215 = pneg %p102
      $region14: #{_double_conv_impl.4} parent=11 // pred_check_branch
        %217 = sbr.rel (%p215) target = $region16
      $region15: #{_double_conv_impl.4} parent=11 // pred_region
        _
      $region16: #{_double_conv_impl.4} parent=11 // pred_fallthru
        _
      // Predicated region
      $region17: #{_double_conv_impl.4} parent=11 // pred_check
        %p218 = pneg %p123
      $region18: #{_double_conv_impl.4} parent=11 // pred_check_branch
        %220 = sbr.rel (%p218) target = $region20
      $region19: #{_double_conv_impl.4} parent=11 // pred_region
        _
      $region20: #{_double_conv_impl.4} parent=11 // pred_fallthru
        _
      // Predicated region
      $region21: #{_double_conv_impl.4} parent=11 // pred_check
        %p221 = pneg %p144
      $region22: #{_double_conv_impl.4} parent=11 // pred_check_branch
        %223 = sbr.rel (%p221) target = $region24
      $region23: #{_double_conv_impl.4} parent=11 // pred_region
        _
      $region24: #{_double_conv_impl.4} parent=11 // pred_fallthru
        _
    $region12: #{_double_conv_impl.4} parent=5 // pred_fallthru
      _
    %p224 = scmp.lt.s32.totalorder %s13, 4
    // Predicated region
    $region25: #{_double_conv_impl.4} parent=5 // pred_check
      %p225 = pneg %p224
    $region26: #{_double_conv_impl.4} parent=5 // pred_check_branch
      %227 = sbr.rel (%p225) target = $region28
    $region27: #{_double_conv_impl.4} parent=5 // pred_region
      // Predicated region
      $region29: #{_double_conv_impl.4} parent=27 // pred_check
        %p228 = pneg %p47
      $region30: #{_double_conv_impl.4} parent=27 // pred_check_branch
        %230 = sbr.rel (%p228) target = $region32
      $region31: #{_double_conv_impl.4} parent=27 // pred_region
        %p231 = scmp.lt.s32.totalorder %s20, 1
        %s232 = scalar_select %p231, %s20, 1
        %p233 = scmp.lt.s32.totalorder %s21, 1
        %s234 = scalar_select %p233, %s21, 1
        %s235 = smul.addr %s232, 2
        %s236 = sadd.s32 %s234, %s235
        %s237 = smul.addr %s236, 8
        %s238 = scalar_lea.vmem %s0, %s237
      $region32: #{_double_conv_impl.4} parent=27 // pred_fallthru
        _
      // Predicated region
      $region33: #{_double_conv_impl.4} parent=27 // pred_check
        %p239 = pneg %p75
      $region34: #{_double_conv_impl.4} parent=27 // pred_check_branch
        %241 = sbr.rel (%p239) target = $region36
      $region35: #{_double_conv_impl.4} parent=27 // pred_region
        %p242 = scmp.lt.s32.totalorder %s20, 1
        %s243 = scalar_select %p242, %s20, 1
        %p244 = scmp.lt.s32.totalorder %s21, 1
        %s245 = scalar_select %p244, %s21, 1
        %s246 = smul.addr %s243, 2
        %s247 = sadd.s32 %s245, %s246
        %s248 = smul.addr %s247, 8
        %s249 = scalar_lea.vmem %s1, %s248
      $region36: #{_double_conv_impl.4} parent=27 // pred_fallthru
        _
    $region28: #{_double_conv_impl.4} parent=5 // pred_fallthru
      _
    %p250 = scmp.le.s32.totalorder 1, %s13
    %p251 = scmp.lt.s32.totalorder %s13, 5
    %p252 = pnand %p250, %p251
    %p253 = pneg %p252
    // Predicated region
    $region37: #{_double_conv_impl.4} parent=5 // pred_check
      _
    $region38: #{_double_conv_impl.4} parent=5 // pred_check_branch
      %255 = sbr.rel (%p252) target = $region40
    $region39: #{_double_conv_impl.4} parent=5 // pred_region
      %s256 = ssub.s32 %s13, 1
      %p257 = scmp.lt.s32.totalorder %s22, 1
      %s258 = scalar_select %p257, %s22, 1
      %p259 = scmp.lt.s32.totalorder %s23, 1
      %s260 = scalar_select %p259, %s23, 1
      %s261 = smul.addr %s258, 2
      %s262 = sadd.s32 %s260, %s261
      %s263 = smul.addr %s262, 8
      %s264 = scalar_lea.vmem %s0, %s263
      %p265 = pneg %p53
      %p266 = pneg %p50
      %p267 = scmp.lt.s32.totalorder %s22, 1
      %s268 = scalar_select %p267, %s22, 1
      %p269 = scmp.lt.s32.totalorder %s23, 1
      %s270 = scalar_select %p269, %s23, 1
      %s271 = smul.addr %s268, 2
      %s272 = sadd.s32 %s270, %s271
      %s273 = smul.addr %s272, 8
      %s274 = scalar_lea.vmem %s1, %s273
      %p275 = pneg %p81
      %p276 = pneg %p78
      %p277 = pneg %p102
      %p278 = pneg %p99
      %p279 = pneg %p123
      %p280 = pneg %p120
      %p281 = pneg %p144
      %p282 = pneg %p141
      %p283 = pneg %p172
      %p284 = pneg %p169
      %p285 = scmp.lt.s32.totalorder %s22, 1
      %s286 = scalar_select %p285, %s22, 1
      %p287 = scmp.lt.s32.totalorder %s23, 1
      %s288 = scalar_select %p287, %s23, 1
      %s289 = smul.addr %s286, 2
      %s290 = sadd.s32 %s288, %s289
      %s291 = smul.addr %s290, 8
      %s292 = scalar_lea.vmem %s5, %s291
      %p293 = pneg %p200
      %p294 = pneg %p197
      %p295 = scmp.lt.s32.totalorder %s22, 1
      %s296 = scalar_select %p295, %s22, 1
      %p297 = scmp.lt.s32.totalorder %s23, 1
      %s298 = scalar_select %p297, %s23, 1
      %s299 = smul.addr %s296, 2
      %s300 = sadd.s32 %s298, %s299
      %s301 = smul.addr %s300, 8
      %s302 = scalar_lea.vmem %s6, %s301
      %p303 = scmp.lt.s32.totalorder %s22, 1
      %s304 = scalar_select %p303, %s22, 1
      %p305 = scmp.lt.s32.totalorder %s23, 1
      %s306 = scalar_select %p305, %s23, 1
      %s307 = smul.addr %s304, 2
      %s308 = sadd.s32 %s306, %s307
      %s309 = smul.addr %s308, 8
      %s310 = scalar_lea.vmem %s0, %s309
      %p311 = scmp.lt.s32.totalorder %s22, 1
      %s312 = scalar_select %p311, %s22, 1
      %p313 = scmp.lt.s32.totalorder %s23, 1
      %s314 = scalar_select %p313, %s23, 1
      %s315 = smul.addr %s312, 2
      %s316 = sadd.s32 %s314, %s315
      %s317 = smul.addr %s316, 8
      %s318 = scalar_lea.vmem %s1, %s317
      %p319 = scmp.lt.s32.totalorder %s22, 1
      %s320 = scalar_select %p319, %s22, 1
      %p321 = scmp.lt.s32.totalorder %s23, 1
      %s322 = scalar_select %p321, %s23, 1
      %s323 = smul.addr %s320, 2
      %s324 = sadd.s32 %s322, %s323
      %s325 = smul.addr %s324, 8
      %s326 = scalar_lea.vmem %s5, %s325
      %p327 = scmp.lt.s32.totalorder %s22, 1
      %s328 = scalar_select %p327, %s22, 1
      %p329 = scmp.lt.s32.totalorder %s23, 1
      %s330 = scalar_select %p329, %s23, 1
      %s331 = smul.addr %s328, 2
      %s332 = sadd.s32 %s330, %s331
      %s333 = smul.addr %s332, 8
      %s334 = scalar_lea.vmem %s6, %s333
      %v335 = vld [vmem:[%s310] sm:$0xff]
      %v336 = vld [vmem:[%s318] sm:$0xff]
      %v337 = vld [vmem:[%s3] sm:$0xff]
      %v338 = vld [vmem:[%s4] sm:$0xff]
      %340 = vset.pattern.permute.xlu0 0
      %341 = vperm.xlu0 %340, %v337
      %v342 = vpop.permute.xlu0 %341
      %v344 = vmul.f32 %v335, %v342
      %346 = vset.pattern.permute.xlu0 0
      %347 = vperm.xlu0 %346, %v338
      %v348 = vpop.permute.xlu0 %347
      %v350 = vadd.f32 %v344, %v348
      %v351 = vmax.f32 %v350, 0.0
      %v352 = vmul.f32 %v336, %v342
      %v353 = vadd.f32 %v352, %v348
      %v354 = vmax.f32 %v353, 0.0
      %p355 = scmp.gt.s32.totalorder %s23, 0
      %s356 = scalar_select %p355, 1, 0
      %s357 = scvt.s32.f32 %s356
      %p358 = scmp.lt.s32.totalorder %s23, 1
      %s359 = scalar_select %p358, 1, 0
      %s360 = scvt.s32.f32 %s359
      %v361 = vstv %s357
      %v362 = vmul.f32 %v354, %v361
      %v363 = vstv %s360
      %v364 = vmul.f32 %v354, %v363
      %366 = vrot.lane.b32.xlu0 %v362, 1
      %v367 = vpop.permute.xlu0 %366
      %370 = vrot.lane.b32.xlu0 %v351, 17
      %v371 = vpop.permute.xlu0 %370
      %374 = vrot.lane.b32.xlu0 %v364, 1
      %v375 = vpop.permute.xlu0 %374
      %vm377 = vcmask 7168
      %v378 = vsel %vm377, 0.0, %v367
      %vm379 = vcmask 138240
      %v380 = vsel %vm379, %v378, %v371
      %v381 = vsel %vm379, %v371, %v375
      %vm382 = vcmask 269312
      %v383 = vsel %vm382, %v381, 0.0
      %v384 = vlaneseq
      %v385 = vand.u32 %v384, 127
      %vm386 = vcmp.lt.s32.totalorder %v385, 0
      %v387 = vsub.s32 0, %v385
      %v388 = vsel %vm386, %v387, %v385
      %v389 = vshrl.u32 %v388, 4
      %v390 = vand.u32 %v388, 15
      %v391 = vsub.s32 0, %v390
      %v392 = vsel %vm386, %v391, %v390
      %vm393 = vcmp.ne.s32.totalorder %v392, 0
      %vm394 = vcmp.lt.s32.totalorder %v392, 0
      %vm395 = vmand %vm394, %vm393
      %v396 = vadd.s32 %v392, 16
      %v397 = vsel %vm395, %v396, %v392
      %vm398 = vcmp.ne.s32.totalorder %v397, 0
      %v399 = vsel %vm398, 1, 0
      %v400 = vcvt.s32.f32 %v399
      %vm401 = vcmp.ne.s32.totalorder %v397, 15
      %v402 = vsel %vm401, 1, 0
      %v403 = vcvt.s32.f32 %v402
      %v404 = vmul.f32 %v380, %v400
      %v405 = vld [vmem:[%s2] sm:$0xff]
      %s406 = scalar_lea.vmem %s2, 8
      %v407 = vld [vmem:[%s406] sm:$0xff]
      %410 = vrot.lane.b32.xlu0 %v380, 127
      %v411 = vpop.permute.xlu0 %410
      %412 = vrot.lane.b32.xlu0 %v383, 127
      %v413 = vpop.permute.xlu0 %412
      %vm414 = vcmask 1039360
      %v415 = vsel %vm414, %v411, %v413
      %vm417 = vcmask 64512
      %v419 = vsel %vm417, %v407, 0
      %421 = vmatprep.subr.mxu0 0.0
      %422 = vmatpush1.msra.mxu0 0.0
      %423 = vmatprep.subr.mxu0 0.0
      %424 = vmatpush1.msra.mxu0 0.0
      %425 = vmatprep.subr.mxu0 0.0
      %426 = vmatpush1.msra.mxu0 0.0
      %427 = vmatprep.subr.mxu0 0.0
      %428 = vmatpush1.msra.mxu0 0.0
      %429 = vmatprep.subr.mxu0 0.0
      %430 = vmatpush1.msra.mxu0 0.0
      %431 = vmatprep.subr.mxu0 0.0
      %432 = vmatpush1.msra.mxu0 0.0
      %433 = vmatprep.subr.mxu0 0.0
      %434 = vmatpush1.msra.mxu0 0.0
      %435 = vmatprep.subr.mxu0 0.0
      %436 = vmatpush1.msra.mxu0 0.0
      %437 = vmatprep.subr.mxu0 0.0
      %438 = vmatpush1.msra.mxu0 0.0
      %439 = vmatprep.subr.mxu0 0.0
      %440 = vmatpush1.msra.mxu0 0.0
      %441 = vmatprep.subr.mxu0 0.0
      %442 = vmatpush1.msra.mxu0 0.0
      %443 = vmatprep.subr.mxu0 0.0
      %444 = vmatpush1.msra.mxu0 0.0
      %445 = vmatprep.subr.mxu0 0.0
      %446 = vmatpush1.msra.mxu0 0.0
      %447 = vmatprep.subr.mxu0 0.0
      %448 = vmatpush1.msra.mxu0 0.0
      %449 = vmatprep.subr.mxu0 0.0
      %450 = vmatpush1.msra.mxu0 0.0
      %451 = vmatprep.subr.mxu0 0.0
      %452 = vmatpush1.msra.mxu0 %v415
      %453 = vmatprep.subr.mxu0 0.0
      %454 = vmatpush2.msra.mxu0 0.0
      %455 = vmatprep.subr.mxu0 0.0
      %456 = vmatpush2.msra.mxu0 0.0
      %457 = vmatprep.subr.mxu0 0.0
      %458 = vmatpush2.msra.mxu0 0.0
      %459 = vmatprep.subr.mxu0 0.0
      %460 = vmatpush2.msra.mxu0 0.0
      %461 = vmatprep.subr.mxu0 0.0
      %462 = vmatpush2.msra.mxu0 0.0
      %463 = vmatprep.subr.mxu0 0.0
      %464 = vmatpush2.msra.mxu0 0.0
      %465 = vmatprep.subr.mxu0 0.0
      %466 = vmatpush2.msra.mxu0 0.0
      %467 = vmatprep.subr.mxu0 0.0
      %468 = vmatpush2.msra.mxu0 0.0
      %469 = vmatprep.subr.mxu0 0.0
      %470 = vmatpush2.msra.mxu0 0.0
      %471 = vmatprep.subr.mxu0 0.0
      %472 = vmatpush2.msra.mxu0 0.0
      %473 = vmatprep.subr.mxu0 0.0
      %474 = vmatpush2.msra.mxu0 0.0
      %475 = vmatprep.subr.mxu0 0.0
      %476 = vmatpush2.msra.mxu0 0.0
      %477 = vmatprep.subr.mxu0 0.0
      %478 = vmatpush2.msra.mxu0 0.0
      %479 = vmatprep.subr.mxu0 0.0
      %480 = vmatpush2.msra.mxu0 0.0
      %481 = vmatprep.subr.mxu0 0.0
      %482 = vmatpush2.msra.mxu0 0.0
      %483 = vmatprep.subr.mxu0 0.0
      %484 = vmatpush2.msra.mxu0 0.0
      %485 = vmatprep.mubr.f32.mxu0 0.0
      %486 = vmatmul.mubr.f32.gmra.mxu0 %v419
      %v487 = vpop.f32.mrf.mxu0
      %v488 = vadd.f32 0.0, %v487
      %v489 = vpop.f32.mrf.mxu0
      %490 = vdwg.mxu0
      %v492 = vsel %vm417, %v405, 0
      %494 = vmatprep.subr.mxu0 0.0
      %495 = vmatpush1.msra.mxu0 0.0
      %496 = vmatprep.subr.mxu0 0.0
      %497 = vmatpush1.msra.mxu0 0.0
      %498 = vmatprep.subr.mxu0 0.0
      %499 = vmatpush1.msra.mxu0 0.0
      %500 = vmatprep.subr.mxu0 0.0
      %501 = vmatpush1.msra.mxu0 0.0
      %502 = vmatprep.subr.mxu0 0.0
      %503 = vmatpush1.msra.mxu0 0.0
      %504 = vmatprep.subr.mxu0 0.0
      %505 = vmatpush1.msra.mxu0 0.0
      %506 = vmatprep.subr.mxu0 0.0
      %507 = vmatpush1.msra.mxu0 0.0
      %508 = vmatprep.subr.mxu0 0.0
      %509 = vmatpush1.msra.mxu0 0.0
      %510 = vmatprep.subr.mxu0 0.0
      %511 = vmatpush1.msra.mxu0 0.0
      %512 = vmatprep.subr.mxu0 0.0
      %513 = vmatpush1.msra.mxu0 0.0
      %514 = vmatprep.subr.mxu0 0.0
      %515 = vmatpush1.msra.mxu0 0.0
      %516 = vmatprep.subr.mxu0 0.0
      %517 = vmatpush1.msra.mxu0 0.0
      %518 = vmatprep.subr.mxu0 0.0
      %519 = vmatpush1.msra.mxu0 0.0
      %520 = vmatprep.subr.mxu0 0.0
      %521 = vmatpush1.msra.mxu0 0.0
      %522 = vmatprep.subr.mxu0 0.0
      %523 = vmatpush1.msra.mxu0 0.0
      %524 = vmatprep.subr.mxu0 0.0
      %525 = vmatpush1.msra.mxu0 %v404
      %526 = vmatprep.subr.mxu0 0.0
      %527 = vmatpush2.msra.mxu0 0.0
      %528 = vmatprep.subr.mxu0 0.0
      %529 = vmatpush2.msra.mxu0 0.0
      %530 = vmatprep.subr.mxu0 0.0
      %531 = vmatpush2.msra.mxu0 0.0
      %532 = vmatprep.subr.mxu0 0.0
      %533 = vmatpush2.msra.mxu0 0.0
      %534 = vmatprep.subr.mxu0 0.0
      %535 = vmatpush2.msra.mxu0 0.0
      %536 = vmatprep.subr.mxu0 0.0
      %537 = vmatpush2.msra.mxu0 0.0
      %538 = vmatprep.subr.mxu0 0.0
      %539 = vmatpush2.msra.mxu0 0.0
      %540 = vmatprep.subr.mxu0 0.0
      %541 = vmatpush2.msra.mxu0 0.0
      %542 = vmatprep.subr.mxu0 0.0
      %543 = vmatpush2.msra.mxu0 0.0
      %544 = vmatprep.subr.mxu0 0.0
      %545 = vmatpush2.msra.mxu0 0.0
      %546 = vmatprep.subr.mxu0 0.0
      %547 = vmatpush2.msra.mxu0 0.0
      %548 = vmatprep.subr.mxu0 0.0
      %549 = vmatpush2.msra.mxu0 0.0
      %550 = vmatprep.subr.mxu0 0.0
      %551 = vmatpush2.msra.mxu0 0.0
      %552 = vmatprep.subr.mxu0 0.0
      %553 = vmatpush2.msra.mxu0 0.0
      %554 = vmatprep.subr.mxu0 0.0
      %555 = vmatpush2.msra.mxu0 0.0
      %556 = vmatprep.subr.mxu0 0.0
      %557 = vmatpush2.msra.mxu0 0.0
      %558 = vmatprep.mubr.f32.mxu0 0.0
      %559 = vmatmul.mubr.f32.gmra.mxu0 %v492
      %v560 = vpop.f32.mrf.mxu0
      %v561 = vadd.f32 %v488, %v560
      %v562 = vpop.f32.mrf.mxu0
      %563 = vdwg.mxu0
      %565 = vrot.lane.b32.xlu0 %v403, 2
      %v566 = vpop.permute.xlu0 %565
      %v568 = vmul.f32 %v380, %v566
      %v569 = vmul.f32 %v383, %v566
      %s570 = scalar_lea.vmem %s2, 16
      %v571 = vld [vmem:[%s570] sm:$0xff]
      %574 = vrot.lane.b32.xlu0 %v568, 126
      %v575 = vpop.permute.xlu0 %574
      %576 = vrot.lane.b32.xlu0 %v569, 126
      %v577 = vpop.permute.xlu0 %576
      %vm578 = vcmask 1031168
      %v579 = vsel %vm578, %v575, %v577
      %v582 = vsel %vm417, %v571, 0
      %584 = vmatprep.subr.mxu0 0.0
      %585 = vmatpush1.msra.mxu0 0.0
      %586 = vmatprep.subr.mxu0 0.0
      %587 = vmatpush1.msra.mxu0 0.0
      %588 = vmatprep.subr.mxu0 0.0
      %589 = vmatpush1.msra.mxu0 0.0
      %590 = vmatprep.subr.mxu0 0.0
      %591 = vmatpush1.msra.mxu0 0.0
      %592 = vmatprep.subr.mxu0 0.0
      %593 = vmatpush1.msra.mxu0 0.0
      %594 = vmatprep.subr.mxu0 0.0
      %595 = vmatpush1.msra.mxu0 0.0
      %596 = vmatprep.subr.mxu0 0.0
      %597 = vmatpush1.msra.mxu0 0.0
      %598 = vmatprep.subr.mxu0 0.0
      %599 = vmatpush1.msra.mxu0 0.0
      %600 = vmatprep.subr.mxu0 0.0
      %601 = vmatpush1.msra.mxu0 0.0
      %602 = vmatprep.subr.mxu0 0.0
      %603 = vmatpush1.msra.mxu0 0.0
      %604 = vmatprep.subr.mxu0 0.0
      %605 = vmatpush1.msra.mxu0 0.0
      %606 = vmatprep.subr.mxu0 0.0
      %607 = vmatpush1.msra.mxu0 0.0
      %608 = vmatprep.subr.mxu0 0.0
      %609 = vmatpush1.msra.mxu0 0.0
      %610 = vmatprep.subr.mxu0 0.0
      %611 = vmatpush1.msra.mxu0 0.0
      %612 = vmatprep.subr.mxu0 0.0
      %613 = vmatpush1.msra.mxu0 0.0
      %614 = vmatprep.subr.mxu0 0.0
      %615 = vmatpush1.msra.mxu0 %v579
      %616 = vmatprep.subr.mxu0 0.0
      %617 = vmatpush2.msra.mxu0 0.0
      %618 = vmatprep.subr.mxu0 0.0
      %619 = vmatpush2.msra.mxu0 0.0
      %620 = vmatprep.subr.mxu0 0.0
      %621 = vmatpush2.msra.mxu0 0.0
      %622 = vmatprep.subr.mxu0 0.0
      %623 = vmatpush2.msra.mxu0 0.0
      %624 = vmatprep.subr.mxu0 0.0
      %625 = vmatpush2.msra.mxu0 0.0
      %626 = vmatprep.subr.mxu0 0.0
      %627 = vmatpush2.msra.mxu0 0.0
      %628 = vmatprep.subr.mxu0 0.0
      %629 = vmatpush2.msra.mxu0 0.0
      %630 = vmatprep.subr.mxu0 0.0
      %631 = vmatpush2.msra.mxu0 0.0
      %632 = vmatprep.subr.mxu0 0.0
      %633 = vmatpush2.msra.mxu0 0.0
      %634 = vmatprep.subr.mxu0 0.0
      %635 = vmatpush2.msra.mxu0 0.0
      %636 = vmatprep.subr.mxu0 0.0
      %637 = vmatpush2.msra.mxu0 0.0
      %638 = vmatprep.subr.mxu0 0.0
      %639 = vmatpush2.msra.mxu0 0.0
      %640 = vmatprep.subr.mxu0 0.0
      %641 = vmatpush2.msra.mxu0 0.0
      %642 = vmatprep.subr.mxu0 0.0
      %643 = vmatpush2.msra.mxu0 0.0
      %644 = vmatprep.subr.mxu0 0.0
      %645 = vmatpush2.msra.mxu0 0.0
      %646 = vmatprep.subr.mxu0 0.0
      %647 = vmatpush2.msra.mxu0 0.0
      %648 = vmatprep.mubr.f32.mxu0 0.0
      %649 = vmatmul.mubr.f32.gmra.mxu0 %v582
      %v650 = vpop.f32.mrf.mxu0
      %v651 = vadd.f32 0.0, %v650
      %v652 = vpop.f32.mrf.mxu0
      %653 = vdwg.mxu0
      %v654 = vadd.f32 %v561, %v651
      %656 = vrot.lane.b32.xlu0 %v400, 16
      %v657 = vpop.permute.xlu0 %656
      %v659 = vmul.f32 %v380, %v657
      %v660 = vmul.f32 %v383, %v657
      %s661 = scalar_lea.vmem %s2, 24
      %v662 = vld [vmem:[%s661] sm:$0xff]
      %665 = vrot.lane.b32.xlu0 %v659, 112
      %v666 = vpop.permute.xlu0 %665
      %667 = vrot.lane.b32.xlu0 %v660, 112
      %v668 = vpop.permute.xlu0 %667
      %vm669 = vcmask 916480
      %v670 = vsel %vm669, %v666, %v668
      %v673 = vsel %vm417, %v662, 0
      %675 = vmatprep.subr.mxu0 0.0
      %676 = vmatpush1.msra.mxu0 0.0
      %677 = vmatprep.subr.mxu0 0.0
      %678 = vmatpush1.msra.mxu0 0.0
      %679 = vmatprep.subr.mxu0 0.0
      %680 = vmatpush1.msra.mxu0 0.0
      %681 = vmatprep.subr.mxu0 0.0
      %682 = vmatpush1.msra.mxu0 0.0
      %683 = vmatprep.subr.mxu0 0.0
      %684 = vmatpush1.msra.mxu0 0.0
      %685 = vmatprep.subr.mxu0 0.0
      %686 = vmatpush1.msra.mxu0 0.0
      %687 = vmatprep.subr.mxu0 0.0
      %688 = vmatpush1.msra.mxu0 0.0
      %689 = vmatprep.subr.mxu0 0.0
      %690 = vmatpush1.msra.mxu0 0.0
      %691 = vmatprep.subr.mxu0 0.0
      %692 = vmatpush1.msra.mxu0 0.0
      %693 = vmatprep.subr.mxu0 0.0
      %694 = vmatpush1.msra.mxu0 0.0
      %695 = vmatprep.subr.mxu0 0.0
      %696 = vmatpush1.msra.mxu0 0.0
      %697 = vmatprep.subr.mxu0 0.0
      %698 = vmatpush1.msra.mxu0 0.0
      %699 = vmatprep.subr.mxu0 0.0
      %700 = vmatpush1.msra.mxu0 0.0
      %701 = vmatprep.subr.mxu0 0.0
      %702 = vmatpush1.msra.mxu0 0.0
      %703 = vmatprep.subr.mxu0 0.0
      %704 = vmatpush1.msra.mxu0 0.0
      %705 = vmatprep.subr.mxu0 0.0
      %706 = vmatpush1.msra.mxu0 %v670
      %707 = vmatprep.subr.mxu0 0.0
      %708 = vmatpush2.msra.mxu0 0.0
      %709 = vmatprep.subr.mxu0 0.0
      %710 = vmatpush2.msra.mxu0 0.0
      %711 = vmatprep.subr.mxu0 0.0
      %712 = vmatpush2.msra.mxu0 0.0
      %713 = vmatprep.subr.mxu0 0.0
      %714 = vmatpush2.msra.mxu0 0.0
      %715 = vmatprep.subr.mxu0 0.0
      %716 = vmatpush2.msra.mxu0 0.0
      %717 = vmatprep.subr.mxu0 0.0
      %718 = vmatpush2.msra.mxu0 0.0
      %719 = vmatprep.subr.mxu0 0.0
      %720 = vmatpush2.msra.mxu0 0.0
      %721 = vmatprep.subr.mxu0 0.0
      %722 = vmatpush2.msra.mxu0 0.0
      %723 = vmatprep.subr.mxu0 0.0
      %724 = vmatpush2.msra.mxu0 0.0
      %725 = vmatprep.subr.mxu0 0.0
      %726 = vmatpush2.msra.mxu0 0.0
      %727 = vmatprep.subr.mxu0 0.0
      %728 = vmatpush2.msra.mxu0 0.0
      %729 = vmatprep.subr.mxu0 0.0
      %730 = vmatpush2.msra.mxu0 0.0
      %731 = vmatprep.subr.mxu0 0.0
      %732 = vmatpush2.msra.mxu0 0.0
      %733 = vmatprep.subr.mxu0 0.0
      %734 = vmatpush2.msra.mxu0 0.0
      %735 = vmatprep.subr.mxu0 0.0
      %736 = vmatpush2.msra.mxu0 0.0
      %737 = vmatprep.subr.mxu0 0.0
      %738 = vmatpush2.msra.mxu0 0.0
      %739 = vmatprep.mubr.f32.mxu0 0.0
      %740 = vmatmul.mubr.f32.gmra.mxu0 %v673
      %v741 = vpop.f32.mrf.mxu0
      %v742 = vadd.f32 0.0, %v741
      %v743 = vpop.f32.mrf.mxu0
      %744 = vdwg.mxu0
      %v745 = vadd.f32 %v654, %v742
      %s746 = scalar_lea.vmem %s2, 32
      %v747 = vld [vmem:[%s746] sm:$0xff]
      %748 = vrot.lane.b32.xlu0 %v380, 111
      %v749 = vpop.permute.xlu0 %748
      %750 = vrot.lane.b32.xlu0 %v383, 111
      %v751 = vpop.permute.xlu0 %750
      %vm752 = vcmask 908288
      %v753 = vsel %vm752, %v749, %v751
      %v756 = vsel %vm417, %v747, 0
      %758 = vmatprep.subr.mxu0 0.0
      %759 = vmatpush1.msra.mxu0 0.0
      %760 = vmatprep.subr.mxu0 0.0
      %761 = vmatpush1.msra.mxu0 0.0
      %762 = vmatprep.subr.mxu0 0.0
      %763 = vmatpush1.msra.mxu0 0.0
      %764 = vmatprep.subr.mxu0 0.0
      %765 = vmatpush1.msra.mxu0 0.0
      %766 = vmatprep.subr.mxu0 0.0
      %767 = vmatpush1.msra.mxu0 0.0
      %768 = vmatprep.subr.mxu0 0.0
      %769 = vmatpush1.msra.mxu0 0.0
      %770 = vmatprep.subr.mxu0 0.0
      %771 = vmatpush1.msra.mxu0 0.0
      %772 = vmatprep.subr.mxu0 0.0
      %773 = vmatpush1.msra.mxu0 0.0
      %774 = vmatprep.subr.mxu0 0.0
      %775 = vmatpush1.msra.mxu0 0.0
      %776 = vmatprep.subr.mxu0 0.0
      %777 = vmatpush1.msra.mxu0 0.0
      %778 = vmatprep.subr.mxu0 0.0
      %779 = vmatpush1.msra.mxu0 0.0
      %780 = vmatprep.subr.mxu0 0.0
      %781 = vmatpush1.msra.mxu0 0.0
      %782 = vmatprep.subr.mxu0 0.0
      %783 = vmatpush1.msra.mxu0 0.0
      %784 = vmatprep.subr.mxu0 0.0
      %785 = vmatpush1.msra.mxu0 0.0
      %786 = vmatprep.subr.mxu0 0.0
      %787 = vmatpush1.msra.mxu0 0.0
      %788 = vmatprep.subr.mxu0 0.0
      %789 = vmatpush1.msra.mxu0 %v753
      %790 = vmatprep.subr.mxu0 0.0
      %791 = vmatpush2.msra.mxu0 0.0
      %792 = vmatprep.subr.mxu0 0.0
      %793 = vmatpush2.msra.mxu0 0.0
      %794 = vmatprep.subr.mxu0 0.0
      %795 = vmatpush2.msra.mxu0 0.0
      %796 = vmatprep.subr.mxu0 0.0
      %797 = vmatpush2.msra.mxu0 0.0
      %798 = vmatprep.subr.mxu0 0.0
      %799 = vmatpush2.msra.mxu0 0.0
      %800 = vmatprep.subr.mxu0 0.0
      %801 = vmatpush2.msra.mxu0 0.0
      %802 = vmatprep.subr.mxu0 0.0
      %803 = vmatpush2.msra.mxu0 0.0
      %804 = vmatprep.subr.mxu0 0.0
      %805 = vmatpush2.msra.mxu0 0.0
      %806 = vmatprep.subr.mxu0 0.0
      %807 = vmatpush2.msra.mxu0 0.0
      %808 = vmatprep.subr.mxu0 0.0
      %809 = vmatpush2.msra.mxu0 0.0
      %810 = vmatprep.subr.mxu0 0.0
      %811 = vmatpush2.msra.mxu0 0.0
      %812 = vmatprep.subr.mxu0 0.0
      %813 = vmatpush2.msra.mxu0 0.0
      %814 = vmatprep.subr.mxu0 0.0
      %815 = vmatpush2.msra.mxu0 0.0
      %816 = vmatprep.subr.mxu0 0.0
      %817 = vmatpush2.msra.mxu0 0.0
      %818 = vmatprep.subr.mxu0 0.0
      %819 = vmatpush2.msra.mxu0 0.0
      %820 = vmatprep.subr.mxu0 0.0
      %821 = vmatpush2.msra.mxu0 0.0
      %822 = vmatprep.mubr.f32.mxu0 0.0
      %823 = vmatmul.mubr.f32.gmra.mxu0 %v756
      %v824 = vpop.f32.mrf.mxu0
      %v825 = vadd.f32 0.0, %v824
      %v826 = vpop.f32.mrf.mxu0
      %827 = vdwg.mxu0
      %v828 = vadd.f32 %v745, %v825
      %829 = vrot.lane.b32.xlu0 %v403, 18
      %v830 = vpop.permute.xlu0 %829
      %v832 = vmul.f32 %v380, %v830
      %v833 = vmul.f32 %v383, %v830
      %s834 = scalar_lea.vmem %s2, 40
      %v835 = vld [vmem:[%s834] sm:$0xff]
      %838 = vrot.lane.b32.xlu0 %v832, 110
      %v839 = vpop.permute.xlu0 %838
      %840 = vrot.lane.b32.xlu0 %v833, 110
      %v841 = vpop.permute.xlu0 %840
      %vm842 = vcmask 900096
      %v843 = vsel %vm842, %v839, %v841
      %v846 = vsel %vm417, %v835, 0
      %848 = vmatprep.subr.mxu0 0.0
      %849 = vmatpush1.msra.mxu0 0.0
      %850 = vmatprep.subr.mxu0 0.0
      %851 = vmatpush1.msra.mxu0 0.0
      %852 = vmatprep.subr.mxu0 0.0
      %853 = vmatpush1.msra.mxu0 0.0
      %854 = vmatprep.subr.mxu0 0.0
      %855 = vmatpush1.msra.mxu0 0.0
      %856 = vmatprep.subr.mxu0 0.0
      %857 = vmatpush1.msra.mxu0 0.0
      %858 = vmatprep.subr.mxu0 0.0
      %859 = vmatpush1.msra.mxu0 0.0
      %860 = vmatprep.subr.mxu0 0.0
      %861 = vmatpush1.msra.mxu0 0.0
      %862 = vmatprep.subr.mxu0 0.0
      %863 = vmatpush1.msra.mxu0 0.0
      %864 = vmatprep.subr.mxu0 0.0
      %865 = vmatpush1.msra.mxu0 0.0
      %866 = vmatprep.subr.mxu0 0.0
      %867 = vmatpush1.msra.mxu0 0.0
      %868 = vmatprep.subr.mxu0 0.0
      %869 = vmatpush1.msra.mxu0 0.0
      %870 = vmatprep.subr.mxu0 0.0
      %871 = vmatpush1.msra.mxu0 0.0
      %872 = vmatprep.subr.mxu0 0.0
      %873 = vmatpush1.msra.mxu0 0.0
      %874 = vmatprep.subr.mxu0 0.0
      %875 = vmatpush1.msra.mxu0 0.0
      %876 = vmatprep.subr.mxu0 0.0
      %877 = vmatpush1.msra.mxu0 0.0
      %878 = vmatprep.subr.mxu0 0.0
      %879 = vmatpush1.msra.mxu0 %v843
      %880 = vmatprep.subr.mxu0 0.0
      %881 = vmatpush2.msra.mxu0 0.0
      %882 = vmatprep.subr.mxu0 0.0
      %883 = vmatpush2.msra.mxu0 0.0
      %884 = vmatprep.subr.mxu0 0.0
      %885 = vmatpush2.msra.mxu0 0.0
      %886 = vmatprep.subr.mxu0 0.0
      %887 = vmatpush2.msra.mxu0 0.0
      %888 = vmatprep.subr.mxu0 0.0
      %889 = vmatpush2.msra.mxu0 0.0
      %890 = vmatprep.subr.mxu0 0.0
      %891 = vmatpush2.msra.mxu0 0.0
      %892 = vmatprep.subr.mxu0 0.0
      %893 = vmatpush2.msra.mxu0 0.0
      %894 = vmatprep.subr.mxu0 0.0
      %895 = vmatpush2.msra.mxu0 0.0
      %896 = vmatprep.subr.mxu0 0.0
      %897 = vmatpush2.msra.mxu0 0.0
      %898 = vmatprep.subr.mxu0 0.0
      %899 = vmatpush2.msra.mxu0 0.0
      %900 = vmatprep.subr.mxu0 0.0
      %901 = vmatpush2.msra.mxu0 0.0
      %902 = vmatprep.subr.mxu0 0.0
      %903 = vmatpush2.msra.mxu0 0.0
      %904 = vmatprep.subr.mxu0 0.0
      %905 = vmatpush2.msra.mxu0 0.0
      %906 = vmatprep.subr.mxu0 0.0
      %907 = vmatpush2.msra.mxu0 0.0
      %908 = vmatprep.subr.mxu0 0.0
      %909 = vmatpush2.msra.mxu0 0.0
      %910 = vmatprep.subr.mxu0 0.0
      %911 = vmatpush2.msra.mxu0 0.0
      %912 = vmatprep.mubr.f32.mxu0 0.0
      %913 = vmatmul.mubr.f32.gmra.mxu0 %v846
      %v914 = vpop.f32.mrf.mxu0
      %v915 = vadd.f32 0.0, %v914
      %v916 = vpop.f32.mrf.mxu0
      %917 = vdwg.mxu0
      %v918 = vadd.f32 %v828, %v915
      %919 = vrot.lane.b32.xlu0 %v400, 32
      %v920 = vpop.permute.xlu0 %919
      %v922 = vmul.f32 %v380, %v920
      %v923 = vmul.f32 %v383, %v920
      %s924 = scalar_lea.vmem %s2, 48
      %v925 = vld [vmem:[%s924] sm:$0xff]
      %928 = vrot.lane.b32.xlu0 %v922, 96
      %v929 = vpop.permute.xlu0 %928
      %930 = vrot.lane.b32.xlu0 %v923, 96
      %v931 = vpop.permute.xlu0 %930
      %vm932 = vcmask 785408
      %v933 = vsel %vm932, %v929, %v931
      %v936 = vsel %vm417, %v925, 0
      %938 = vmatprep.subr.mxu0 0.0
      %939 = vmatpush1.msra.mxu0 0.0
      %940 = vmatprep.subr.mxu0 0.0
      %941 = vmatpush1.msra.mxu0 0.0
      %942 = vmatprep.subr.mxu0 0.0
      %943 = vmatpush1.msra.mxu0 0.0
      %944 = vmatprep.subr.mxu0 0.0
      %945 = vmatpush1.msra.mxu0 0.0
      %946 = vmatprep.subr.mxu0 0.0
      %947 = vmatpush1.msra.mxu0 0.0
      %948 = vmatprep.subr.mxu0 0.0
      %949 = vmatpush1.msra.mxu0 0.0
      %950 = vmatprep.subr.mxu0 0.0
      %951 = vmatpush1.msra.mxu0 0.0
      %952 = vmatprep.subr.mxu0 0.0
      %953 = vmatpush1.msra.mxu0 0.0
      %954 = vmatprep.subr.mxu0 0.0
      %955 = vmatpush1.msra.mxu0 0.0
      %956 = vmatprep.subr.mxu0 0.0
      %957 = vmatpush1.msra.mxu0 0.0
      %958 = vmatprep.subr.mxu0 0.0
      %959 = vmatpush1.msra.mxu0 0.0
      %960 = vmatprep.subr.mxu0 0.0
      %961 = vmatpush1.msra.mxu0 0.0
      %962 = vmatprep.subr.mxu0 0.0
      %963 = vmatpush1.msra.mxu0 0.0
      %964 = vmatprep.subr.mxu0 0.0
      %965 = vmatpush1.msra.mxu0 0.0
      %966 = vmatprep.subr.mxu0 0.0
      %967 = vmatpush1.msra.mxu0 0.0
      %968 = vmatprep.subr.mxu0 0.0
      %969 = vmatpush1.msra.mxu0 %v933
      %970 = vmatprep.subr.mxu0 0.0
      %971 = vmatpush2.msra.mxu0 0.0
      %972 = vmatprep.subr.mxu0 0.0
      %973 = vmatpush2.msra.mxu0 0.0
      %974 = vmatprep.subr.mxu0 0.0
      %975 = vmatpush2.msra.mxu0 0.0
      %976 = vmatprep.subr.mxu0 0.0
      %977 = vmatpush2.msra.mxu0 0.0
      %978 = vmatprep.subr.mxu0 0.0
      %979 = vmatpush2.msra.mxu0 0.0
      %980 = vmatprep.subr.mxu0 0.0
      %981 = vmatpush2.msra.mxu0 0.0
      %982 = vmatprep.subr.mxu0 0.0
      %983 = vmatpush2.msra.mxu0 0.0
      %984 = vmatprep.subr.mxu0 0.0
      %985 = vmatpush2.msra.mxu0 0.0
      %986 = vmatprep.subr.mxu0 0.0
      %987 = vmatpush2.msra.mxu0 0.0
      %988 = vmatprep.subr.mxu0 0.0
      %989 = vmatpush2.msra.mxu0 0.0
      %990 = vmatprep.subr.mxu0 0.0
      %991 = vmatpush2.msra.mxu0 0.0
      %992 = vmatprep.subr.mxu0 0.0
      %993 = vmatpush2.msra.mxu0 0.0
      %994 = vmatprep.subr.mxu0 0.0
      %995 = vmatpush2.msra.mxu0 0.0
      %996 = vmatprep.subr.mxu0 0.0
      %997 = vmatpush2.msra.mxu0 0.0
      %998 = vmatprep.subr.mxu0 0.0
      %999 = vmatpush2.msra.mxu0 0.0
      %1000 = vmatprep.subr.mxu0 0.0
      %1001 = vmatpush2.msra.mxu0 0.0
      %1002 = vmatprep.mubr.f32.mxu0 0.0
      %1003 = vmatmul.mubr.f32.gmra.mxu0 %v936
      %v1004 = vpop.f32.mrf.mxu0
      %v1005 = vadd.f32 0.0, %v1004
      %v1006 = vpop.f32.mrf.mxu0
      %1007 = vdwg.mxu0
      %v1008 = vadd.f32 %v918, %v1005
      %s1009 = scalar_lea.vmem %s2, 56
      %v1010 = vld [vmem:[%s1009] sm:$0xff]
      %1011 = vrot.lane.b32.xlu0 %v380, 95
      %v1012 = vpop.permute.xlu0 %1011
      %1013 = vrot.lane.b32.xlu0 %v383, 95
      %v1014 = vpop.permute.xlu0 %1013
      %vm1015 = vcmask 777216
      %v1016 = vsel %vm1015, %v1012, %v1014
      %v1019 = vsel %vm417, %v1010, 0
      %1021 = vmatprep.subr.mxu0 0.0
      %1022 = vmatpush1.msra.mxu0 0.0
      %1023 = vmatprep.subr.mxu0 0.0
      %1024 = vmatpush1.msra.mxu0 0.0
      %1025 = vmatprep.subr.mxu0 0.0
      %1026 = vmatpush1.msra.mxu0 0.0
      %1027 = vmatprep.subr.mxu0 0.0
      %1028 = vmatpush1.msra.mxu0 0.0
      %1029 = vmatprep.subr.mxu0 0.0
      %1030 = vmatpush1.msra.mxu0 0.0
      %1031 = vmatprep.subr.mxu0 0.0
      %1032 = vmatpush1.msra.mxu0 0.0
      %1033 = vmatprep.subr.mxu0 0.0
      %1034 = vmatpush1.msra.mxu0 0.0
      %1035 = vmatprep.subr.mxu0 0.0
      %1036 = vmatpush1.msra.mxu0 0.0
      %1037 = vmatprep.subr.mxu0 0.0
      %1038 = vmatpush1.msra.mxu0 0.0
      %1039 = vmatprep.subr.mxu0 0.0
      %1040 = vmatpush1.msra.mxu0 0.0
      %1041 = vmatprep.subr.mxu0 0.0
      %1042 = vmatpush1.msra.mxu0 0.0
      %1043 = vmatprep.subr.mxu0 0.0
      %1044 = vmatpush1.msra.mxu0 0.0
      %1045 = vmatprep.subr.mxu0 0.0
      %1046 = vmatpush1.msra.mxu0 0.0
      %1047 = vmatprep.subr.mxu0 0.0
      %1048 = vmatpush1.msra.mxu0 0.0
      %1049 = vmatprep.subr.mxu0 0.0
      %1050 = vmatpush1.msra.mxu0 0.0
      %1051 = vmatprep.subr.mxu0 0.0
      %1052 = vmatpush1.msra.mxu0 %v1016
      %1053 = vmatprep.subr.mxu0 0.0
      %1054 = vmatpush2.msra.mxu0 0.0
      %1055 = vmatprep.subr.mxu0 0.0
      %1056 = vmatpush2.msra.mxu0 0.0
      %1057 = vmatprep.subr.mxu0 0.0
      %1058 = vmatpush2.msra.mxu0 0.0
      %1059 = vmatprep.subr.mxu0 0.0
      %1060 = vmatpush2.msra.mxu0 0.0
      %1061 = vmatprep.subr.mxu0 0.0
      %1062 = vmatpush2.msra.mxu0 0.0
      %1063 = vmatprep.subr.mxu0 0.0
      %1064 = vmatpush2.msra.mxu0 0.0
      %1065 = vmatprep.subr.mxu0 0.0
      %1066 = vmatpush2.msra.mxu0 0.0
      %1067 = vmatprep.subr.mxu0 0.0
      %1068 = vmatpush2.msra.mxu0 0.0
      %1069 = vmatprep.subr.mxu0 0.0
      %1070 = vmatpush2.msra.mxu0 0.0
      %1071 = vmatprep.subr.mxu0 0.0
      %1072 = vmatpush2.msra.mxu0 0.0
      %1073 = vmatprep.subr.mxu0 0.0
      %1074 = vmatpush2.msra.mxu0 0.0
      %1075 = vmatprep.subr.mxu0 0.0
      %1076 = vmatpush2.msra.mxu0 0.0
      %1077 = vmatprep.subr.mxu0 0.0
      %1078 = vmatpush2.msra.mxu0 0.0
      %1079 = vmatprep.subr.mxu0 0.0
      %1080 = vmatpush2.msra.mxu0 0.0
      %1081 = vmatprep.subr.mxu0 0.0
      %1082 = vmatpush2.msra.mxu0 0.0
      %1083 = vmatprep.subr.mxu0 0.0
      %1084 = vmatpush2.msra.mxu0 0.0
      %1085 = vmatprep.mubr.f32.mxu0 0.0
      %1086 = vmatmul.mubr.f32.gmra.mxu0 %v1019
      %v1087 = vpop.f32.mrf.mxu0
      %v1088 = vadd.f32 0.0, %v1087
      %v1089 = vpop.f32.mrf.mxu0
      %1090 = vdwg.mxu0
      %v1091 = vadd.f32 %v1008, %v1088
      %1092 = vrot.lane.b32.xlu0 %v403, 34
      %v1093 = vpop.permute.xlu0 %1092
      %v1095 = vmul.f32 %v380, %v1093
      %v1096 = vmul.f32 %v383, %v1093
      %s1097 = scalar_lea.vmem %s2, 64
      %v1098 = vld [vmem:[%s1097] sm:$0xff]
      %1101 = vrot.lane.b32.xlu0 %v1095, 94
      %v1102 = vpop.permute.xlu0 %1101
      %1103 = vrot.lane.b32.xlu0 %v1096, 94
      %v1104 = vpop.permute.xlu0 %1103
      %vm1105 = vcmask 769024
      %v1106 = vsel %vm1105, %v1102, %v1104
      %v1109 = vsel %vm417, %v1098, 0
      %1111 = vmatprep.subr.mxu0 0.0
      %1112 = vmatpush1.msra.mxu0 0.0
      %1113 = vmatprep.subr.mxu0 0.0
      %1114 = vmatpush1.msra.mxu0 0.0
      %1115 = vmatprep.subr.mxu0 0.0
      %1116 = vmatpush1.msra.mxu0 0.0
      %1117 = vmatprep.subr.mxu0 0.0
      %1118 = vmatpush1.msra.mxu0 0.0
      %1119 = vmatprep.subr.mxu0 0.0
      %1120 = vmatpush1.msra.mxu0 0.0
      %1121 = vmatprep.subr.mxu0 0.0
      %1122 = vmatpush1.msra.mxu0 0.0
      %1123 = vmatprep.subr.mxu0 0.0
      %1124 = vmatpush1.msra.mxu0 0.0
      %1125 = vmatprep.subr.mxu0 0.0
      %1126 = vmatpush1.msra.mxu0 0.0
      %1127 = vmatprep.subr.mxu0 0.0
      %1128 = vmatpush1.msra.mxu0 0.0
      %1129 = vmatprep.subr.mxu0 0.0
      %1130 = vmatpush1.msra.mxu0 0.0
      %1131 = vmatprep.subr.mxu0 0.0
      %1132 = vmatpush1.msra.mxu0 0.0
      %1133 = vmatprep.subr.mxu0 0.0
      %1134 = vmatpush1.msra.mxu0 0.0
      %1135 = vmatprep.subr.mxu0 0.0
      %1136 = vmatpush1.msra.mxu0 0.0
      %1137 = vmatprep.subr.mxu0 0.0
      %1138 = vmatpush1.msra.mxu0 0.0
      %1139 = vmatprep.subr.mxu0 0.0
      %1140 = vmatpush1.msra.mxu0 0.0
      %1141 = vmatprep.subr.mxu0 0.0
      %1142 = vmatpush1.msra.mxu0 %v1106
      %1143 = vmatprep.subr.mxu0 0.0
      %1144 = vmatpush2.msra.mxu0 0.0
      %1145 = vmatprep.subr.mxu0 0.0
      %1146 = vmatpush2.msra.mxu0 0.0
      %1147 = vmatprep.subr.mxu0 0.0
      %1148 = vmatpush2.msra.mxu0 0.0
      %1149 = vmatprep.subr.mxu0 0.0
      %1150 = vmatpush2.msra.mxu0 0.0
      %1151 = vmatprep.subr.mxu0 0.0
      %1152 = vmatpush2.msra.mxu0 0.0
      %1153 = vmatprep.subr.mxu0 0.0
      %1154 = vmatpush2.msra.mxu0 0.0
      %1155 = vmatprep.subr.mxu0 0.0
      %1156 = vmatpush2.msra.mxu0 0.0
      %1157 = vmatprep.subr.mxu0 0.0
      %1158 = vmatpush2.msra.mxu0 0.0
      %1159 = vmatprep.subr.mxu0 0.0
      %1160 = vmatpush2.msra.mxu0 0.0
      %1161 = vmatprep.subr.mxu0 0.0
      %1162 = vmatpush2.msra.mxu0 0.0
      %1163 = vmatprep.subr.mxu0 0.0
      %1164 = vmatpush2.msra.mxu0 0.0
      %1165 = vmatprep.subr.mxu0 0.0
      %1166 = vmatpush2.msra.mxu0 0.0
      %1167 = vmatprep.subr.mxu0 0.0
      %1168 = vmatpush2.msra.mxu0 0.0
      %1169 = vmatprep.subr.mxu0 0.0
      %1170 = vmatpush2.msra.mxu0 0.0
      %1171 = vmatprep.subr.mxu0 0.0
      %1172 = vmatpush2.msra.mxu0 0.0
      %1173 = vmatprep.subr.mxu0 0.0
      %1174 = vmatpush2.msra.mxu0 0.0
      %1175 = vmatprep.mubr.f32.mxu0 0.0
      %1176 = vmatmul.mubr.f32.gmra.mxu0 %v1109
      %v1177 = vpop.f32.mrf.mxu0
      %v1178 = vadd.f32 0.0, %v1177
      %v1179 = vpop.f32.mrf.mxu0
      %1180 = vdwg.mxu0
      %v1181 = vadd.f32 %v1091, %v1178
      %1182 = vst [vmem:[%s326] sm:$0xff] %v1181
      %1183 = vadd.xlane.f32.xlu0 %v1181
      %v1184 = vpop.xlane.xlu0 %1183
      %v1185 = vmul.f32 %v1181, %v1181
      %1186 = vadd.xlane.f32.xlu0 %v1185
      %v1187 = vpop.xlane.xlu0 %1186
      %v1188 = vsel %vm377, %v1184, %v1187
      %vm1189 = vcmask 15360
      %1190 = vst.msk [vmem:[%s334] sm:$0xff] %vm1189, %v1188
      %p1191 = scmp.lt.s32.totalorder %s22, 1
      %s1192 = scalar_select %p1191, %s22, 1
      %p1193 = scmp.lt.s32.totalorder %s23, 1
      %s1194 = scalar_select %p1193, %s23, 1
      %s1195 = smul.addr %s1192, 2
      %s1196 = sadd.s32 %s1194, %s1195
      %s1197 = smul.addr %s1196, 8
      %s1198 = scalar_lea.vmem %s5, %s1197
      %p1199 = scmp.lt.s32.totalorder %s22, 1
      %s1200 = scalar_select %p1199, %s22, 1
      %p1201 = scmp.lt.s32.totalorder %s23, 1
      %s1202 = scalar_select %p1201, %s23, 1
      %s1203 = smul.addr %s1200, 2
      %s1204 = sadd.s32 %s1202, %s1203
      %s1205 = smul.addr %s1204, 8
      %s1206 = scalar_lea.vmem %s6, %s1205
      // Predicated region
      $region41: #{_double_conv_impl.4} parent=39 // pred_check
        %p1207 = pneg %p169
      $region42: #{_double_conv_impl.4} parent=39 // pred_check_branch
        %1209 = sbr.rel (%p1207) target = $region44
      $region43: #{_double_conv_impl.4} parent=39 // pred_region
        _
      $region44: #{_double_conv_impl.4} parent=39 // pred_fallthru
        _
      // Predicated region
      $region45: #{_double_conv_impl.4} parent=39 // pred_check
        %p1210 = pneg %p197
      $region46: #{_double_conv_impl.4} parent=39 // pred_check_branch
        %1212 = sbr.rel (%p1210) target = $region48
      $region47: #{_double_conv_impl.4} parent=39 // pred_region
        _
      $region48: #{_double_conv_impl.4} parent=39 // pred_fallthru
        _
    $region40: #{_double_conv_impl.4} parent=5 // pred_fallthru
      _
    %p1213 = scmp.le.s32.totalorder 2, %s13
    // Predicated region
    $region49: #{_double_conv_impl.4} parent=5 // pred_check
      %p1214 = pneg %p1213
    $region50: #{_double_conv_impl.4} parent=5 // pred_check_branch
      %1216 = sbr.rel (%p1214) target = $region52
    $region51: #{_double_conv_impl.4} parent=5 // pred_region
      %s1217 = ssub.s32 %s13, 2
      // Predicated region
      $region53: #{_double_conv_impl.4} parent=51 // pred_check
        %p1218 = pneg %p175
      $region54: #{_double_conv_impl.4} parent=51 // pred_check_branch
        %1220 = sbr.rel (%p1218) target = $region56
      $region55: #{_double_conv_impl.4} parent=51 // pred_region
        %p1221 = scmp.lt.s32.totalorder %s24, 1
        %s1222 = scalar_select %p1221, %s24, 1
        %p1223 = scmp.lt.s32.totalorder %s25, 1
        %s1224 = scalar_select %p1223, %s25, 1
        %s1225 = smul.addr %s1222, 2
        %s1226 = sadd.s32 %s1224, %s1225
        %s1227 = smul.addr %s1226, 8
        %s1228 = scalar_lea.vmem %s5, %s1227
      $region56: #{_double_conv_impl.4} parent=51 // pred_fallthru
        _
      // Predicated region
      $region57: #{_double_conv_impl.4} parent=51 // pred_check
        %p1229 = pneg %p203
      $region58: #{_double_conv_impl.4} parent=51 // pred_check_branch
        %1231 = sbr.rel (%p1229) target = $region60
      $region59: #{_double_conv_impl.4} parent=51 // pred_region
        %p1232 = scmp.lt.s32.totalorder %s24, 1
        %s1233 = scalar_select %p1232, %s24, 1
        %p1234 = scmp.lt.s32.totalorder %s25, 1
        %s1235 = scalar_select %p1234, %s25, 1
        %s1236 = smul.addr %s1233, 2
        %s1237 = sadd.s32 %s1235, %s1236
        %s1238 = smul.addr %s1237, 8
        %s1239 = scalar_lea.vmem %s6, %s1238
      $region60: #{_double_conv_impl.4} parent=51 // pred_fallthru
        _
    $region52: #{_double_conv_impl.4} parent=5 // pred_fallthru
      _
  $region6: #{_double_conv_impl.4} parent=0 // loop_footer
    %s17 = sadd.s32 1, %s13
  $region7: #{_double_conv_impl.4} parent=0 // loop_footer_branch
    %12 = sbr.rel target = $region3
  $region8: #{_double_conv_impl.4} parent=0 // loop_exit
    _

</llo_original>
